<compile_context>
chip_gen: v7x
topology: tpu7x:2x2x1
jax: 0.10.0
libtpu: 0.0.40
codegen_flags: <defaults>
</compile_context>

<pallas_src>
import jax
import jax.numpy as jnp
import numpy as np
from jax.experimental import pallas as pl
from jax.experimental.pallas import tpu as pltpu

FEATURE_SIZE = 32
_NB = 8  # batch rows per grid block (= f32 sublane count)


def _gru_kernel(gi_ref, h0_ref, whh_ref, bhhn_ref, out_ref, hn_ref):
    """Recurrence-only GRU kernel.

    gi_ref  : (T, NB, 3F)  precomputed input projections + folded biases
    h0_ref  : (NB, F)      initial hidden state
    whh_ref : (F, 3F)      W_hh^T, gate columns [r | z | n]
    bhhn_ref: (1, F)       b_hh_n (must be applied before the r-multiply)
    out_ref : (NB, T*F)    all hidden states, lane-dense slab
    hn_ref  : (NB, F)      final hidden state
    """
    T = gi_ref.shape[0]
    NB = h0_ref.shape[0]
    F = h0_ref.shape[-1]

    whh = whh_ref[...]                                     # (F, 3F) VMEM-resident
    bhhn = jnp.broadcast_to(bhhn_ref[...], (NB, F))        # hoisted: one broadcast
    h = h0_ref[...].astype(jnp.float32)

    group = []                                             # pending lane-dense store
    for t in range(T):                                     # static, fully unrolled
        gi = gi_ref[t]                                     # (NB, 3F)
        gh = jnp.dot(h, whh, preferred_element_type=jnp.float32,
                     precision=jax.lax.Precision.HIGHEST)  # (NB, 3F) single MXU push
        rz = jax.nn.sigmoid(gi[:, :2 * F] + gh[:, :2 * F])  # fused r,z: one EUP call
        r = rz[:, :F]
        z = rz[:, F:]
        n = jnp.tanh(gi[:, 2 * F:] + r * (gh[:, 2 * F:] + bhhn))
        h = n + z * (h - n)                                # == (1-z)*n + z*h

        group.append(h)
        if len(group) * F >= 128 or t == T - 1:            # 128-lane unmasked stores
            start = (t + 1 - len(group)) * F
            out_ref[:, start:start + len(group) * F] = (
                jnp.concatenate(group, axis=-1).astype(out_ref.dtype))
            group = []

    hn_ref[...] = h.astype(hn_ref.dtype)


@jax.jit
def gru_pallas(x, h0, wih_packed, whh_packed, bi_packed, bhhn):
    """x: (N, T, F) batch-first; h0: (N, F).  Returns (output (N,T,F), h_n (N,F))."""
    N, T, F = x.shape

    # Pad batch to a sublane multiple so every vreg row / MXU row is used.
    n_pad = (-N) % _NB
    if n_pad:
        x = jnp.concatenate([x, jnp.zeros((n_pad, T, F), x.dtype)], axis=0)
        h0 = jnp.concatenate([h0, jnp.zeros((n_pad, F), h0.dtype)], axis=0)
    NP = N + n_pad

    # Hoisted input projection: ONE GEMM over all (t, n) with r/z/bih_n biases
    # folded in.  Only b_hh_n remains as a per-step (32-lane) add in the kernel.
    gi_all = jnp.einsum('ntf,fg->tng', x, wih_packed,
                        precision=jax.lax.Precision.HIGHEST) + bi_packed  # (T, NP, 3F)

    out_flat, h_n = pl.pallas_call(
        _gru_kernel,
        out_shape=(jax.ShapeDtypeStruct((NP, T * F), x.dtype),
                   jax.ShapeDtypeStruct((NP, F), x.dtype)),
        grid=(NP // _NB,),
        in_specs=[
            pl.BlockSpec((T, _NB, 3 * F), lambda i: (0, i, 0)),   # gi_all block
            pl.BlockSpec((_NB, F), lambda i: (i, 0)),             # h0 block
            pl.BlockSpec((F, 3 * F), lambda i: (0, 0)),           # W_hh packed
            pl.BlockSpec((1, F), lambda i: (0, 0)),               # b_hh_n
        ],
        out_specs=(
            pl.BlockSpec((_NB, T * F), lambda i: (i, 0)),         # lane-dense slab
            pl.BlockSpec((_NB, F), lambda i: (i, 0)),             # final hidden
        ),
        compiler_params=pltpu.CompilerParams(
            dimension_semantics=("parallel",)),                   # batch blocks independent
    )(gi_all, h0, whh_packed, bhhn)

    return out_flat[:N].reshape(N, T, F), h_n[:N]


def pack_gru_params(weight_ih, weight_hh, bias_ih, bias_hh):
    """Pack nn.GRU params for the hoisted-projection kernel.

    wih_packed / whh_packed : (F, 3F) = W^T with gate columns [r | z | n].
    bi_packed               : (3F,)   = [bih_r+bhh_r, bih_z+bhh_z, bih_n]
    bhhn                    : (1, F)  = bhh_n (applied before the r-multiply).
    """
    F = weight_ih.shape[1]
    wih_packed = weight_ih.T
    whh_packed = weight_hh.T
    bih = bias_ih.reshape(3, F)
    bhh = bias_hh.reshape(3, F)
    bi_packed = jnp.concatenate([bih[0] + bhh[0], bih[1] + bhh[1], bih[2]])
    bhhn = bhh[2].reshape(1, F)
    return wih_packed, whh_packed, bi_packed, bhhn


def grucell1_forward(path_features, channel_features, paths,
                     wih_packed, whh_packed, bi_packed, bhhn):
    """Mirror of GRUCell1.forward: runs the GRU, returns path_features unchanged.

    All independent per-path GRU runs are batched into a single Pallas call.
    """
    P, _, B, F = path_features.shape
    # TODO(synk): paths with >1 channel are not supported here — the reference
    # nn.GRU module itself would crash there (hx must be a Tensor, not the
    # (output, h_n) tuple), so only the first channel of each path is run.
    chan_idx = [p['channel_idx'][0] for p in paths]

    x_b = jnp.concatenate([channel_features[c] for c in chan_idx], axis=0)   # (P*B, T, F)
    h0_b = path_features[:, 0].reshape(P * B, F)                             # (P*B, F)

    out_b, hn_b = gru_pallas(x_b, h0_b, wih_packed, whh_packed, bi_packed, bhhn)

    gru_results = [(out_b[i * B:(i + 1) * B], hn_b[i * B:(i + 1) * B][None])
                   for i in range(P)]
    # NOTE: like the PyTorch module, the GRU results are never written back.
    return path_features, gru_results


def gru_ref(x, h0, weight_ih, weight_hh, bias_ih, bias_hh):
    """Pure-JAX reference of torch.nn.GRU (1 layer, batch_first), exact f32."""
    B, T, F = x.shape
    h = h0[0]
    hp = jax.lax.Precision.HIGHEST
    outs = []
    for t in range(T):
        x_t = x[:, t]
        gi = jnp.dot(x_t, weight_ih.T, precision=hp) + bias_ih
        gh = jnp.dot(h, weight_hh.T, precision=hp) + bias_hh
        r = jax.nn.sigmoid(gi[:, :F] + gh[:, :F])
        z = jax.nn.sigmoid(gi[:, F:2 * F] + gh[:, F:2 * F])
        n = jnp.tanh(gi[:, 2 * F:] + r * gh[:, 2 * F:])
        h = (1.0 - z) * n + z * h
        outs.append(h)
    return jnp.stack(outs, axis=1), h[None]


if __name__ == "__main__":
    F = FEATURE_SIZE
    B, T = 2, 8
    n_channels, n_paths = 3, 2
    # one channel per path (multiple channels per path would crash in PyTorch,
    # since nn.GRU's hx must be a Tensor, not the (output, h_n) tuple)
    paths = [{'channel_idx': [0]}, {'channel_idx': [2]}]

    key = jax.random.PRNGKey(0)
    k = jax.random.split(key, 6)
    s = 1.0 / np.sqrt(F)
    # nn.GRU parameter shapes: weight_ih_l0 (3F,F), weight_hh_l0 (3F,F), biases (3F,)
    weight_ih = jax.random.uniform(k[0], (3 * F, F), jnp.float32, -s, s)
    weight_hh = jax.random.uniform(k[1], (3 * F, F), jnp.float32, -s, s)
    bias_ih = jax.random.uniform(k[2], (3 * F,), jnp.float32, -s, s)
    bias_hh = jax.random.uniform(k[3], (3 * F,), jnp.float32, -s, s)

    wih_p, whh_p, bi_p, bhhn = pack_gru_params(weight_ih, weight_hh, bias_ih, bias_hh)

    channel_features = jax.random.normal(k[4], (n_channels, B, T, F), jnp.float32)
    path_features = jax.random.normal(k[5], (n_paths, 1, B, F), jnp.float32)

    result, gru_results = grucell1_forward(path_features, channel_features, paths,
                                           wih_p, whh_p, bi_p, bhhn)

    jax.block_until_ready(result)
    for out, hn in gru_results:
        jax.block_until_ready(out)
        jax.block_until_ready(hn)

    # sanity check the Pallas GRU against a pure-JAX reference
    for path_idx, (out, hn) in enumerate(gru_results):
        ci = paths[path_idx]['channel_idx'][0]
        ref_out, ref_hn = gru_ref(channel_features[ci], path_features[path_idx],
                                  weight_ih, weight_hh, bias_ih, bias_hh)
        np.testing.assert_allclose(np.asarray(out), np.asarray(ref_out),
                                   atol=1e-5, rtol=1e-5)
        np.testing.assert_allclose(np.asarray(hn), np.asarray(ref_hn),
                                   atol=1e-5, rtol=1e-5)

    # module semantics: forward returns path_features unchanged
    np.testing.assert_array_equal(np.asarray(result), np.asarray(path_features))

    print("KERNEL_OK")
</pallas_src>

<mosaic_0001>
module attributes {stable_mosaic.version = 11 : i64} {
  func.func @_gru_kernel(%arg0: i32, %arg1: memref<8x8x96xf32, #tpu.memory_space<vmem>>, %arg2: memref<8x32xf32, #tpu.memory_space<vmem>>, %arg3: memref<32x96xf32, #tpu.memory_space<vmem>>, %arg4: memref<1x32xf32, #tpu.memory_space<vmem>>, %arg5: memref<8x256xf32, #tpu.memory_space<vmem>>, %arg6: memref<8x32xf32, #tpu.memory_space<vmem>>) attributes {dimension_semantics = [#tpu.dimension_semantics<parallel>], iteration_bounds = array<i64: 1>, scalar_prefetch = 0 : i64, scratch_operands = 0 : i64, tpu.core_type = #tpu.core_type<tc>, window_params = [{transform_indices = @transform_0, window_bounds = array<i64: 8, 8, 96>}, {transform_indices = @transform_1, window_bounds = array<i64: 8, 32>}, {pipeline_mode = #tpu.pipeline_mode<synchronous>, transform_indices = @transform_2, window_bounds = array<i64: 32, 96>}, {pipeline_mode = #tpu.pipeline_mode<synchronous>, transform_indices = @transform_3, window_bounds = array<i64: 1, 32>}, {transform_indices = @transform_4, window_bounds = array<i64: 8, 256>}, {transform_indices = @transform_5, window_bounds = array<i64: 8, 32>}]} {
    %c0 = arith.constant 0 : index
    %c0_0 = arith.constant 0 : index
    %0 = vector.load %arg3[%c0, %c0_0] : memref<32x96xf32, #tpu.memory_space<vmem>>, vector<32x96xf32>
    %c0_1 = arith.constant 0 : index
    %c0_2 = arith.constant 0 : index
    %1 = vector.load %arg4[%c0_1, %c0_2] : memref<1x32xf32, #tpu.memory_space<vmem>>, vector<1x32xf32>
    %2 = vector.shape_cast %1 : vector<1x32xf32> to vector<1x32xf32>
    %3 = vector.broadcast %2 : vector<1x32xf32> to vector<8x32xf32>
    %c0_3 = arith.constant 0 : index
    %c0_4 = arith.constant 0 : index
    %4 = vector.load %arg2[%c0_3, %c0_4] : memref<8x32xf32, #tpu.memory_space<vmem>>, vector<8x32xf32>
    %c0_5 = arith.constant 0 : index
    %c0_6 = arith.constant 0 : index
    %c0_7 = arith.constant 0 : index
    %5 = vector.load %arg1[%c0_5, %c0_6, %c0_7] : memref<8x8x96xf32, #tpu.memory_space<vmem>>, vector<1x8x96xf32>
    %6 = vector.shape_cast %5 : vector<1x8x96xf32> to vector<8x96xf32>
    %cst = arith.constant dense<0.000000e+00> : vector<8x96xf32>
    %7 = tpu.matmul %4, %0, %cst {dimension_numbers = #tpu.dot_dimension_numbers<[1], [0], [0], [1], [0, 0, 1, 1], [], []>, precision = #tpu.contract_precision<fp32>} : vector<8x32xf32>, vector<32x96xf32>, vector<8x96xf32> -> vector<8x96xf32>
    %8 = vector.extract_strided_slice %6 {offsets = [0, 0], sizes = [8, 64], strides = [1, 1]} : vector<8x96xf32> to vector<8x64xf32>
    %9 = vector.extract_strided_slice %7 {offsets = [0, 0], sizes = [8, 64], strides = [1, 1]} : vector<8x96xf32> to vector<8x64xf32>
    %10 = arith.addf %8, %9 : vector<8x64xf32>
    %11 = arith.negf %10 : vector<8x64xf32>
    %12 = math.exp %11 : vector<8x64xf32>
    %cst_8 = arith.constant 1.000000e+00 : f32
    %13 = vector.broadcast %cst_8 : f32 to vector<8x64xf32>
    %14 = arith.addf %13, %12 : vector<8x64xf32>
    %15 = arith.divf %13, %14 : vector<8x64xf32>
    %16 = vector.extract_strided_slice %15 {offsets = [0, 0], sizes = [8, 32], strides = [1, 1]} : vector<8x64xf32> to vector<8x32xf32>
    %17 = vector.extract_strided_slice %15 {offsets = [0, 32], sizes = [8, 32], strides = [1, 1]} : vector<8x64xf32> to vector<8x32xf32>
    %18 = vector.extract_strided_slice %6 {offsets = [0, 64], sizes = [8, 32], strides = [1, 1]} : vector<8x96xf32> to vector<8x32xf32>
    %19 = vector.extract_strided_slice %7 {offsets = [0, 64], sizes = [8, 32], strides = [1, 1]} : vector<8x96xf32> to vector<8x32xf32>
    %20 = arith.addf %19, %3 : vector<8x32xf32>
    %21 = arith.mulf %16, %20 : vector<8x32xf32>
    %22 = arith.addf %18, %21 : vector<8x32xf32>
    %23 = math.tanh %22 : vector<8x32xf32>
    %24 = arith.subf %4, %23 : vector<8x32xf32>
    %25 = arith.mulf %17, %24 : vector<8x32xf32>
    %26 = arith.addf %23, %25 : vector<8x32xf32>
    %c1 = arith.constant 1 : index
    %c0_9 = arith.constant 0 : index
    %c0_10 = arith.constant 0 : index
    %27 = vector.load %arg1[%c1, %c0_9, %c0_10] : memref<8x8x96xf32, #tpu.memory_space<vmem>>, vector<1x8x96xf32>
    %28 = vector.shape_cast %27 : vector<1x8x96xf32> to vector<8x96xf32>
    %cst_11 = arith.constant dense<0.000000e+00> : vector<8x96xf32>
    %29 = tpu.matmul %26, %0, %cst_11 {dimension_numbers = #tpu.dot_dimension_numbers<[1], [0], [0], [1], [0, 0, 1, 1], [], []>, precision = #tpu.contract_precision<fp32>} : vector<8x32xf32>, vector<32x96xf32>, vector<8x96xf32> -> vector<8x96xf32>
    %30 = vector.extract_strided_slice %28 {offsets = [0, 0], sizes = [8, 64], strides = [1, 1]} : vector<8x96xf32> to vector<8x64xf32>
    %31 = vector.extract_strided_slice %29 {offsets = [0, 0], sizes = [8, 64], strides = [1, 1]} : vector<8x96xf32> to vector<8x64xf32>
    %32 = arith.addf %30, %31 : vector<8x64xf32>
    %33 = arith.negf %32 : vector<8x64xf32>
    %34 = math.exp %33 : vector<8x64xf32>
    %cst_12 = arith.constant 1.000000e+00 : f32
    %35 = vector.broadcast %cst_12 : f32 to vector<8x64xf32>
    %36 = arith.addf %35, %34 : vector<8x64xf32>
    %37 = arith.divf %35, %36 : vector<8x64xf32>
    %38 = vector.extract_strided_slice %37 {offsets = [0, 0], sizes = [8, 32], strides = [1, 1]} : vector<8x64xf32> to vector<8x32xf32>
    %39 = vector.extract_strided_slice %37 {offsets = [0, 32], sizes = [8, 32], strides = [1, 1]} : vector<8x64xf32> to vector<8x32xf32>
    %40 = vector.extract_strided_slice %28 {offsets = [0, 64], sizes = [8, 32], strides = [1, 1]} : vector<8x96xf32> to vector<8x32xf32>
    %41 = vector.extract_strided_slice %29 {offsets = [0, 64], sizes = [8, 32], strides = [1, 1]} : vector<8x96xf32> to vector<8x32xf32>
    %42 = arith.addf %41, %3 : vector<8x32xf32>
    %43 = arith.mulf %38, %42 : vector<8x32xf32>
    %44 = arith.addf %40, %43 : vector<8x32xf32>
    %45 = math.tanh %44 : vector<8x32xf32>
    %46 = arith.subf %26, %45 : vector<8x32xf32>
    %47 = arith.mulf %39, %46 : vector<8x32xf32>
    %48 = arith.addf %45, %47 : vector<8x32xf32>
    %c2 = arith.constant 2 : index
    %c0_13 = arith.constant 0 : index
    %c0_14 = arith.constant 0 : index
    %49 = vector.load %arg1[%c2, %c0_13, %c0_14] : memref<8x8x96xf32, #tpu.memory_space<vmem>>, vector<1x8x96xf32>
    %50 = vector.shape_cast %49 : vector<1x8x96xf32> to vector<8x96xf32>
    %cst_15 = arith.constant dense<0.000000e+00> : vector<8x96xf32>
    %51 = tpu.matmul %48, %0, %cst_15 {dimension_numbers = #tpu.dot_dimension_numbers<[1], [0], [0], [1], [0, 0, 1, 1], [], []>, precision = #tpu.contract_precision<fp32>} : vector<8x32xf32>, vector<32x96xf32>, vector<8x96xf32> -> vector<8x96xf32>
    %52 = vector.extract_strided_slice %50 {offsets = [0, 0], sizes = [8, 64], strides = [1, 1]} : vector<8x96xf32> to vector<8x64xf32>
    %53 = vector.extract_strided_slice %51 {offsets = [0, 0], sizes = [8, 64], strides = [1, 1]} : vector<8x96xf32> to vector<8x64xf32>
    %54 = arith.addf %52, %53 : vector<8x64xf32>
    %55 = arith.negf %54 : vector<8x64xf32>
    %56 = math.exp %55 : vector<8x64xf32>
    %cst_16 = arith.constant 1.000000e+00 : f32
    %57 = vector.broadcast %cst_16 : f32 to vector<8x64xf32>
    %58 = arith.addf %57, %56 : vector<8x64xf32>
    %59 = arith.divf %57, %58 : vector<8x64xf32>
    %60 = vector.extract_strided_slice %59 {offsets = [0, 0], sizes = [8, 32], strides = [1, 1]} : vector<8x64xf32> to vector<8x32xf32>
    %61 = vector.extract_strided_slice %59 {offsets = [0, 32], sizes = [8, 32], strides = [1, 1]} : vector<8x64xf32> to vector<8x32xf32>
    %62 = vector.extract_strided_slice %50 {offsets = [0, 64], sizes = [8, 32], strides = [1, 1]} : vector<8x96xf32> to vector<8x32xf32>
    %63 = vector.extract_strided_slice %51 {offsets = [0, 64], sizes = [8, 32], strides = [1, 1]} : vector<8x96xf32> to vector<8x32xf32>
    %64 = arith.addf %63, %3 : vector<8x32xf32>
    %65 = arith.mulf %60, %64 : vector<8x32xf32>
    %66 = arith.addf %62, %65 : vector<8x32xf32>
    %67 = math.tanh %66 : vector<8x32xf32>
    %68 = arith.subf %48, %67 : vector<8x32xf32>
    %69 = arith.mulf %61, %68 : vector<8x32xf32>
    %70 = arith.addf %67, %69 : vector<8x32xf32>
    %c3 = arith.constant 3 : index
    %c0_17 = arith.constant 0 : index
    %c0_18 = arith.constant 0 : index
    %71 = vector.load %arg1[%c3, %c0_17, %c0_18] : memref<8x8x96xf32, #tpu.memory_space<vmem>>, vector<1x8x96xf32>
    %72 = vector.shape_cast %71 : vector<1x8x96xf32> to vector<8x96xf32>
    %cst_19 = arith.constant dense<0.000000e+00> : vector<8x96xf32>
    %73 = tpu.matmul %70, %0, %cst_19 {dimension_numbers = #tpu.dot_dimension_numbers<[1], [0], [0], [1], [0, 0, 1, 1], [], []>, precision = #tpu.contract_precision<fp32>} : vector<8x32xf32>, vector<32x96xf32>, vector<8x96xf32> -> vector<8x96xf32>
    %74 = vector.extract_strided_slice %72 {offsets = [0, 0], sizes = [8, 64], strides = [1, 1]} : vector<8x96xf32> to vector<8x64xf32>
    %75 = vector.extract_strided_slice %73 {offsets = [0, 0], sizes = [8, 64], strides = [1, 1]} : vector<8x96xf32> to vector<8x64xf32>
    %76 = arith.addf %74, %75 : vector<8x64xf32>
    %77 = arith.negf %76 : vector<8x64xf32>
    %78 = math.exp %77 : vector<8x64xf32>
    %cst_20 = arith.constant 1.000000e+00 : f32
    %79 = vector.broadcast %cst_20 : f32 to vector<8x64xf32>
    %80 = arith.addf %79, %78 : vector<8x64xf32>
    %81 = arith.divf %79, %80 : vector<8x64xf32>
    %82 = vector.extract_strided_slice %81 {offsets = [0, 0], sizes = [8, 32], strides = [1, 1]} : vector<8x64xf32> to vector<8x32xf32>
    %83 = vector.extract_strided_slice %81 {offsets = [0, 32], sizes = [8, 32], strides = [1, 1]} : vector<8x64xf32> to vector<8x32xf32>
    %84 = vector.extract_strided_slice %72 {offsets = [0, 64], sizes = [8, 32], strides = [1, 1]} : vector<8x96xf32> to vector<8x32xf32>
    %85 = vector.extract_strided_slice %73 {offsets = [0, 64], sizes = [8, 32], strides = [1, 1]} : vector<8x96xf32> to vector<8x32xf32>
    %86 = arith.addf %85, %3 : vector<8x32xf32>
    %87 = arith.mulf %82, %86 : vector<8x32xf32>
    %88 = arith.addf %84, %87 : vector<8x32xf32>
    %89 = math.tanh %88 : vector<8x32xf32>
    %90 = arith.subf %70, %89 : vector<8x32xf32>
    %91 = arith.mulf %83, %90 : vector<8x32xf32>
    %92 = arith.addf %89, %91 : vector<8x32xf32>
    %93 = tpu.concatenate %26, %48, %70, %92 in 1 : vector<8x32xf32>, vector<8x32xf32>, vector<8x32xf32>, vector<8x32xf32> -> vector<8x128xf32>
    %c0_21 = arith.constant 0 : index
    %c0_22 = arith.constant 0 : index
    %94 = vector.load %arg5[%c0_21, %c0_22] : memref<8x256xf32, #tpu.memory_space<vmem>>, vector<8x128xf32>
    tpu.vector_store %arg5[%c0_21, %c0_22], %93 {strides = array<i32>} : memref<8x256xf32, #tpu.memory_space<vmem>>, vector<8x128xf32>,
    %c4 = arith.constant 4 : index
    %c0_23 = arith.constant 0 : index
    %c0_24 = arith.constant 0 : index
    %95 = vector.load %arg1[%c4, %c0_23, %c0_24] : memref<8x8x96xf32, #tpu.memory_space<vmem>>, vector<1x8x96xf32>
    %96 = vector.shape_cast %95 : vector<1x8x96xf32> to vector<8x96xf32>
    %cst_25 = arith.constant dense<0.000000e+00> : vector<8x96xf32>
    %97 = tpu.matmul %92, %0, %cst_25 {dimension_numbers = #tpu.dot_dimension_numbers<[1], [0], [0], [1], [0, 0, 1, 1], [], []>, precision = #tpu.contract_precision<fp32>} : vector<8x32xf32>, vector<32x96xf32>, vector<8x96xf32> -> vector<8x96xf32>
    %98 = vector.extract_strided_slice %96 {offsets = [0, 0], sizes = [8, 64], strides = [1, 1]} : vector<8x96xf32> to vector<8x64xf32>
    %99 = vector.extract_strided_slice %97 {offsets = [0, 0], sizes = [8, 64], strides = [1, 1]} : vector<8x96xf32> to vector<8x64xf32>
    %100 = arith.addf %98, %99 : vector<8x64xf32>
    %101 = arith.negf %100 : vector<8x64xf32>
    %102 = math.exp %101 : vector<8x64xf32>
    %cst_26 = arith.constant 1.000000e+00 : f32
    %103 = vector.broadcast %cst_26 : f32 to vector<8x64xf32>
    %104 = arith.addf %103, %102 : vector<8x64xf32>
    %105 = arith.divf %103, %104 : vector<8x64xf32>
    %106 = vector.extract_strided_slice %105 {offsets = [0, 0], sizes = [8, 32], strides = [1, 1]} : vector<8x64xf32> to vector<8x32xf32>
    %107 = vector.extract_strided_slice %105 {offsets = [0, 32], sizes = [8, 32], strides = [1, 1]} : vector<8x64xf32> to vector<8x32xf32>
    %108 = vector.extract_strided_slice %96 {offsets = [0, 64], sizes = [8, 32], strides = [1, 1]} : vector<8x96xf32> to vector<8x32xf32>
    %109 = vector.extract_strided_slice %97 {offsets = [0, 64], sizes = [8, 32], strides = [1, 1]} : vector<8x96xf32> to vector<8x32xf32>
    %110 = arith.addf %109, %3 : vector<8x32xf32>
    %111 = arith.mulf %106, %110 : vector<8x32xf32>
    %112 = arith.addf %108, %111 : vector<8x32xf32>
    %113 = math.tanh %112 : vector<8x32xf32>
    %114 = arith.subf %92, %113 : vector<8x32xf32>
    %115 = arith.mulf %107, %114 : vector<8x32xf32>
    %116 = arith.addf %113, %115 : vector<8x32xf32>
    %c5 = arith.constant 5 : index
    %c0_27 = arith.constant 0 : index
    %c0_28 = arith.constant 0 : index
    %117 = vector.load %arg1[%c5, %c0_27, %c0_28] : memref<8x8x96xf32, #tpu.memory_space<vmem>>, vector<1x8x96xf32>
    %118 = vector.shape_cast %117 : vector<1x8x96xf32> to vector<8x96xf32>
    %cst_29 = arith.constant dense<0.000000e+00> : vector<8x96xf32>
    %119 = tpu.matmul %116, %0, %cst_29 {dimension_numbers = #tpu.dot_dimension_numbers<[1], [0], [0], [1], [0, 0, 1, 1], [], []>, precision = #tpu.contract_precision<fp32>} : vector<8x32xf32>, vector<32x96xf32>, vector<8x96xf32> -> vector<8x96xf32>
    %120 = vector.extract_strided_slice %118 {offsets = [0, 0], sizes = [8, 64], strides = [1, 1]} : vector<8x96xf32> to vector<8x64xf32>
    %121 = vector.extract_strided_slice %119 {offsets = [0, 0], sizes = [8, 64], strides = [1, 1]} : vector<8x96xf32> to vector<8x64xf32>
    %122 = arith.addf %120, %121 : vector<8x64xf32>
    %123 = arith.negf %122 : vector<8x64xf32>
    %124 = math.exp %123 : vector<8x64xf32>
    %cst_30 = arith.constant 1.000000e+00 : f32
    %125 = vector.broadcast %cst_30 : f32 to vector<8x64xf32>
    %126 = arith.addf %125, %124 : vector<8x64xf32>
    %127 = arith.divf %125, %126 : vector<8x64xf32>
    %128 = vector.extract_strided_slice %127 {offsets = [0, 0], sizes = [8, 32], strides = [1, 1]} : vector<8x64xf32> to vector<8x32xf32>
    %129 = vector.extract_strided_slice %127 {offsets = [0, 32], sizes = [8, 32], strides = [1, 1]} : vector<8x64xf32> to vector<8x32xf32>
    %130 = vector.extract_strided_slice %118 {offsets = [0, 64], sizes = [8, 32], strides = [1, 1]} : vector<8x96xf32> to vector<8x32xf32>
    %131 = vector.extract_strided_slice %119 {offsets = [0, 64], sizes = [8, 32], strides = [1, 1]} : vector<8x96xf32> to vector<8x32xf32>
    %132 = arith.addf %131, %3 : vector<8x32xf32>
    %133 = arith.mulf %128, %132 : vector<8x32xf32>
    %134 = arith.addf %130, %133 : vector<8x32xf32>
    %135 = math.tanh %134 : vector<8x32xf32>
    %136 = arith.subf %116, %135 : vector<8x32xf32>
    %137 = arith.mulf %129, %136 : vector<8x32xf32>
    %138 = arith.addf %135, %137 : vector<8x32xf32>
    %c6 = arith.constant 6 : index
    %c0_31 = arith.constant 0 : index
    %c0_32 = arith.constant 0 : index
    %139 = vector.load %arg1[%c6, %c0_31, %c0_32] : memref<8x8x96xf32, #tpu.memory_space<vmem>>, vector<1x8x96xf32>
    %140 = vector.shape_cast %139 : vector<1x8x96xf32> to vector<8x96xf32>
    %cst_33 = arith.constant dense<0.000000e+00> : vector<8x96xf32>
    %141 = tpu.matmul %138, %0, %cst_33 {dimension_numbers = #tpu.dot_dimension_numbers<[1], [0], [0], [1], [0, 0, 1, 1], [], []>, precision = #tpu.contract_precision<fp32>} : vector<8x32xf32>, vector<32x96xf32>, vector<8x96xf32> -> vector<8x96xf32>
    %142 = vector.extract_strided_slice %140 {offsets = [0, 0], sizes = [8, 64], strides = [1, 1]} : vector<8x96xf32> to vector<8x64xf32>
    %143 = vector.extract_strided_slice %141 {offsets = [0, 0], sizes = [8, 64], strides = [1, 1]} : vector<8x96xf32> to vector<8x64xf32>
    %144 = arith.addf %142, %143 : vector<8x64xf32>
    %145 = arith.negf %144 : vector<8x64xf32>
    %146 = math.exp %145 : vector<8x64xf32>
    %cst_34 = arith.constant 1.000000e+00 : f32
    %147 = vector.broadcast %cst_34 : f32 to vector<8x64xf32>
    %148 = arith.addf %147, %146 : vector<8x64xf32>
    %149 = arith.divf %147, %148 : vector<8x64xf32>
    %150 = vector.extract_strided_slice %149 {offsets = [0, 0], sizes = [8, 32], strides = [1, 1]} : vector<8x64xf32> to vector<8x32xf32>
    %151 = vector.extract_strided_slice %149 {offsets = [0, 32], sizes = [8, 32], strides = [1, 1]} : vector<8x64xf32> to vector<8x32xf32>
    %152 = vector.extract_strided_slice %140 {offsets = [0, 64], sizes = [8, 32], strides = [1, 1]} : vector<8x96xf32> to vector<8x32xf32>
    %153 = vector.extract_strided_slice %141 {offsets = [0, 64], sizes = [8, 32], strides = [1, 1]} : vector<8x96xf32> to vector<8x32xf32>
    %154 = arith.addf %153, %3 : vector<8x32xf32>
    %155 = arith.mulf %150, %154 : vector<8x32xf32>
    %156 = arith.addf %152, %155 : vector<8x32xf32>
    %157 = math.tanh %156 : vector<8x32xf32>
    %158 = arith.subf %138, %157 : vector<8x32xf32>
    %159 = arith.mulf %151, %158 : vector<8x32xf32>
    %160 = arith.addf %157, %159 : vector<8x32xf32>
    %c7 = arith.constant 7 : index
    %c0_35 = arith.constant 0 : index
    %c0_36 = arith.constant 0 : index
    %161 = vector.load %arg1[%c7, %c0_35, %c0_36] : memref<8x8x96xf32, #tpu.memory_space<vmem>>, vector<1x8x96xf32>
    %162 = vector.shape_cast %161 : vector<1x8x96xf32> to vector<8x96xf32>
    %cst_37 = arith.constant dense<0.000000e+00> : vector<8x96xf32>
    %163 = tpu.matmul %160, %0, %cst_37 {dimension_numbers = #tpu.dot_dimension_numbers<[1], [0], [0], [1], [0, 0, 1, 1], [], []>, precision = #tpu.contract_precision<fp32>} : vector<8x32xf32>, vector<32x96xf32>, vector<8x96xf32> -> vector<8x96xf32>
    %164 = vector.extract_strided_slice %162 {offsets = [0, 0], sizes = [8, 64], strides = [1, 1]} : vector<8x96xf32> to vector<8x64xf32>
    %165 = vector.extract_strided_slice %163 {offsets = [0, 0], sizes = [8, 64], strides = [1, 1]} : vector<8x96xf32> to vector<8x64xf32>
    %166 = arith.addf %164, %165 : vector<8x64xf32>
    %167 = arith.negf %166 : vector<8x64xf32>
    %168 = math.exp %167 : vector<8x64xf32>
    %cst_38 = arith.constant 1.000000e+00 : f32
    %169 = vector.broadcast %cst_38 : f32 to vector<8x64xf32>
    %170 = arith.addf %169, %168 : vector<8x64xf32>
    %171 = arith.divf %169, %170 : vector<8x64xf32>
    %172 = vector.extract_strided_slice %171 {offsets = [0, 0], sizes = [8, 32], strides = [1, 1]} : vector<8x64xf32> to vector<8x32xf32>
    %173 = vector.extract_strided_slice %171 {offsets = [0, 32], sizes = [8, 32], strides = [1, 1]} : vector<8x64xf32> to vector<8x32xf32>
    %174 = vector.extract_strided_slice %162 {offsets = [0, 64], sizes = [8, 32], strides = [1, 1]} : vector<8x96xf32> to vector<8x32xf32>
    %175 = vector.extract_strided_slice %163 {offsets = [0, 64], sizes = [8, 32], strides = [1, 1]} : vector<8x96xf32> to vector<8x32xf32>
    %176 = arith.addf %175, %3 : vector<8x32xf32>
    %177 = arith.mulf %172, %176 : vector<8x32xf32>
    %178 = arith.addf %174, %177 : vector<8x32xf32>
    %179 = math.tanh %178 : vector<8x32xf32>
    %180 = arith.subf %160, %179 : vector<8x32xf32>
    %181 = arith.mulf %173, %180 : vector<8x32xf32>
    %182 = arith.addf %179, %181 : vector<8x32xf32>
    %183 = tpu.concatenate %116, %138, %160, %182 in 1 : vector<8x32xf32>, vector<8x32xf32>, vector<8x32xf32>, vector<8x32xf32> -> vector<8x128xf32>
    %c0_39 = arith.constant 0 : index
    %c128 = arith.constant 128 : index
    %184 = vector.load %arg5[%c0_39, %c128] : memref<8x256xf32, #tpu.memory_space<vmem>>, vector<8x128xf32>
    tpu.vector_store %arg5[%c0_39, %c128], %183 {strides = array<i32>} : memref<8x256xf32, #tpu.memory_space<vmem>>, vector<8x128xf32>,
    %c0_40 = arith.constant 0 : index
    %c0_41 = arith.constant 0 : index
    %185 = vector.load %arg6[%c0_40, %c0_41] : memref<8x32xf32, #tpu.memory_space<vmem>>, vector<8x32xf32>
    tpu.vector_store %arg6[%c0_40, %c0_41], %182 {strides = array<i32>} : memref<8x32xf32, #tpu.memory_space<vmem>>, vector<8x32xf32>,
    return
  }
  func.func @transform_0(%arg0: i32) -> (i32, i32, i32) {
    %c0_i32 = arith.constant 0 : i32
    %c0_i32_0 = arith.constant 0 : i32
    %c0_i32_1 = arith.constant 0 : i32
    return %c0_i32, %arg0, %c0_i32_0 : i32, i32, i32
  }
  func.func @transform_1(%arg0: i32) -> (i32, i32) {
    %c0_i32 = arith.constant 0 : i32
    %c0_i32_0 = arith.constant 0 : i32
    return %arg0, %c0_i32 : i32, i32
  }
  func.func @transform_2(%arg0: i32) -> (i32, i32) {
    %c0_i32 = arith.constant 0 : i32
    %c0_i32_0 = arith.constant 0 : i32
    %c0_i32_1 = arith.constant 0 : i32
    return %c0_i32, %c0_i32_0 : i32, i32
  }
  func.func @transform_3(%arg0: i32) -> (i32, i32) {
    %c0_i32 = arith.constant 0 : i32
    %c0_i32_0 = arith.constant 0 : i32
    %c0_i32_1 = arith.constant 0 : i32
    return %c0_i32, %c0_i32_0 : i32, i32
  }
  func.func @transform_4(%arg0: i32) -> (i32, i32) {
    %c0_i32 = arith.constant 0 : i32
    %c0_i32_0 = arith.constant 0 : i32
    return %arg0, %c0_i32 : i32, i32
  }
  func.func @transform_5(%arg0: i32) -> (i32, i32) {
    %c0_i32 = arith.constant 0 : i32
    %c0_i32_0 = arith.constant 0 : i32
    return %arg0, %c0_i32 : i32, i32
  }
}

</mosaic_0001>

<llo_original>
// kernel: gru_pallas.1
$region0: #{gru_pallas.1}
  #allocation0 [shape = 'u32[]', space=smem, size = 0x4, offset = 0x4, fixed_abs, tag = 'smem constant byte address 0x4 - core index']
  #allocation1 [shape = 'u32[144,128]{1,0:T(1,128)}', space=vmem, size = 0x12000, scoped, tag = 'internal scratch']
  %s0 = inlined_call_operand.vmem [shape: f32[8,8,96], index: 0, kind: input, shape index: {}]
  %s1 = inlined_call_operand.vmem [shape: f32[8,32], index: 1, kind: input, shape index: {}]
  %s2 = inlined_call_operand.vmem [shape: f32[32,96], index: 2, kind: input, shape index: {}]
  %s3 = inlined_call_operand.vmem [shape: f32[1,32], index: 3, kind: input, shape index: {}]
  %s4 = inlined_call_operand.vmem [shape: f32[8,256], index: 4, kind: output, shape index: {0}]
  %s5 = inlined_call_operand.vmem [shape: f32[8,32], index: 5, kind: output, shape index: {1}]
  %6 = xla_tuple %s4, %s5
  %s7 = sld [smem:[#allocation0]]
  $region34: #{gru_pallas.1} parent=0
    _
  %s9 = ssub.s32 1, %s7
  %s10 = scalar_select 0, %s9, %s7
  // Predicated region
  $region2: #{gru_pallas.1} parent=0 // pred_check
    _
  $region3: #{gru_pallas.1} parent=0 // pred_check_branch
    %12 = sbr.rel (0) target = $region5
  $region4: #{gru_pallas.1} parent=0 // pred_region
    _
  $region5: #{gru_pallas.1} parent=0 // pred_fallthru
    _
  // Predicated region
  $region6: #{gru_pallas.1} parent=0 // pred_check
    _
  $region7: #{gru_pallas.1} parent=0 // pred_check_branch
    %14 = sbr.rel (0) target = $region9
  $region8: #{gru_pallas.1} parent=0 // pred_region
    _
  $region9: #{gru_pallas.1} parent=0 // pred_fallthru
    _
  // Predicated region
  $region10: #{gru_pallas.1} parent=0 // pred_check
    _
  $region11: #{gru_pallas.1} parent=0 // pred_check_branch
    %16 = sbr.rel (0) target = $region13
  $region12: #{gru_pallas.1} parent=0 // pred_region
    _
  $region13: #{gru_pallas.1} parent=0 // pred_fallthru
    _
  // Predicated region
  $region14: #{gru_pallas.1} parent=0 // pred_check
    _
  $region15: #{gru_pallas.1} parent=0 // pred_check_branch
    %18 = sbr.rel (0) target = $region17
  $region16: #{gru_pallas.1} parent=0 // pred_region
    _
  $region17: #{gru_pallas.1} parent=0 // pred_fallthru
    _
  %v19 = vld [vmem:[%s2] sm:$0xff]
  %v20 = vld [vmem:[%s2 + $0x8] sm:$0xff]
  %v21 = vld [vmem:[%s2 + $0x10] sm:$0xff]
  %v22 = vld [vmem:[%s2 + $0x18] sm:$0xff]
  %v23 = vld [vmem:[%s3] sm:$0x1]
  %v25 = vlaneseq
  %v26 = vshrl.u32 %v25, 7
  %v27 = vsub.s32 0, %v26
  %v28 = vrot.slane %v23, %v27
  %v29 = vld [vmem:[%s1] sm:$0xff]
  %v30 = vld [vmem:[%s0] sm:$0xff]
  %vm31 = vcmask 261120
  %v33 = vsel %vm31, %v29, 0
  %35 = vmatprep.subr.mxu0 0.0
  %v36 = vand.u32 %v19, 4294901760
  %37 = vmatpush1.msra.mxu0 %v36
  %38 = vmatprep.subr.mxu0 0.0
  %v39 = vand.u32 %v20, 4294901760
  %40 = vmatpush1.msra.mxu0 %v39
  %41 = vmatprep.subr.mxu0 0.0
  %v42 = vand.u32 %v21, 4294901760
  %43 = vmatpush1.msra.mxu0 %v42
  %44 = vmatprep.subr.mxu0 0.0
  %v45 = vand.u32 %v22, 4294901760
  %46 = vmatpush1.msra.mxu0 %v45
  %47 = vmatprep.subr.mxu0 0.0
  %48 = vmatpush1.msra.mxu0 0.0
  %49 = vmatprep.subr.mxu0 0.0
  %50 = vmatpush1.msra.mxu0 0.0
  %51 = vmatprep.subr.mxu0 0.0
  %52 = vmatpush1.msra.mxu0 0.0
  %53 = vmatprep.subr.mxu0 0.0
  %54 = vmatpush1.msra.mxu0 0.0
  %55 = vmatprep.subr.mxu0 0.0
  %56 = vmatpush1.msra.mxu0 0.0
  %57 = vmatprep.subr.mxu0 0.0
  %58 = vmatpush1.msra.mxu0 0.0
  %59 = vmatprep.subr.mxu0 0.0
  %60 = vmatpush1.msra.mxu0 0.0
  %61 = vmatprep.subr.mxu0 0.0
  %62 = vmatpush1.msra.mxu0 0.0
  %63 = vmatprep.subr.mxu0 0.0
  %64 = vmatpush1.msra.mxu0 0.0
  %65 = vmatprep.subr.mxu0 0.0
  %66 = vmatpush1.msra.mxu0 0.0
  %67 = vmatprep.subr.mxu0 0.0
  %68 = vmatpush1.msra.mxu0 0.0
  %69 = vmatprep.subr.mxu0 0.0
  %70 = vmatpush1.msra.mxu0 0.0
  %71 = vmatprep.subr.mxu0 0.0
  %72 = vmatpush1.msra.mxu0 0.0
  %73 = vmatprep.subr.mxu0 0.0
  %74 = vmatpush1.msra.mxu0 0.0
  %75 = vmatprep.subr.mxu0 0.0
  %76 = vmatpush1.msra.mxu0 0.0
  %77 = vmatprep.subr.mxu0 0.0
  %78 = vmatpush1.msra.mxu0 0.0
  %79 = vmatprep.subr.mxu0 0.0
  %80 = vmatpush1.msra.mxu0 0.0
  %81 = vmatprep.subr.mxu0 0.0
  %82 = vmatpush1.msra.mxu0 0.0
  %83 = vmatprep.subr.mxu0 0.0
  %84 = vmatpush1.msra.mxu0 0.0
  %85 = vmatprep.subr.mxu0 0.0
  %86 = vmatpush1.msra.mxu0 0.0
  %87 = vmatprep.subr.mxu0 0.0
  %88 = vmatpush1.msra.mxu0 0.0
  %89 = vmatprep.subr.mxu0 0.0
  %90 = vmatpush1.msra.mxu0 0.0
  %91 = vmatprep.subr.mxu0 0.0
  %92 = vmatpush1.msra.mxu0 0.0
  %93 = vmatprep.subr.mxu0 0.0
  %94 = vmatpush1.msra.mxu0 0.0
  %95 = vmatprep.subr.mxu0 0.0
  %96 = vmatpush1.msra.mxu0 0.0
  %97 = vmatprep.subr.mxu0 0.0
  %98 = vmatpush1.msra.mxu0 0.0
  %99 = vmatprep.subr.mxu0 0.0
  %100 = vmatpush1.msra.mxu0 0.0
  %101 = vmatprep.subr.mxu0 0.0
  %102 = vmatpush1.msra.mxu0 0.0
  %103 = vmatprep.mubr.f32.mxu0 0.0
  %v104 = vand.u32 %v33, 4294901760
  %v105 = vsub.f32 %v33, %v104
  %v106 = vand.u32 %v105, 4294901760
  %v107 = vsub.f32 %v105, %v106
  %v108 = vand.u32 %v107, 4294901760
  %109 = vmatmul.mubr.f32.gmra.mrb[0].mxu0 %v108
  %v110 = vpop.f32.mrb[0].mxu0
  %v111 = vadd.f32 0.0, %v110
  %v112 = vpop.f32.mrb[0].mxu0
  %113 = vdwg.mxu0
  %114 = vmatprep.subr.mxu0 0.0
  %v115 = vand.u32 %v19, 4294901760
  %v116 = vsub.f32 %v19, %v115
  %v117 = vand.u32 %v116, 4294901760
  %v118 = vsub.f32 %v116, %v117
  %v119 = vand.u32 %v118, 4294901760
  %120 = vmatpush1.msra.mxu0 %v119
  %121 = vmatprep.subr.mxu0 0.0
  %v122 = vand.u32 %v20, 4294901760
  %v123 = vsub.f32 %v20, %v122
  %v124 = vand.u32 %v123, 4294901760
  %v125 = vsub.f32 %v123, %v124
  %v126 = vand.u32 %v125, 4294901760
  %127 = vmatpush1.msra.mxu0 %v126
  %128 = vmatprep.subr.mxu0 0.0
  %v129 = vand.u32 %v21, 4294901760
  %v130 = vsub.f32 %v21, %v129
  %v131 = vand.u32 %v130, 4294901760
  %v132 = vsub.f32 %v130, %v131
  %v133 = vand.u32 %v132, 4294901760
  %134 = vmatpush1.msra.mxu0 %v133
  %135 = vmatprep.subr.mxu0 0.0
  %v136 = vand.u32 %v22, 4294901760
  %v137 = vsub.f32 %v22, %v136
  %v138 = vand.u32 %v137, 4294901760
  %v139 = vsub.f32 %v137, %v138
  %v140 = vand.u32 %v139, 4294901760
  %141 = vmatpush1.msra.mxu0 %v140
  %142 = vmatprep.subr.mxu0 0.0
  %143 = vmatpush1.msra.mxu0 0.0
  %144 = vmatprep.subr.mxu0 0.0
  %145 = vmatpush1.msra.mxu0 0.0
  %146 = vmatprep.subr.mxu0 0.0
  %147 = vmatpush1.msra.mxu0 0.0
  %148 = vmatprep.subr.mxu0 0.0
  %149 = vmatpush1.msra.mxu0 0.0
  %150 = vmatprep.subr.mxu0 0.0
  %151 = vmatpush1.msra.mxu0 0.0
  %152 = vmatprep.subr.mxu0 0.0
  %153 = vmatpush1.msra.mxu0 0.0
  %154 = vmatprep.subr.mxu0 0.0
  %155 = vmatpush1.msra.mxu0 0.0
  %156 = vmatprep.subr.mxu0 0.0
  %157 = vmatpush1.msra.mxu0 0.0
  %158 = vmatprep.subr.mxu0 0.0
  %159 = vmatpush1.msra.mxu0 0.0
  %160 = vmatprep.subr.mxu0 0.0
  %161 = vmatpush1.msra.mxu0 0.0
  %162 = vmatprep.subr.mxu0 0.0
  %163 = vmatpush1.msra.mxu0 0.0
  %164 = vmatprep.subr.mxu0 0.0
  %165 = vmatpush1.msra.mxu0 0.0
  %166 = vmatprep.subr.mxu0 0.0
  %167 = vmatpush1.msra.mxu0 0.0
  %168 = vmatprep.subr.mxu0 0.0
  %169 = vmatpush1.msra.mxu0 0.0
  %170 = vmatprep.subr.mxu0 0.0
  %171 = vmatpush1.msra.mxu0 0.0
  %172 = vmatprep.subr.mxu0 0.0
  %173 = vmatpush1.msra.mxu0 0.0
  %174 = vmatprep.subr.mxu0 0.0
  %175 = vmatpush1.msra.mxu0 0.0
  %176 = vmatprep.subr.mxu0 0.0
  %177 = vmatpush1.msra.mxu0 0.0
  %178 = vmatprep.subr.mxu0 0.0
  %179 = vmatpush1.msra.mxu0 0.0
  %180 = vmatprep.subr.mxu0 0.0
  %181 = vmatpush1.msra.mxu0 0.0
  %182 = vmatprep.subr.mxu0 0.0
  %183 = vmatpush1.msra.mxu0 0.0
  %184 = vmatprep.subr.mxu0 0.0
  %185 = vmatpush1.msra.mxu0 0.0
  %186 = vmatprep.subr.mxu0 0.0
  %187 = vmatpush1.msra.mxu0 0.0
  %188 = vmatprep.subr.mxu0 0.0
  %189 = vmatpush1.msra.mxu0 0.0
  %190 = vmatprep.subr.mxu0 0.0
  %191 = vmatpush1.msra.mxu0 0.0
  %192 = vmatprep.subr.mxu0 0.0
  %193 = vmatpush1.msra.mxu0 0.0
  %194 = vmatprep.subr.mxu0 0.0
  %195 = vmatpush1.msra.mxu0 0.0
  %196 = vmatprep.subr.mxu0 0.0
  %197 = vmatpush1.msra.mxu0 0.0
  %198 = vmatprep.mubr.f32.mxu0 0.0
  %v199 = vand.u32 %v33, 4294901760
  %200 = vmatmul.mubr.f32.gmra.mrb[0].mxu0 %v199
  %v201 = vpop.f32.mrb[0].mxu0
  %v202 = vadd.f32 %v111, %v201
  %v203 = vpop.f32.mrb[0].mxu0
  %204 = vdwg.mxu0
  %205 = vmatprep.subr.mxu0 0.0
  %v206 = vand.u32 %v19, 4294901760
  %v207 = vsub.f32 %v19, %v206
  %208 = vmatpush1.msra.mxu0 %v207
  %209 = vmatprep.subr.mxu0 0.0
  %v210 = vand.u32 %v20, 4294901760
  %v211 = vsub.f32 %v20, %v210
  %212 = vmatpush1.msra.mxu0 %v211
  %213 = vmatprep.subr.mxu0 0.0
  %v214 = vand.u32 %v21, 4294901760
  %v215 = vsub.f32 %v21, %v214
  %216 = vmatpush1.msra.mxu0 %v215
  %217 = vmatprep.subr.mxu0 0.0
  %v218 = vand.u32 %v22, 4294901760
  %v219 = vsub.f32 %v22, %v218
  %220 = vmatpush1.msra.mxu0 %v219
  %221 = vmatprep.subr.mxu0 0.0
  %222 = vmatpush1.msra.mxu0 0.0
  %223 = vmatprep.subr.mxu0 0.0
  %224 = vmatpush1.msra.mxu0 0.0
  %225 = vmatprep.subr.mxu0 0.0
  %226 = vmatpush1.msra.mxu0 0.0
  %227 = vmatprep.subr.mxu0 0.0
  %228 = vmatpush1.msra.mxu0 0.0
  %229 = vmatprep.subr.mxu0 0.0
  %230 = vmatpush1.msra.mxu0 0.0
  %231 = vmatprep.subr.mxu0 0.0
  %232 = vmatpush1.msra.mxu0 0.0
  %233 = vmatprep.subr.mxu0 0.0
  %234 = vmatpush1.msra.mxu0 0.0
  %235 = vmatprep.subr.mxu0 0.0
  %236 = vmatpush1.msra.mxu0 0.0
  %237 = vmatprep.subr.mxu0 0.0
  %238 = vmatpush1.msra.mxu0 0.0
  %239 = vmatprep.subr.mxu0 0.0
  %240 = vmatpush1.msra.mxu0 0.0
  %241 = vmatprep.subr.mxu0 0.0
  %242 = vmatpush1.msra.mxu0 0.0
  %243 = vmatprep.subr.mxu0 0.0
  %244 = vmatpush1.msra.mxu0 0.0
  %245 = vmatprep.subr.mxu0 0.0
  %246 = vmatpush1.msra.mxu0 0.0
  %247 = vmatprep.subr.mxu0 0.0
  %248 = vmatpush1.msra.mxu0 0.0
  %249 = vmatprep.subr.mxu0 0.0
  %250 = vmatpush1.msra.mxu0 0.0
  %251 = vmatprep.subr.mxu0 0.0
  %252 = vmatpush1.msra.mxu0 0.0
  %253 = vmatprep.subr.mxu0 0.0
  %254 = vmatpush1.msra.mxu0 0.0
  %255 = vmatprep.subr.mxu0 0.0
  %256 = vmatpush1.msra.mxu0 0.0
  %257 = vmatprep.subr.mxu0 0.0
  %258 = vmatpush1.msra.mxu0 0.0
  %259 = vmatprep.subr.mxu0 0.0
  %260 = vmatpush1.msra.mxu0 0.0
  %261 = vmatprep.subr.mxu0 0.0
  %262 = vmatpush1.msra.mxu0 0.0
  %263 = vmatprep.subr.mxu0 0.0
  %264 = vmatpush1.msra.mxu0 0.0
  %265 = vmatprep.subr.mxu0 0.0
  %266 = vmatpush1.msra.mxu0 0.0
  %267 = vmatprep.subr.mxu0 0.0
  %268 = vmatpush1.msra.mxu0 0.0
  %269 = vmatprep.subr.mxu0 0.0
  %270 = vmatpush1.msra.mxu0 0.0
  %271 = vmatprep.subr.mxu0 0.0
  %272 = vmatpush1.msra.mxu0 0.0
  %273 = vmatprep.subr.mxu0 0.0
  %274 = vmatpush1.msra.mxu0 0.0
  %275 = vmatprep.subr.mxu0 0.0
  %276 = vmatpush1.msra.mxu0 0.0
  %277 = vmatprep.mubr.f32.mxu0 0.0
  %v278 = vand.u32 %v33, 4294901760
  %v279 = vsub.f32 %v33, %v278
  %280 = vmatmul.mubr.f32.gmra.mrb[0].mxu0 %v279
  %v281 = vpop.f32.mrb[0].mxu0
  %v282 = vadd.f32 %v202, %v281
  %v283 = vpop.f32.mrb[0].mxu0
  %284 = vdwg.mxu0
  %285 = vmatprep.subr.mxu0 0.0
  %v286 = vand.u32 %v19, 4294901760
  %287 = vmatpush1.msra.mxu0 %v286
  %288 = vmatprep.subr.mxu0 0.0
  %v289 = vand.u32 %v20, 4294901760
  %290 = vmatpush1.msra.mxu0 %v289
  %291 = vmatprep.subr.mxu0 0.0
  %v292 = vand.u32 %v21, 4294901760
  %293 = vmatpush1.msra.mxu0 %v292
  %294 = vmatprep.subr.mxu0 0.0
  %v295 = vand.u32 %v22, 4294901760
  %296 = vmatpush1.msra.mxu0 %v295
  %297 = vmatprep.subr.mxu0 0.0
  %298 = vmatpush1.msra.mxu0 0.0
  %299 = vmatprep.subr.mxu0 0.0
  %300 = vmatpush1.msra.mxu0 0.0
  %301 = vmatprep.subr.mxu0 0.0
  %302 = vmatpush1.msra.mxu0 0.0
  %303 = vmatprep.subr.mxu0 0.0
  %304 = vmatpush1.msra.mxu0 0.0
  %305 = vmatprep.subr.mxu0 0.0
  %306 = vmatpush1.msra.mxu0 0.0
  %307 = vmatprep.subr.mxu0 0.0
  %308 = vmatpush1.msra.mxu0 0.0
  %309 = vmatprep.subr.mxu0 0.0
  %310 = vmatpush1.msra.mxu0 0.0
  %311 = vmatprep.subr.mxu0 0.0
  %312 = vmatpush1.msra.mxu0 0.0
  %313 = vmatprep.subr.mxu0 0.0
  %314 = vmatpush1.msra.mxu0 0.0
  %315 = vmatprep.subr.mxu0 0.0
  %316 = vmatpush1.msra.mxu0 0.0
  %317 = vmatprep.subr.mxu0 0.0
  %318 = vmatpush1.msra.mxu0 0.0
  %319 = vmatprep.subr.mxu0 0.0
  %320 = vmatpush1.msra.mxu0 0.0
  %321 = vmatprep.subr.mxu0 0.0
  %322 = vmatpush1.msra.mxu0 0.0
  %323 = vmatprep.subr.mxu0 0.0
  %324 = vmatpush1.msra.mxu0 0.0
  %325 = vmatprep.subr.mxu0 0.0
  %326 = vmatpush1.msra.mxu0 0.0
  %327 = vmatprep.subr.mxu0 0.0
  %328 = vmatpush1.msra.mxu0 0.0
  %329 = vmatprep.subr.mxu0 0.0
  %330 = vmatpush1.msra.mxu0 0.0
  %331 = vmatprep.subr.mxu0 0.0
  %332 = vmatpush1.msra.mxu0 0.0
  %333 = vmatprep.subr.mxu0 0.0
  %334 = vmatpush1.msra.mxu0 0.0
  %335 = vmatprep.subr.mxu0 0.0
  %336 = vmatpush1.msra.mxu0 0.0
  %337 = vmatprep.subr.mxu0 0.0
  %338 = vmatpush1.msra.mxu0 0.0
  %339 = vmatprep.subr.mxu0 0.0
  %340 = vmatpush1.msra.mxu0 0.0
  %341 = vmatprep.subr.mxu0 0.0
  %342 = vmatpush1.msra.mxu0 0.0
  %343 = vmatprep.subr.mxu0 0.0
  %344 = vmatpush1.msra.mxu0 0.0
  %345 = vmatprep.subr.mxu0 0.0
  %346 = vmatpush1.msra.mxu0 0.0
  %347 = vmatprep.subr.mxu0 0.0
  %348 = vmatpush1.msra.mxu0 0.0
  %349 = vmatprep.subr.mxu0 0.0
  %350 = vmatpush1.msra.mxu0 0.0
  %351 = vmatprep.subr.mxu0 0.0
  %352 = vmatpush1.msra.mxu0 0.0
  %353 = vmatprep.mubr.f32.mxu0 0.0
  %v354 = vand.u32 %v33, 4294901760
  %v355 = vsub.f32 %v33, %v354
  %v356 = vand.u32 %v355, 4294901760
  %357 = vmatmul.mubr.f32.gmra.mrb[0].mxu0 %v356
  %v358 = vpop.f32.mrb[0].mxu0
  %v359 = vadd.f32 %v282, %v358
  %v360 = vpop.f32.mrb[0].mxu0
  %361 = vdwg.mxu0
  %362 = vmatprep.subr.mxu0 0.0
  %v363 = vand.u32 %v19, 4294901760
  %v364 = vsub.f32 %v19, %v363
  %v365 = vand.u32 %v364, 4294901760
  %366 = vmatpush1.msra.mxu0 %v365
  %367 = vmatprep.subr.mxu0 0.0
  %v368 = vand.u32 %v20, 4294901760
  %v369 = vsub.f32 %v20, %v368
  %v370 = vand.u32 %v369, 4294901760
  %371 = vmatpush1.msra.mxu0 %v370
  %372 = vmatprep.subr.mxu0 0.0
  %v373 = vand.u32 %v21, 4294901760
  %v374 = vsub.f32 %v21, %v373
  %v375 = vand.u32 %v374, 4294901760
  %376 = vmatpush1.msra.mxu0 %v375
  %377 = vmatprep.subr.mxu0 0.0
  %v378 = vand.u32 %v22, 4294901760
  %v379 = vsub.f32 %v22, %v378
  %v380 = vand.u32 %v379, 4294901760
  %381 = vmatpush1.msra.mxu0 %v380
  %382 = vmatprep.subr.mxu0 0.0
  %383 = vmatpush1.msra.mxu0 0.0
  %384 = vmatprep.subr.mxu0 0.0
  %385 = vmatpush1.msra.mxu0 0.0
  %386 = vmatprep.subr.mxu0 0.0
  %387 = vmatpush1.msra.mxu0 0.0
  %388 = vmatprep.subr.mxu0 0.0
  %389 = vmatpush1.msra.mxu0 0.0
  %390 = vmatprep.subr.mxu0 0.0
  %391 = vmatpush1.msra.mxu0 0.0
  %392 = vmatprep.subr.mxu0 0.0
  %393 = vmatpush1.msra.mxu0 0.0
  %394 = vmatprep.subr.mxu0 0.0
  %395 = vmatpush1.msra.mxu0 0.0
  %396 = vmatprep.subr.mxu0 0.0
  %397 = vmatpush1.msra.mxu0 0.0
  %398 = vmatprep.subr.mxu0 0.0
  %399 = vmatpush1.msra.mxu0 0.0
  %400 = vmatprep.subr.mxu0 0.0
  %401 = vmatpush1.msra.mxu0 0.0
  %402 = vmatprep.subr.mxu0 0.0
  %403 = vmatpush1.msra.mxu0 0.0
  %404 = vmatprep.subr.mxu0 0.0
  %405 = vmatpush1.msra.mxu0 0.0
  %406 = vmatprep.subr.mxu0 0.0
  %407 = vmatpush1.msra.mxu0 0.0
  %408 = vmatprep.subr.mxu0 0.0
  %409 = vmatpush1.msra.mxu0 0.0
  %410 = vmatprep.subr.mxu0 0.0
  %411 = vmatpush1.msra.mxu0 0.0
  %412 = vmatprep.subr.mxu0 0.0
  %413 = vmatpush1.msra.mxu0 0.0
  %414 = vmatprep.subr.mxu0 0.0
  %415 = vmatpush1.msra.mxu0 0.0
  %416 = vmatprep.subr.mxu0 0.0
  %417 = vmatpush1.msra.mxu0 0.0
  %418 = vmatprep.subr.mxu0 0.0
  %419 = vmatpush1.msra.mxu0 0.0
  %420 = vmatprep.subr.mxu0 0.0
  %421 = vmatpush1.msra.mxu0 0.0
  %422 = vmatprep.subr.mxu0 0.0
  %423 = vmatpush1.msra.mxu0 0.0
  %424 = vmatprep.subr.mxu0 0.0
  %425 = vmatpush1.msra.mxu0 0.0
  %426 = vmatprep.subr.mxu0 0.0
  %427 = vmatpush1.msra.mxu0 0.0
  %428 = vmatprep.subr.mxu0 0.0
  %429 = vmatpush1.msra.mxu0 0.0
  %430 = vmatprep.subr.mxu0 0.0
  %431 = vmatpush1.msra.mxu0 0.0
  %432 = vmatprep.subr.mxu0 0.0
  %433 = vmatpush1.msra.mxu0 0.0
  %434 = vmatprep.subr.mxu0 0.0
  %435 = vmatpush1.msra.mxu0 0.0
  %436 = vmatprep.subr.mxu0 0.0
  %437 = vmatpush1.msra.mxu0 0.0
  %438 = vmatprep.mubr.f32.mxu0 0.0
  %v439 = vand.u32 %v33, 4294901760
  %440 = vmatmul.mubr.f32.gmra.mrb[0].mxu0 %v439
  %v441 = vpop.f32.mrb[0].mxu0
  %v442 = vadd.f32 %v359, %v441
  %v443 = vpop.f32.mrb[0].mxu0
  %444 = vdwg.mxu0
  %445 = vmatprep.subr.mxu0 0.0
  %v446 = vand.u32 %v19, 4294901760
  %447 = vmatpush1.msra.mxu0 %v446
  %448 = vmatprep.subr.mxu0 0.0
  %v449 = vand.u32 %v20, 4294901760
  %450 = vmatpush1.msra.mxu0 %v449
  %451 = vmatprep.subr.mxu0 0.0
  %v452 = vand.u32 %v21, 4294901760
  %453 = vmatpush1.msra.mxu0 %v452
  %454 = vmatprep.subr.mxu0 0.0
  %v455 = vand.u32 %v22, 4294901760
  %456 = vmatpush1.msra.mxu0 %v455
  %457 = vmatprep.subr.mxu0 0.0
  %458 = vmatpush1.msra.mxu0 0.0
  %459 = vmatprep.subr.mxu0 0.0
  %460 = vmatpush1.msra.mxu0 0.0
  %461 = vmatprep.subr.mxu0 0.0
  %462 = vmatpush1.msra.mxu0 0.0
  %463 = vmatprep.subr.mxu0 0.0
  %464 = vmatpush1.msra.mxu0 0.0
  %465 = vmatprep.subr.mxu0 0.0
  %466 = vmatpush1.msra.mxu0 0.0
  %467 = vmatprep.subr.mxu0 0.0
  %468 = vmatpush1.msra.mxu0 0.0
  %469 = vmatprep.subr.mxu0 0.0
  %470 = vmatpush1.msra.mxu0 0.0
  %471 = vmatprep.subr.mxu0 0.0
  %472 = vmatpush1.msra.mxu0 0.0
  %473 = vmatprep.subr.mxu0 0.0
  %474 = vmatpush1.msra.mxu0 0.0
  %475 = vmatprep.subr.mxu0 0.0
  %476 = vmatpush1.msra.mxu0 0.0
  %477 = vmatprep.subr.mxu0 0.0
  %478 = vmatpush1.msra.mxu0 0.0
  %479 = vmatprep.subr.mxu0 0.0
  %480 = vmatpush1.msra.mxu0 0.0
  %481 = vmatprep.subr.mxu0 0.0
  %482 = vmatpush1.msra.mxu0 0.0
  %483 = vmatprep.subr.mxu0 0.0
  %484 = vmatpush1.msra.mxu0 0.0
  %485 = vmatprep.subr.mxu0 0.0
  %486 = vmatpush1.msra.mxu0 0.0
  %487 = vmatprep.subr.mxu0 0.0
  %488 = vmatpush1.msra.mxu0 0.0
  %489 = vmatprep.subr.mxu0 0.0
  %490 = vmatpush1.msra.mxu0 0.0
  %491 = vmatprep.subr.mxu0 0.0
  %492 = vmatpush1.msra.mxu0 0.0
  %493 = vmatprep.subr.mxu0 0.0
  %494 = vmatpush1.msra.mxu0 0.0
  %495 = vmatprep.subr.mxu0 0.0
  %496 = vmatpush1.msra.mxu0 0.0
  %497 = vmatprep.subr.mxu0 0.0
  %498 = vmatpush1.msra.mxu0 0.0
  %499 = vmatprep.subr.mxu0 0.0
  %500 = vmatpush1.msra.mxu0 0.0
  %501 = vmatprep.subr.mxu0 0.0
  %502 = vmatpush1.msra.mxu0 0.0
  %503 = vmatprep.subr.mxu0 0.0
  %504 = vmatpush1.msra.mxu0 0.0
  %505 = vmatprep.subr.mxu0 0.0
  %506 = vmatpush1.msra.mxu0 0.0
  %507 = vmatprep.subr.mxu0 0.0
  %508 = vmatpush1.msra.mxu0 0.0
  %509 = vmatprep.subr.mxu0 0.0
  %510 = vmatpush1.msra.mxu0 0.0
  %511 = vmatprep.subr.mxu0 0.0
  %512 = vmatpush1.msra.mxu0 0.0
  %513 = vmatprep.mubr.f32.mxu0 0.0
  %v514 = vand.u32 %v33, 4294901760
  %515 = vmatmul.mubr.f32.gmra.mrb[0].mxu0 %v514
  %v516 = vpop.f32.mrb[0].mxu0
  %v517 = vadd.f32 %v442, %v516
  %v518 = vpop.f32.mrb[0].mxu0
  %519 = vdwg.mxu0
  %v520 = vadd.f32 %v30, %v517
  %v521 = vxor.u32 %v520, 2147483648
  %v522 = vmul.f32 %v521, 1.442695
  %v523 = vpow.pop %v522
  %v524 = vadd.f32 %v523, 1.0
  %v525 = vrcp.pop %v524
  %v526 = vmul.f32 1.0, %v525
  %527 = vrot.lane.b32.xlu0 %v28, 64
  %v528 = vpop.permute.xlu0 %527
  %v530 = vadd.f32 %v517, %v528
  %532 = vrot.lane.b32.xlu0 %v530, 64
  %v533 = vpop.permute.xlu0 %532
  %v535 = vmul.f32 %v526, %v533
  %537 = vrot.lane.b32.xlu0 %v535, 64
  %v538 = vpop.permute.xlu0 %537
  %v540 = vadd.f32 %v30, %v538
  %v541 = vtanh.pop %v540
  %543 = vrot.lane.b32.xlu0 %v541, 64
  %v544 = vpop.permute.xlu0 %543
  %v546 = vsub.f32 %v29, %v544
  %548 = vrot.lane.b32.xlu0 %v546, 32
  %v549 = vpop.permute.xlu0 %548
  %v551 = vmul.f32 %v526, %v549
  %553 = vrot.lane.b32.xlu0 %v551, 32
  %v554 = vpop.permute.xlu0 %553
  %v556 = vadd.f32 %v541, %v554
  %s557 = scalar_lea.vmem %s0, 8
  %v558 = vld [vmem:[%s557] sm:$0xff]
  %560 = vrot.lane.b32.xlu0 %v556, 64
  %v561 = vpop.permute.xlu0 %560
  %v562 = vsel %vm31, %v561, 0
  %564 = vmatprep.subr.mxu0 0.0
  %v565 = vand.u32 %v19, 4294901760
  %566 = vmatpush1.msra.mxu0 %v565
  %567 = vmatprep.subr.mxu0 0.0
  %v568 = vand.u32 %v20, 4294901760
  %569 = vmatpush1.msra.mxu0 %v568
  %570 = vmatprep.subr.mxu0 0.0
  %v571 = vand.u32 %v21, 4294901760
  %572 = vmatpush1.msra.mxu0 %v571
  %573 = vmatprep.subr.mxu0 0.0
  %v574 = vand.u32 %v22, 4294901760
  %575 = vmatpush1.msra.mxu0 %v574
  %576 = vmatprep.subr.mxu0 0.0
  %577 = vmatpush1.msra.mxu0 0.0
  %578 = vmatprep.subr.mxu0 0.0
  %579 = vmatpush1.msra.mxu0 0.0
  %580 = vmatprep.subr.mxu0 0.0
  %581 = vmatpush1.msra.mxu0 0.0
  %582 = vmatprep.subr.mxu0 0.0
  %583 = vmatpush1.msra.mxu0 0.0
  %584 = vmatprep.subr.mxu0 0.0
  %585 = vmatpush1.msra.mxu0 0.0
  %586 = vmatprep.subr.mxu0 0.0
  %587 = vmatpush1.msra.mxu0 0.0
  %588 = vmatprep.subr.mxu0 0.0
  %589 = vmatpush1.msra.mxu0 0.0
  %590 = vmatprep.subr.mxu0 0.0
  %591 = vmatpush1.msra.mxu0 0.0
  %592 = vmatprep.subr.mxu0 0.0
  %593 = vmatpush1.msra.mxu0 0.0
  %594 = vmatprep.subr.mxu0 0.0
  %595 = vmatpush1.msra.mxu0 0.0
  %596 = vmatprep.subr.mxu0 0.0
  %597 = vmatpush1.msra.mxu0 0.0
  %598 = vmatprep.subr.mxu0 0.0
  %599 = vmatpush1.msra.mxu0 0.0
  %600 = vmatprep.subr.mxu0 0.0
  %601 = vmatpush1.msra.mxu0 0.0
  %602 = vmatprep.subr.mxu0 0.0
  %603 = vmatpush1.msra.mxu0 0.0
  %604 = vmatprep.subr.mxu0 0.0
  %605 = vmatpush1.msra.mxu0 0.0
  %606 = vmatprep.subr.mxu0 0.0
  %607 = vmatpush1.msra.mxu0 0.0
  %608 = vmatprep.subr.mxu0 0.0
  %609 = vmatpush1.msra.mxu0 0.0
  %610 = vmatprep.subr.mxu0 0.0
  %611 = vmatpush1.msra.mxu0 0.0
  %612 = vmatprep.subr.mxu0 0.0
  %613 = vmatpush1.msra.mxu0 0.0
  %614 = vmatprep.subr.mxu0 0.0
  %615 = vmatpush1.msra.mxu0 0.0
  %616 = vmatprep.subr.mxu0 0.0
  %617 = vmatpush1.msra.mxu0 0.0
  %618 = vmatprep.subr.mxu0 0.0
  %619 = vmatpush1.msra.mxu0 0.0
  %620 = vmatprep.subr.mxu0 0.0
  %621 = vmatpush1.msra.mxu0 0.0
  %622 = vmatprep.subr.mxu0 0.0
  %623 = vmatpush1.msra.mxu0 0.0
  %624 = vmatprep.subr.mxu0 0.0
  %625 = vmatpush1.msra.mxu0 0.0
  %626 = vmatprep.subr.mxu0 0.0
  %627 = vmatpush1.msra.mxu0 0.0
  %628 = vmatprep.subr.mxu0 0.0
  %629 = vmatpush1.msra.mxu0 0.0
  %630 = vmatprep.subr.mxu0 0.0
  %631 = vmatpush1.msra.mxu0 0.0
  %632 = vmatprep.mubr.f32.mxu0 0.0
  %v633 = vand.u32 %v562, 4294901760
  %v634 = vsub.f32 %v562, %v633
  %v635 = vand.u32 %v634, 4294901760
  %v636 = vsub.f32 %v634, %v635
  %v637 = vand.u32 %v636, 4294901760
  %638 = vmatmul.mubr.f32.gmra.mrb[0].mxu0 %v637
  %v639 = vpop.f32.mrb[0].mxu0
  %v640 = vadd.f32 0.0, %v639
  %v641 = vpop.f32.mrb[0].mxu0
  %642 = vdwg.mxu0
  %643 = vmatprep.subr.mxu0 0.0
  %v644 = vand.u32 %v19, 4294901760
  %v645 = vsub.f32 %v19, %v644
  %v646 = vand.u32 %v645, 4294901760
  %v647 = vsub.f32 %v645, %v646
  %v648 = vand.u32 %v647, 4294901760
  %649 = vmatpush1.msra.mxu0 %v648
  %650 = vmatprep.subr.mxu0 0.0
  %v651 = vand.u32 %v20, 4294901760
  %v652 = vsub.f32 %v20, %v651
  %v653 = vand.u32 %v652, 4294901760
  %v654 = vsub.f32 %v652, %v653
  %v655 = vand.u32 %v654, 4294901760
  %656 = vmatpush1.msra.mxu0 %v655
  %657 = vmatprep.subr.mxu0 0.0
  %v658 = vand.u32 %v21, 4294901760
  %v659 = vsub.f32 %v21, %v658
  %v660 = vand.u32 %v659, 4294901760
  %v661 = vsub.f32 %v659, %v660
  %v662 = vand.u32 %v661, 4294901760
  %663 = vmatpush1.msra.mxu0 %v662
  %664 = vmatprep.subr.mxu0 0.0
  %v665 = vand.u32 %v22, 4294901760
  %v666 = vsub.f32 %v22, %v665
  %v667 = vand.u32 %v666, 4294901760
  %v668 = vsub.f32 %v666, %v667
  %v669 = vand.u32 %v668, 4294901760
  %670 = vmatpush1.msra.mxu0 %v669
  %671 = vmatprep.subr.mxu0 0.0
  %672 = vmatpush1.msra.mxu0 0.0
  %673 = vmatprep.subr.mxu0 0.0
  %674 = vmatpush1.msra.mxu0 0.0
  %675 = vmatprep.subr.mxu0 0.0
  %676 = vmatpush1.msra.mxu0 0.0
  %677 = vmatprep.subr.mxu0 0.0
  %678 = vmatpush1.msra.mxu0 0.0
  %679 = vmatprep.subr.mxu0 0.0
  %680 = vmatpush1.msra.mxu0 0.0
  %681 = vmatprep.subr.mxu0 0.0
  %682 = vmatpush1.msra.mxu0 0.0
  %683 = vmatprep.subr.mxu0 0.0
  %684 = vmatpush1.msra.mxu0 0.0
  %685 = vmatprep.subr.mxu0 0.0
  %686 = vmatpush1.msra.mxu0 0.0
  %687 = vmatprep.subr.mxu0 0.0
  %688 = vmatpush1.msra.mxu0 0.0
  %689 = vmatprep.subr.mxu0 0.0
  %690 = vmatpush1.msra.mxu0 0.0
  %691 = vmatprep.subr.mxu0 0.0
  %692 = vmatpush1.msra.mxu0 0.0
  %693 = vmatprep.subr.mxu0 0.0
  %694 = vmatpush1.msra.mxu0 0.0
  %695 = vmatprep.subr.mxu0 0.0
  %696 = vmatpush1.msra.mxu0 0.0
  %697 = vmatprep.subr.mxu0 0.0
  %698 = vmatpush1.msra.mxu0 0.0
  %699 = vmatprep.subr.mxu0 0.0
  %700 = vmatpush1.msra.mxu0 0.0
  %701 = vmatprep.subr.mxu0 0.0
  %702 = vmatpush1.msra.mxu0 0.0
  %703 = vmatprep.subr.mxu0 0.0
  %704 = vmatpush1.msra.mxu0 0.0
  %705 = vmatprep.subr.mxu0 0.0
  %706 = vmatpush1.msra.mxu0 0.0
  %707 = vmatprep.subr.mxu0 0.0
  %708 = vmatpush1.msra.mxu0 0.0
  %709 = vmatprep.subr.mxu0 0.0
  %710 = vmatpush1.msra.mxu0 0.0
  %711 = vmatprep.subr.mxu0 0.0
  %712 = vmatpush1.msra.mxu0 0.0
  %713 = vmatprep.subr.mxu0 0.0
  %714 = vmatpush1.msra.mxu0 0.0
  %715 = vmatprep.subr.mxu0 0.0
  %716 = vmatpush1.msra.mxu0 0.0
  %717 = vmatprep.subr.mxu0 0.0
  %718 = vmatpush1.msra.mxu0 0.0
  %719 = vmatprep.subr.mxu0 0.0
  %720 = vmatpush1.msra.mxu0 0.0
  %721 = vmatprep.subr.mxu0 0.0
  %722 = vmatpush1.msra.mxu0 0.0
  %723 = vmatprep.subr.mxu0 0.0
  %724 = vmatpush1.msra.mxu0 0.0
  %725 = vmatprep.subr.mxu0 0.0
  %726 = vmatpush1.msra.mxu0 0.0
  %727 = vmatprep.mubr.f32.mxu0 0.0
  %v728 = vand.u32 %v562, 4294901760
  %729 = vmatmul.mubr.f32.gmra.mrb[0].mxu0 %v728
  %v730 = vpop.f32.mrb[0].mxu0
  %v731 = vadd.f32 %v640, %v730
  %v732 = vpop.f32.mrb[0].mxu0
  %733 = vdwg.mxu0
  %734 = vmatprep.subr.mxu0 0.0
  %v735 = vand.u32 %v19, 4294901760
  %v736 = vsub.f32 %v19, %v735
  %737 = vmatpush1.msra.mxu0 %v736
  %738 = vmatprep.subr.mxu0 0.0
  %v739 = vand.u32 %v20, 4294901760
  %v740 = vsub.f32 %v20, %v739
  %741 = vmatpush1.msra.mxu0 %v740
  %742 = vmatprep.subr.mxu0 0.0
  %v743 = vand.u32 %v21, 4294901760
  %v744 = vsub.f32 %v21, %v743
  %745 = vmatpush1.msra.mxu0 %v744
  %746 = vmatprep.subr.mxu0 0.0
  %v747 = vand.u32 %v22, 4294901760
  %v748 = vsub.f32 %v22, %v747
  %749 = vmatpush1.msra.mxu0 %v748
  %750 = vmatprep.subr.mxu0 0.0
  %751 = vmatpush1.msra.mxu0 0.0
  %752 = vmatprep.subr.mxu0 0.0
  %753 = vmatpush1.msra.mxu0 0.0
  %754 = vmatprep.subr.mxu0 0.0
  %755 = vmatpush1.msra.mxu0 0.0
  %756 = vmatprep.subr.mxu0 0.0
  %757 = vmatpush1.msra.mxu0 0.0
  %758 = vmatprep.subr.mxu0 0.0
  %759 = vmatpush1.msra.mxu0 0.0
  %760 = vmatprep.subr.mxu0 0.0
  %761 = vmatpush1.msra.mxu0 0.0
  %762 = vmatprep.subr.mxu0 0.0
  %763 = vmatpush1.msra.mxu0 0.0
  %764 = vmatprep.subr.mxu0 0.0
  %765 = vmatpush1.msra.mxu0 0.0
  %766 = vmatprep.subr.mxu0 0.0
  %767 = vmatpush1.msra.mxu0 0.0
  %768 = vmatprep.subr.mxu0 0.0
  %769 = vmatpush1.msra.mxu0 0.0
  %770 = vmatprep.subr.mxu0 0.0
  %771 = vmatpush1.msra.mxu0 0.0
  %772 = vmatprep.subr.mxu0 0.0
  %773 = vmatpush1.msra.mxu0 0.0
  %774 = vmatprep.subr.mxu0 0.0
  %775 = vmatpush1.msra.mxu0 0.0
  %776 = vmatprep.subr.mxu0 0.0
  %777 = vmatpush1.msra.mxu0 0.0
  %778 = vmatprep.subr.mxu0 0.0
  %779 = vmatpush1.msra.mxu0 0.0
  %780 = vmatprep.subr.mxu0 0.0
  %781 = vmatpush1.msra.mxu0 0.0
  %782 = vmatprep.subr.mxu0 0.0
  %783 = vmatpush1.msra.mxu0 0.0
  %784 = vmatprep.subr.mxu0 0.0
  %785 = vmatpush1.msra.mxu0 0.0
  %786 = vmatprep.subr.mxu0 0.0
  %787 = vmatpush1.msra.mxu0 0.0
  %788 = vmatprep.subr.mxu0 0.0
  %789 = vmatpush1.msra.mxu0 0.0
  %790 = vmatprep.subr.mxu0 0.0
  %791 = vmatpush1.msra.mxu0 0.0
  %792 = vmatprep.subr.mxu0 0.0
  %793 = vmatpush1.msra.mxu0 0.0
  %794 = vmatprep.subr.mxu0 0.0
  %795 = vmatpush1.msra.mxu0 0.0
  %796 = vmatprep.subr.mxu0 0.0
  %797 = vmatpush1.msra.mxu0 0.0
  %798 = vmatprep.subr.mxu0 0.0
  %799 = vmatpush1.msra.mxu0 0.0
  %800 = vmatprep.subr.mxu0 0.0
  %801 = vmatpush1.msra.mxu0 0.0
  %802 = vmatprep.subr.mxu0 0.0
  %803 = vmatpush1.msra.mxu0 0.0
  %804 = vmatprep.subr.mxu0 0.0
  %805 = vmatpush1.msra.mxu0 0.0
  %806 = vmatprep.mubr.f32.mxu0 0.0
  %v807 = vand.u32 %v562, 4294901760
  %v808 = vsub.f32 %v562, %v807
  %809 = vmatmul.mubr.f32.gmra.mrb[0].mxu0 %v808
  %v810 = vpop.f32.mrb[0].mxu0
  %v811 = vadd.f32 %v731, %v810
  %v812 = vpop.f32.mrb[0].mxu0
  %813 = vdwg.mxu0
  %814 = vmatprep.subr.mxu0 0.0
  %v815 = vand.u32 %v19, 4294901760
  %816 = vmatpush1.msra.mxu0 %v815
  %817 = vmatprep.subr.mxu0 0.0
  %v818 = vand.u32 %v20, 4294901760
  %819 = vmatpush1.msra.mxu0 %v818
  %820 = vmatprep.subr.mxu0 0.0
  %v821 = vand.u32 %v21, 4294901760
  %822 = vmatpush1.msra.mxu0 %v821
  %823 = vmatprep.subr.mxu0 0.0
  %v824 = vand.u32 %v22, 4294901760
  %825 = vmatpush1.msra.mxu0 %v824
  %826 = vmatprep.subr.mxu0 0.0
  %827 = vmatpush1.msra.mxu0 0.0
  %828 = vmatprep.subr.mxu0 0.0
  %829 = vmatpush1.msra.mxu0 0.0
  %830 = vmatprep.subr.mxu0 0.0
  %831 = vmatpush1.msra.mxu0 0.0
  %832 = vmatprep.subr.mxu0 0.0
  %833 = vmatpush1.msra.mxu0 0.0
  %834 = vmatprep.subr.mxu0 0.0
  %835 = vmatpush1.msra.mxu0 0.0
  %836 = vmatprep.subr.mxu0 0.0
  %837 = vmatpush1.msra.mxu0 0.0
  %838 = vmatprep.subr.mxu0 0.0
  %839 = vmatpush1.msra.mxu0 0.0
  %840 = vmatprep.subr.mxu0 0.0
  %841 = vmatpush1.msra.mxu0 0.0
  %842 = vmatprep.subr.mxu0 0.0
  %843 = vmatpush1.msra.mxu0 0.0
  %844 = vmatprep.subr.mxu0 0.0
  %845 = vmatpush1.msra.mxu0 0.0
  %846 = vmatprep.subr.mxu0 0.0
  %847 = vmatpush1.msra.mxu0 0.0
  %848 = vmatprep.subr.mxu0 0.0
  %849 = vmatpush1.msra.mxu0 0.0
  %850 = vmatprep.subr.mxu0 0.0
  %851 = vmatpush1.msra.mxu0 0.0
  %852 = vmatprep.subr.mxu0 0.0
  %853 = vmatpush1.msra.mxu0 0.0
  %854 = vmatprep.subr.mxu0 0.0
  %855 = vmatpush1.msra.mxu0 0.0
  %856 = vmatprep.subr.mxu0 0.0
  %857 = vmatpush1.msra.mxu0 0.0
  %858 = vmatprep.subr.mxu0 0.0
  %859 = vmatpush1.msra.mxu0 0.0
  %860 = vmatprep.subr.mxu0 0.0
  %861 = vmatpush1.msra.mxu0 0.0
  %862 = vmatprep.subr.mxu0 0.0
  %863 = vmatpush1.msra.mxu0 0.0
  %864 = vmatprep.subr.mxu0 0.0
  %865 = vmatpush1.msra.mxu0 0.0
  %866 = vmatprep.subr.mxu0 0.0
  %867 = vmatpush1.msra.mxu0 0.0
  %868 = vmatprep.subr.mxu0 0.0
  %869 = vmatpush1.msra.mxu0 0.0
  %870 = vmatprep.subr.mxu0 0.0
  %871 = vmatpush1.msra.mxu0 0.0
  %872 = vmatprep.subr.mxu0 0.0
  %873 = vmatpush1.msra.mxu0 0.0
  %874 = vmatprep.subr.mxu0 0.0
  %875 = vmatpush1.msra.mxu0 0.0
  %876 = vmatprep.subr.mxu0 0.0
  %877 = vmatpush1.msra.mxu0 0.0
  %878 = vmatprep.subr.mxu0 0.0
  %879 = vmatpush1.msra.mxu0 0.0
  %880 = vmatprep.subr.mxu0 0.0
  %881 = vmatpush1.msra.mxu0 0.0
  %882 = vmatprep.mubr.f32.mxu0 0.0
  %v883 = vand.u32 %v562, 4294901760
  %v884 = vsub.f32 %v562, %v883
  %v885 = vand.u32 %v884, 4294901760
  %886 = vmatmul.mubr.f32.gmra.mrb[0].mxu0 %v885
  %v887 = vpop.f32.mrb[0].mxu0
  %v888 = vadd.f32 %v811, %v887
  %v889 = vpop.f32.mrb[0].mxu0
  %890 = vdwg.mxu0
  %891 = vmatprep.subr.mxu0 0.0
  %v892 = vand.u32 %v19, 4294901760
  %v893 = vsub.f32 %v19, %v892
  %v894 = vand.u32 %v893, 4294901760
  %895 = vmatpush1.msra.mxu0 %v894
  %896 = vmatprep.subr.mxu0 0.0
  %v897 = vand.u32 %v20, 4294901760
  %v898 = vsub.f32 %v20, %v897
  %v899 = vand.u32 %v898, 4294901760
  %900 = vmatpush1.msra.mxu0 %v899
  %901 = vmatprep.subr.mxu0 0.0
  %v902 = vand.u32 %v21, 4294901760
  %v903 = vsub.f32 %v21, %v902
  %v904 = vand.u32 %v903, 4294901760
  %905 = vmatpush1.msra.mxu0 %v904
  %906 = vmatprep.subr.mxu0 0.0
  %v907 = vand.u32 %v22, 4294901760
  %v908 = vsub.f32 %v22, %v907
  %v909 = vand.u32 %v908, 4294901760
  %910 = vmatpush1.msra.mxu0 %v909
  %911 = vmatprep.subr.mxu0 0.0
  %912 = vmatpush1.msra.mxu0 0.0
  %913 = vmatprep.subr.mxu0 0.0
  %914 = vmatpush1.msra.mxu0 0.0
  %915 = vmatprep.subr.mxu0 0.0
  %916 = vmatpush1.msra.mxu0 0.0
  %917 = vmatprep.subr.mxu0 0.0
  %918 = vmatpush1.msra.mxu0 0.0
  %919 = vmatprep.subr.mxu0 0.0
  %920 = vmatpush1.msra.mxu0 0.0
  %921 = vmatprep.subr.mxu0 0.0
  %922 = vmatpush1.msra.mxu0 0.0
  %923 = vmatprep.subr.mxu0 0.0
  %924 = vmatpush1.msra.mxu0 0.0
  %925 = vmatprep.subr.mxu0 0.0
  %926 = vmatpush1.msra.mxu0 0.0
  %927 = vmatprep.subr.mxu0 0.0
  %928 = vmatpush1.msra.mxu0 0.0
  %929 = vmatprep.subr.mxu0 0.0
  %930 = vmatpush1.msra.mxu0 0.0
  %931 = vmatprep.subr.mxu0 0.0
  %932 = vmatpush1.msra.mxu0 0.0
  %933 = vmatprep.subr.mxu0 0.0
  %934 = vmatpush1.msra.mxu0 0.0
  %935 = vmatprep.subr.mxu0 0.0
  %936 = vmatpush1.msra.mxu0 0.0
  %937 = vmatprep.subr.mxu0 0.0
  %938 = vmatpush1.msra.mxu0 0.0
  %939 = vmatprep.subr.mxu0 0.0
  %940 = vmatpush1.msra.mxu0 0.0
  %941 = vmatprep.subr.mxu0 0.0
  %942 = vmatpush1.msra.mxu0 0.0
  %943 = vmatprep.subr.mxu0 0.0
  %944 = vmatpush1.msra.mxu0 0.0
  %945 = vmatprep.subr.mxu0 0.0
  %946 = vmatpush1.msra.mxu0 0.0
  %947 = vmatprep.subr.mxu0 0.0
  %948 = vmatpush1.msra.mxu0 0.0
  %949 = vmatprep.subr.mxu0 0.0
  %950 = vmatpush1.msra.mxu0 0.0
  %951 = vmatprep.subr.mxu0 0.0
  %952 = vmatpush1.msra.mxu0 0.0
  %953 = vmatprep.subr.mxu0 0.0
  %954 = vmatpush1.msra.mxu0 0.0
  %955 = vmatprep.subr.mxu0 0.0
  %956 = vmatpush1.msra.mxu0 0.0
  %957 = vmatprep.subr.mxu0 0.0
  %958 = vmatpush1.msra.mxu0 0.0
  %959 = vmatprep.subr.mxu0 0.0
  %960 = vmatpush1.msra.mxu0 0.0
  %961 = vmatprep.subr.mxu0 0.0
  %962 = vmatpush1.msra.mxu0 0.0
  %963 = vmatprep.subr.mxu0 0.0
  %964 = vmatpush1.msra.mxu0 0.0
  %965 = vmatprep.subr.mxu0 0.0
  %966 = vmatpush1.msra.mxu0 0.0
  %967 = vmatprep.mubr.f32.mxu0 0.0
  %v968 = vand.u32 %v562, 4294901760
  %969 = vmatmul.mubr.f32.gmra.mrb[0].mxu0 %v968
  %v970 = vpop.f32.mrb[0].mxu0
  %v971 = vadd.f32 %v888, %v970
  %v972 = vpop.f32.mrb[0].mxu0
  %973 = vdwg.mxu0
  %974 = vmatprep.subr.mxu0 0.0
  %v975 = vand.u32 %v19, 4294901760
  %976 = vmatpush1.msra.mxu0 %v975
  %977 = vmatprep.subr.mxu0 0.0
  %v978 = vand.u32 %v20, 4294901760
  %979 = vmatpush1.msra.mxu0 %v978
  %980 = vmatprep.subr.mxu0 0.0
  %v981 = vand.u32 %v21, 4294901760
  %982 = vmatpush1.msra.mxu0 %v981
  %983 = vmatprep.subr.mxu0 0.0
  %v984 = vand.u32 %v22, 4294901760
  %985 = vmatpush1.msra.mxu0 %v984
  %986 = vmatprep.subr.mxu0 0.0
  %987 = vmatpush1.msra.mxu0 0.0
  %988 = vmatprep.subr.mxu0 0.0
  %989 = vmatpush1.msra.mxu0 0.0
  %990 = vmatprep.subr.mxu0 0.0
  %991 = vmatpush1.msra.mxu0 0.0
  %992 = vmatprep.subr.mxu0 0.0
  %993 = vmatpush1.msra.mxu0 0.0
  %994 = vmatprep.subr.mxu0 0.0
  %995 = vmatpush1.msra.mxu0 0.0
  %996 = vmatprep.subr.mxu0 0.0
  %997 = vmatpush1.msra.mxu0 0.0
  %998 = vmatprep.subr.mxu0 0.0
  %999 = vmatpush1.msra.mxu0 0.0
  %1000 = vmatprep.subr.mxu0 0.0
  %1001 = vmatpush1.msra.mxu0 0.0
  %1002 = vmatprep.subr.mxu0 0.0
  %1003 = vmatpush1.msra.mxu0 0.0
  %1004 = vmatprep.subr.mxu0 0.0
  %1005 = vmatpush1.msra.mxu0 0.0
  %1006 = vmatprep.subr.mxu0 0.0
  %1007 = vmatpush1.msra.mxu0 0.0
  %1008 = vmatprep.subr.mxu0 0.0
  %1009 = vmatpush1.msra.mxu0 0.0
  %1010 = vmatprep.subr.mxu0 0.0
  %1011 = vmatpush1.msra.mxu0 0.0
  %1012 = vmatprep.subr.mxu0 0.0
  %1013 = vmatpush1.msra.mxu0 0.0
  %1014 = vmatprep.subr.mxu0 0.0
  %1015 = vmatpush1.msra.mxu0 0.0
  %1016 = vmatprep.subr.mxu0 0.0
  %1017 = vmatpush1.msra.mxu0 0.0
  %1018 = vmatprep.subr.mxu0 0.0
  %1019 = vmatpush1.msra.mxu0 0.0
  %1020 = vmatprep.subr.mxu0 0.0
  %1021 = vmatpush1.msra.mxu0 0.0
  %1022 = vmatprep.subr.mxu0 0.0
  %1023 = vmatpush1.msra.mxu0 0.0
  %1024 = vmatprep.subr.mxu0 0.0
  %1025 = vmatpush1.msra.mxu0 0.0
  %1026 = vmatprep.subr.mxu0 0.0
  %1027 = vmatpush1.msra.mxu0 0.0
  %1028 = vmatprep.subr.mxu0 0.0
  %1029 = vmatpush1.msra.mxu0 0.0
  %1030 = vmatprep.subr.mxu0 0.0
  %1031 = vmatpush1.msra.mxu0 0.0
  %1032 = vmatprep.subr.mxu0 0.0
  %1033 = vmatpush1.msra.mxu0 0.0
  %1034 = vmatprep.subr.mxu0 0.0
  %1035 = vmatpush1.msra.mxu0 0.0
  %1036 = vmatprep.subr.mxu0 0.0
  %1037 = vmatpush1.msra.mxu0 0.0
  %1038 = vmatprep.subr.mxu0 0.0
  %1039 = vmatpush1.msra.mxu0 0.0
  %1040 = vmatprep.subr.mxu0 0.0
  %1041 = vmatpush1.msra.mxu0 0.0
  %1042 = vmatprep.mubr.f32.mxu0 0.0
  %v1043 = vand.u32 %v562, 4294901760
  %1044 = vmatmul.mubr.f32.gmra.mrb[0].mxu0 %v1043
  %v1045 = vpop.f32.mrb[0].mxu0
  %v1046 = vadd.f32 %v971, %v1045
  %v1047 = vpop.f32.mrb[0].mxu0
  %1048 = vdwg.mxu0
  %v1049 = vadd.f32 %v558, %v1046
  %v1050 = vxor.u32 %v1049, 2147483648
  %v1051 = vmul.f32 %v1050, 1.442695
  %v1052 = vpow.pop %v1051
  %v1053 = vadd.f32 %v1052, 1.0
  %v1054 = vrcp.pop %v1053
  %v1055 = vmul.f32 1.0, %v1054
  %v1056 = vadd.f32 %v1046, %v528
  %1058 = vrot.lane.b32.xlu0 %v1056, 64
  %v1059 = vpop.permute.xlu0 %1058
  %v1061 = vmul.f32 %v1055, %v1059
  %1063 = vrot.lane.b32.xlu0 %v1061, 64
  %v1064 = vpop.permute.xlu0 %1063
  %v1066 = vadd.f32 %v558, %v1064
  %v1067 = vtanh.pop %v1066
  %v1068 = vsub.f32 %v556, %v1067
  %1070 = vrot.lane.b32.xlu0 %v1068, 96
  %v1071 = vpop.permute.xlu0 %1070
  %v1073 = vmul.f32 %v1055, %v1071
  %1075 = vrot.lane.b32.xlu0 %v1073, 32
  %v1076 = vpop.permute.xlu0 %1075
  %v1078 = vadd.f32 %v1067, %v1076
  %s1079 = scalar_lea.vmem %s0, 16
  %v1080 = vld [vmem:[%s1079] sm:$0xff]
  %1082 = vrot.lane.b32.xlu0 %v1078, 64
  %v1083 = vpop.permute.xlu0 %1082
  %v1084 = vsel %vm31, %v1083, 0
  %1086 = vmatprep.subr.mxu0 0.0
  %v1087 = vand.u32 %v19, 4294901760
  %1088 = vmatpush1.msra.mxu0 %v1087
  %1089 = vmatprep.subr.mxu0 0.0
  %v1090 = vand.u32 %v20, 4294901760
  %1091 = vmatpush1.msra.mxu0 %v1090
  %1092 = vmatprep.subr.mxu0 0.0
  %v1093 = vand.u32 %v21, 4294901760
  %1094 = vmatpush1.msra.mxu0 %v1093
  %1095 = vmatprep.subr.mxu0 0.0
  %v1096 = vand.u32 %v22, 4294901760
  %1097 = vmatpush1.msra.mxu0 %v1096
  %1098 = vmatprep.subr.mxu0 0.0
  %1099 = vmatpush1.msra.mxu0 0.0
  %1100 = vmatprep.subr.mxu0 0.0
  %1101 = vmatpush1.msra.mxu0 0.0
  %1102 = vmatprep.subr.mxu0 0.0
  %1103 = vmatpush1.msra.mxu0 0.0
  %1104 = vmatprep.subr.mxu0 0.0
  %1105 = vmatpush1.msra.mxu0 0.0
  %1106 = vmatprep.subr.mxu0 0.0
  %1107 = vmatpush1.msra.mxu0 0.0
  %1108 = vmatprep.subr.mxu0 0.0
  %1109 = vmatpush1.msra.mxu0 0.0
  %1110 = vmatprep.subr.mxu0 0.0
  %1111 = vmatpush1.msra.mxu0 0.0
  %1112 = vmatprep.subr.mxu0 0.0
  %1113 = vmatpush1.msra.mxu0 0.0
  %1114 = vmatprep.subr.mxu0 0.0
  %1115 = vmatpush1.msra.mxu0 0.0
  %1116 = vmatprep.subr.mxu0 0.0
  %1117 = vmatpush1.msra.mxu0 0.0
  %1118 = vmatprep.subr.mxu0 0.0
  %1119 = vmatpush1.msra.mxu0 0.0
  %1120 = vmatprep.subr.mxu0 0.0
  %1121 = vmatpush1.msra.mxu0 0.0
  %1122 = vmatprep.subr.mxu0 0.0
  %1123 = vmatpush1.msra.mxu0 0.0
  %1124 = vmatprep.subr.mxu0 0.0
  %1125 = vmatpush1.msra.mxu0 0.0
  %1126 = vmatprep.subr.mxu0 0.0
  %1127 = vmatpush1.msra.mxu0 0.0
  %1128 = vmatprep.subr.mxu0 0.0
  %1129 = vmatpush1.msra.mxu0 0.0
  %1130 = vmatprep.subr.mxu0 0.0
  %1131 = vmatpush1.msra.mxu0 0.0
  %1132 = vmatprep.subr.mxu0 0.0
  %1133 = vmatpush1.msra.mxu0 0.0
  %1134 = vmatprep.subr.mxu0 0.0
  %1135 = vmatpush1.msra.mxu0 0.0
  %1136 = vmatprep.subr.mxu0 0.0
  %1137 = vmatpush1.msra.mxu0 0.0
  %1138 = vmatprep.subr.mxu0 0.0
  %1139 = vmatpush1.msra.mxu0 0.0
  %1140 = vmatprep.subr.mxu0 0.0
  %1141 = vmatpush1.msra.mxu0 0.0
  %1142 = vmatprep.subr.mxu0 0.0
  %1143 = vmatpush1.msra.mxu0 0.0
  %1144 = vmatprep.subr.mxu0 0.0
  %1145 = vmatpush1.msra.mxu0 0.0
  %1146 = vmatprep.subr.mxu0 0.0
  %1147 = vmatpush1.msra.mxu0 0.0
  %1148 = vmatprep.subr.mxu0 0.0
  %1149 = vmatpush1.msra.mxu0 0.0
  %1150 = vmatprep.subr.mxu0 0.0
  %1151 = vmatpush1.msra.mxu0 0.0
  %1152 = vmatprep.subr.mxu0 0.0
  %1153 = vmatpush1.msra.mxu0 0.0
  %1154 = vmatprep.mubr.f32.mxu0 0.0
  %v1155 = vand.u32 %v1084, 4294901760
  %v1156 = vsub.f32 %v1084, %v1155
  %v1157 = vand.u32 %v1156, 4294901760
  %v1158 = vsub.f32 %v1156, %v1157
  %v1159 = vand.u32 %v1158, 4294901760
  %1160 = vmatmul.mubr.f32.gmra.mrb[0].mxu0 %v1159
  %v1161 = vpop.f32.mrb[0].mxu0
  %v1162 = vadd.f32 0.0, %v1161
  %v1163 = vpop.f32.mrb[0].mxu0
  %1164 = vdwg.mxu0
  %1165 = vmatprep.subr.mxu0 0.0
  %v1166 = vand.u32 %v19, 4294901760
  %v1167 = vsub.f32 %v19, %v1166
  %v1168 = vand.u32 %v1167, 4294901760
  %v1169 = vsub.f32 %v1167, %v1168
  %v1170 = vand.u32 %v1169, 4294901760
  %1171 = vmatpush1.msra.mxu0 %v1170
  %1172 = vmatprep.subr.mxu0 0.0
  %v1173 = vand.u32 %v20, 4294901760
  %v1174 = vsub.f32 %v20, %v1173
  %v1175 = vand.u32 %v1174, 4294901760
  %v1176 = vsub.f32 %v1174, %v1175
  %v1177 = vand.u32 %v1176, 4294901760
  %1178 = vmatpush1.msra.mxu0 %v1177
  %1179 = vmatprep.subr.mxu0 0.0
  %v1180 = vand.u32 %v21, 4294901760
  %v1181 = vsub.f32 %v21, %v1180
  %v1182 = vand.u32 %v1181, 4294901760
  %v1183 = vsub.f32 %v1181, %v1182
  %v1184 = vand.u32 %v1183, 4294901760
  %1185 = vmatpush1.msra.mxu0 %v1184
  %1186 = vmatprep.subr.mxu0 0.0
  %v1187 = vand.u32 %v22, 4294901760
  %v1188 = vsub.f32 %v22, %v1187
  %v1189 = vand.u32 %v1188, 4294901760
  %v1190 = vsub.f32 %v1188, %v1189
  %v1191 = vand.u32 %v1190, 4294901760
  %1192 = vmatpush1.msra.mxu0 %v1191
  %1193 = vmatprep.subr.mxu0 0.0
  %1194 = vmatpush1.msra.mxu0 0.0
  %1195 = vmatprep.subr.mxu0 0.0
  %1196 = vmatpush1.msra.mxu0 0.0
  %1197 = vmatprep.subr.mxu0 0.0
  %1198 = vmatpush1.msra.mxu0 0.0
  %1199 = vmatprep.subr.mxu0 0.0
  %1200 = vmatpush1.msra.mxu0 0.0
  %1201 = vmatprep.subr.mxu0 0.0
  %1202 = vmatpush1.msra.mxu0 0.0
  %1203 = vmatprep.subr.mxu0 0.0
  %1204 = vmatpush1.msra.mxu0 0.0
  %1205 = vmatprep.subr.mxu0 0.0
  %1206 = vmatpush1.msra.mxu0 0.0
  %1207 = vmatprep.subr.mxu0 0.0
  %1208 = vmatpush1.msra.mxu0 0.0
  %1209 = vmatprep.subr.mxu0 0.0
  %1210 = vmatpush1.msra.mxu0 0.0
  %1211 = vmatprep.subr.mxu0 0.0
  %1212 = vmatpush1.msra.mxu0 0.0
  %1213 = vmatprep.subr.mxu0 0.0
  %1214 = vmatpush1.msra.mxu0 0.0
  %1215 = vmatprep.subr.mxu0 0.0
  %1216 = vmatpush1.msra.mxu0 0.0
  %1217 = vmatprep.subr.mxu0 0.0
  %1218 = vmatpush1.msra.mxu0 0.0
  %1219 = vmatprep.subr.mxu0 0.0
  %1220 = vmatpush1.msra.mxu0 0.0
  %1221 = vmatprep.subr.mxu0 0.0
  %1222 = vmatpush1.msra.mxu0 0.0
  %1223 = vmatprep.subr.mxu0 0.0
  %1224 = vmatpush1.msra.mxu0 0.0
  %1225 = vmatprep.subr.mxu0 0.0
  %1226 = vmatpush1.msra.mxu0 0.0
  %1227 = vmatprep.subr.mxu0 0.0
  %1228 = vmatpush1.msra.mxu0 0.0
  %1229 = vmatprep.subr.mxu0 0.0
  %1230 = vmatpush1.msra.mxu0 0.0
  %1231 = vmatprep.subr.mxu0 0.0
  %1232 = vmatpush1.msra.mxu0 0.0
  %1233 = vmatprep.subr.mxu0 0.0
  %1234 = vmatpush1.msra.mxu0 0.0
  %1235 = vmatprep.subr.mxu0 0.0
  %1236 = vmatpush1.msra.mxu0 0.0
  %1237 = vmatprep.subr.mxu0 0.0
  %1238 = vmatpush1.msra.mxu0 0.0
  %1239 = vmatprep.subr.mxu0 0.0
  %1240 = vmatpush1.msra.mxu0 0.0
  %1241 = vmatprep.subr.mxu0 0.0
  %1242 = vmatpush1.msra.mxu0 0.0
  %1243 = vmatprep.subr.mxu0 0.0
  %1244 = vmatpush1.msra.mxu0 0.0
  %1245 = vmatprep.subr.mxu0 0.0
  %1246 = vmatpush1.msra.mxu0 0.0
  %1247 = vmatprep.subr.mxu0 0.0
  %1248 = vmatpush1.msra.mxu0 0.0
  %1249 = vmatprep.mubr.f32.mxu0 0.0
  %v1250 = vand.u32 %v1084, 4294901760
  %1251 = vmatmul.mubr.f32.gmra.mrb[0].mxu0 %v1250
  %v1252 = vpop.f32.mrb[0].mxu0
  %v1253 = vadd.f32 %v1162, %v1252
  %v1254 = vpop.f32.mrb[0].mxu0
  %1255 = vdwg.mxu0
  %1256 = vmatprep.subr.mxu0 0.0
  %v1257 = vand.u32 %v19, 4294901760
  %v1258 = vsub.f32 %v19, %v1257
  %1259 = vmatpush1.msra.mxu0 %v1258
  %1260 = vmatprep.subr.mxu0 0.0
  %v1261 = vand.u32 %v20, 4294901760
  %v1262 = vsub.f32 %v20, %v1261
  %1263 = vmatpush1.msra.mxu0 %v1262
  %1264 = vmatprep.subr.mxu0 0.0
  %v1265 = vand.u32 %v21, 4294901760
  %v1266 = vsub.f32 %v21, %v1265
  %1267 = vmatpush1.msra.mxu0 %v1266
  %1268 = vmatprep.subr.mxu0 0.0
  %v1269 = vand.u32 %v22, 4294901760
  %v1270 = vsub.f32 %v22, %v1269
  %1271 = vmatpush1.msra.mxu0 %v1270
  %1272 = vmatprep.subr.mxu0 0.0
  %1273 = vmatpush1.msra.mxu0 0.0
  %1274 = vmatprep.subr.mxu0 0.0
  %1275 = vmatpush1.msra.mxu0 0.0
  %1276 = vmatprep.subr.mxu0 0.0
  %1277 = vmatpush1.msra.mxu0 0.0
  %1278 = vmatprep.subr.mxu0 0.0
  %1279 = vmatpush1.msra.mxu0 0.0
  %1280 = vmatprep.subr.mxu0 0.0
  %1281 = vmatpush1.msra.mxu0 0.0
  %1282 = vmatprep.subr.mxu0 0.0
  %1283 = vmatpush1.msra.mxu0 0.0
  %1284 = vmatprep.subr.mxu0 0.0
  %1285 = vmatpush1.msra.mxu0 0.0
  %1286 = vmatprep.subr.mxu0 0.0
  %1287 = vmatpush1.msra.mxu0 0.0
  %1288 = vmatprep.subr.mxu0 0.0
  %1289 = vmatpush1.msra.mxu0 0.0
  %1290 = vmatprep.subr.mxu0 0.0
  %1291 = vmatpush1.msra.mxu0 0.0
  %1292 = vmatprep.subr.mxu0 0.0
  %1293 = vmatpush1.msra.mxu0 0.0
  %1294 = vmatprep.subr.mxu0 0.0
  %1295 = vmatpush1.msra.mxu0 0.0
  %1296 = vmatprep.subr.mxu0 0.0
  %1297 = vmatpush1.msra.mxu0 0.0
  %1298 = vmatprep.subr.mxu0 0.0
  %1299 = vmatpush1.msra.mxu0 0.0
  %1300 = vmatprep.subr.mxu0 0.0
  %1301 = vmatpush1.msra.mxu0 0.0
  %1302 = vmatprep.subr.mxu0 0.0
  %1303 = vmatpush1.msra.mxu0 0.0
  %1304 = vmatprep.subr.mxu0 0.0
  %1305 = vmatpush1.msra.mxu0 0.0
  %1306 = vmatprep.subr.mxu0 0.0
  %1307 = vmatpush1.msra.mxu0 0.0
  %1308 = vmatprep.subr.mxu0 0.0
  %1309 = vmatpush1.msra.mxu0 0.0
  %1310 = vmatprep.subr.mxu0 0.0
  %1311 = vmatpush1.msra.mxu0 0.0
  %1312 = vmatprep.subr.mxu0 0.0
  %1313 = vmatpush1.msra.mxu0 0.0
  %1314 = vmatprep.subr.mxu0 0.0
  %1315 = vmatpush1.msra.mxu0 0.0
  %1316 = vmatprep.subr.mxu0 0.0
  %1317 = vmatpush1.msra.mxu0 0.0
  %1318 = vmatprep.subr.mxu0 0.0
  %1319 = vmatpush1.msra.mxu0 0.0
  %1320 = vmatprep.subr.mxu0 0.0
  %1321 = vmatpush1.msra.mxu0 0.0
  %1322 = vmatprep.subr.mxu0 0.0
  %1323 = vmatpush1.msra.mxu0 0.0
  %1324 = vmatprep.subr.mxu0 0.0
  %1325 = vmatpush1.msra.mxu0 0.0
  %1326 = vmatprep.subr.mxu0 0.0
  %1327 = vmatpush1.msra.mxu0 0.0
  %1328 = vmatprep.mubr.f32.mxu0 0.0
  %v1329 = vand.u32 %v1084, 4294901760
  %v1330 = vsub.f32 %v1084, %v1329
  %1331 = vmatmul.mubr.f32.gmra.mrb[0].mxu0 %v1330
  %v1332 = vpop.f32.mrb[0].mxu0
  %v1333 = vadd.f32 %v1253, %v1332
  %v1334 = vpop.f32.mrb[0].mxu0
  %1335 = vdwg.mxu0
  %1336 = vmatprep.subr.mxu0 0.0
  %v1337 = vand.u32 %v19, 4294901760
  %1338 = vmatpush1.msra.mxu0 %v1337
  %1339 = vmatprep.subr.mxu0 0.0
  %v1340 = vand.u32 %v20, 4294901760
  %1341 = vmatpush1.msra.mxu0 %v1340
  %1342 = vmatprep.subr.mxu0 0.0
  %v1343 = vand.u32 %v21, 4294901760
  %1344 = vmatpush1.msra.mxu0 %v1343
  %1345 = vmatprep.subr.mxu0 0.0
  %v1346 = vand.u32 %v22, 4294901760
  %1347 = vmatpush1.msra.mxu0 %v1346
  %1348 = vmatprep.subr.mxu0 0.0
  %1349 = vmatpush1.msra.mxu0 0.0
  %1350 = vmatprep.subr.mxu0 0.0
  %1351 = vmatpush1.msra.mxu0 0.0
  %1352 = vmatprep.subr.mxu0 0.0
  %1353 = vmatpush1.msra.mxu0 0.0
  %1354 = vmatprep.subr.mxu0 0.0
  %1355 = vmatpush1.msra.mxu0 0.0
  %1356 = vmatprep.subr.mxu0 0.0
  %1357 = vmatpush1.msra.mxu0 0.0
  %1358 = vmatprep.subr.mxu0 0.0
  %1359 = vmatpush1.msra.mxu0 0.0
  %1360 = vmatprep.subr.mxu0 0.0
  %1361 = vmatpush1.msra.mxu0 0.0
  %1362 = vmatprep.subr.mxu0 0.0
  %1363 = vmatpush1.msra.mxu0 0.0
  %1364 = vmatprep.subr.mxu0 0.0
  %1365 = vmatpush1.msra.mxu0 0.0
  %1366 = vmatprep.subr.mxu0 0.0
  %1367 = vmatpush1.msra.mxu0 0.0
  %1368 = vmatprep.subr.mxu0 0.0
  %1369 = vmatpush1.msra.mxu0 0.0
  %1370 = vmatprep.subr.mxu0 0.0
  %1371 = vmatpush1.msra.mxu0 0.0
  %1372 = vmatprep.subr.mxu0 0.0
  %1373 = vmatpush1.msra.mxu0 0.0
  %1374 = vmatprep.subr.mxu0 0.0
  %1375 = vmatpush1.msra.mxu0 0.0
  %1376 = vmatprep.subr.mxu0 0.0
  %1377 = vmatpush1.msra.mxu0 0.0
  %1378 = vmatprep.subr.mxu0 0.0
  %1379 = vmatpush1.msra.mxu0 0.0
  %1380 = vmatprep.subr.mxu0 0.0
  %1381 = vmatpush1.msra.mxu0 0.0
  %1382 = vmatprep.subr.mxu0 0.0
  %1383 = vmatpush1.msra.mxu0 0.0
  %1384 = vmatprep.subr.mxu0 0.0
  %1385 = vmatpush1.msra.mxu0 0.0
  %1386 = vmatprep.subr.mxu0 0.0
  %1387 = vmatpush1.msra.mxu0 0.0
  %1388 = vmatprep.subr.mxu0 0.0
  %1389 = vmatpush1.msra.mxu0 0.0
  %1390 = vmatprep.subr.mxu0 0.0
  %1391 = vmatpush1.msra.mxu0 0.0
  %1392 = vmatprep.subr.mxu0 0.0
  %1393 = vmatpush1.msra.mxu0 0.0
  %1394 = vmatprep.subr.mxu0 0.0
  %1395 = vmatpush1.msra.mxu0 0.0
  %1396 = vmatprep.subr.mxu0 0.0
  %1397 = vmatpush1.msra.mxu0 0.0
  %1398 = vmatprep.subr.mxu0 0.0
  %1399 = vmatpush1.msra.mxu0 0.0
  %1400 = vmatprep.subr.mxu0 0.0
  %1401 = vmatpush1.msra.mxu0 0.0
  %1402 = vmatprep.subr.mxu0 0.0
  %1403 = vmatpush1.msra.mxu0 0.0
  %1404 = vmatprep.mubr.f32.mxu0 0.0
  %v1405 = vand.u32 %v1084, 4294901760
  %v1406 = vsub.f32 %v1084, %v1405
  %v1407 = vand.u32 %v1406, 4294901760
  %1408 = vmatmul.mubr.f32.gmra.mrb[0].mxu0 %v1407
  %v1409 = vpop.f32.mrb[0].mxu0
  %v1410 = vadd.f32 %v1333, %v1409
  %v1411 = vpop.f32.mrb[0].mxu0
  %1412 = vdwg.mxu0
  %1413 = vmatprep.subr.mxu0 0.0
  %v1414 = vand.u32 %v19, 4294901760
  %v1415 = vsub.f32 %v19, %v1414
  %v1416 = vand.u32 %v1415, 4294901760
  %1417 = vmatpush1.msra.mxu0 %v1416
  %1418 = vmatprep.subr.mxu0 0.0
  %v1419 = vand.u32 %v20, 4294901760
  %v1420 = vsub.f32 %v20, %v1419
  %v1421 = vand.u32 %v1420, 4294901760
  %1422 = vmatpush1.msra.mxu0 %v1421
  %1423 = vmatprep.subr.mxu0 0.0
  %v1424 = vand.u32 %v21, 4294901760
  %v1425 = vsub.f32 %v21, %v1424
  %v1426 = vand.u32 %v1425, 4294901760
  %1427 = vmatpush1.msra.mxu0 %v1426
  %1428 = vmatprep.subr.mxu0 0.0
  %v1429 = vand.u32 %v22, 4294901760
  %v1430 = vsub.f32 %v22, %v1429
  %v1431 = vand.u32 %v1430, 4294901760
  %1432 = vmatpush1.msra.mxu0 %v1431
  %1433 = vmatprep.subr.mxu0 0.0
  %1434 = vmatpush1.msra.mxu0 0.0
  %1435 = vmatprep.subr.mxu0 0.0
  %1436 = vmatpush1.msra.mxu0 0.0
  %1437 = vmatprep.subr.mxu0 0.0
  %1438 = vmatpush1.msra.mxu0 0.0
  %1439 = vmatprep.subr.mxu0 0.0
  %1440 = vmatpush1.msra.mxu0 0.0
  %1441 = vmatprep.subr.mxu0 0.0
  %1442 = vmatpush1.msra.mxu0 0.0
  %1443 = vmatprep.subr.mxu0 0.0
  %1444 = vmatpush1.msra.mxu0 0.0
  %1445 = vmatprep.subr.mxu0 0.0
  %1446 = vmatpush1.msra.mxu0 0.0
  %1447 = vmatprep.subr.mxu0 0.0
  %1448 = vmatpush1.msra.mxu0 0.0
  %1449 = vmatprep.subr.mxu0 0.0
  %1450 = vmatpush1.msra.mxu0 0.0
  %1451 = vmatprep.subr.mxu0 0.0
  %1452 = vmatpush1.msra.mxu0 0.0
  %1453 = vmatprep.subr.mxu0 0.0
  %1454 = vmatpush1.msra.mxu0 0.0
  %1455 = vmatprep.subr.mxu0 0.0
  %1456 = vmatpush1.msra.mxu0 0.0
  %1457 = vmatprep.subr.mxu0 0.0
  %1458 = vmatpush1.msra.mxu0 0.0
  %1459 = vmatprep.subr.mxu0 0.0
  %1460 = vmatpush1.msra.mxu0 0.0
  %1461 = vmatprep.subr.mxu0 0.0
  %1462 = vmatpush1.msra.mxu0 0.0
  %1463 = vmatprep.subr.mxu0 0.0
  %1464 = vmatpush1.msra.mxu0 0.0
  %1465 = vmatprep.subr.mxu0 0.0
  %1466 = vmatpush1.msra.mxu0 0.0
  %1467 = vmatprep.subr.mxu0 0.0
  %1468 = vmatpush1.msra.mxu0 0.0
  %1469 = vmatprep.subr.mxu0 0.0
  %1470 = vmatpush1.msra.mxu0 0.0
  %1471 = vmatprep.subr.mxu0 0.0
  %1472 = vmatpush1.msra.mxu0 0.0
  %1473 = vmatprep.subr.mxu0 0.0
  %1474 = vmatpush1.msra.mxu0 0.0
  %1475 = vmatprep.subr.mxu0 0.0
  %1476 = vmatpush1.msra.mxu0 0.0
  %1477 = vmatprep.subr.mxu0 0.0
  %1478 = vmatpush1.msra.mxu0 0.0
  %1479 = vmatprep.subr.mxu0 0.0
  %1480 = vmatpush1.msra.mxu0 0.0
  %1481 = vmatprep.subr.mxu0 0.0
  %1482 = vmatpush1.msra.mxu0 0.0
  %1483 = vmatprep.subr.mxu0 0.0
  %1484 = vmatpush1.msra.mxu0 0.0
  %1485 = vmatprep.subr.mxu0 0.0
  %1486 = vmatpush1.msra.mxu0 0.0
  %1487 = vmatprep.subr.mxu0 0.0
  %1488 = vmatpush1.msra.mxu0 0.0
  %1489 = vmatprep.mubr.f32.mxu0 0.0
  %v1490 = vand.u32 %v1084, 4294901760
  %1491 = vmatmul.mubr.f32.gmra.mrb[0].mxu0 %v1490
  %v1492 = vpop.f32.mrb[0].mxu0
  %v1493 = vadd.f32 %v1410, %v1492
  %v1494 = vpop.f32.mrb[0].mxu0
  %1495 = vdwg.mxu0
  %1496 = vmatprep.subr.mxu0 0.0
  %v1497 = vand.u32 %v19, 4294901760
  %1498 = vmatpush1.msra.mxu0 %v1497
  %1499 = vmatprep.subr.mxu0 0.0
  %v1500 = vand.u32 %v20, 4294901760
  %1501 = vmatpush1.msra.mxu0 %v1500
  %1502 = vmatprep.subr.mxu0 0.0
  %v1503 = vand.u32 %v21, 4294901760
  %1504 = vmatpush1.msra.mxu0 %v1503
  %1505 = vmatprep.subr.mxu0 0.0
  %v1506 = vand.u32 %v22, 4294901760
  %1507 = vmatpush1.msra.mxu0 %v1506
  %1508 = vmatprep.subr.mxu0 0.0
  %1509 = vmatpush1.msra.mxu0 0.0
  %1510 = vmatprep.subr.mxu0 0.0
  %1511 = vmatpush1.msra.mxu0 0.0
  %1512 = vmatprep.subr.mxu0 0.0
  %1513 = vmatpush1.msra.mxu0 0.0
  %1514 = vmatprep.subr.mxu0 0.0
  %1515 = vmatpush1.msra.mxu0 0.0
  %1516 = vmatprep.subr.mxu0 0.0
  %1517 = vmatpush1.msra.mxu0 0.0
  %1518 = vmatprep.subr.mxu0 0.0
  %1519 = vmatpush1.msra.mxu0 0.0
  %1520 = vmatprep.subr.mxu0 0.0
  %1521 = vmatpush1.msra.mxu0 0.0
  %1522 = vmatprep.subr.mxu0 0.0
  %1523 = vmatpush1.msra.mxu0 0.0
  %1524 = vmatprep.subr.mxu0 0.0
  %1525 = vmatpush1.msra.mxu0 0.0
  %1526 = vmatprep.subr.mxu0 0.0
  %1527 = vmatpush1.msra.mxu0 0.0
  %1528 = vmatprep.subr.mxu0 0.0
  %1529 = vmatpush1.msra.mxu0 0.0
  %1530 = vmatprep.subr.mxu0 0.0
  %1531 = vmatpush1.msra.mxu0 0.0
  %1532 = vmatprep.subr.mxu0 0.0
  %1533 = vmatpush1.msra.mxu0 0.0
  %1534 = vmatprep.subr.mxu0 0.0
  %1535 = vmatpush1.msra.mxu0 0.0
  %1536 = vmatprep.subr.mxu0 0.0
  %1537 = vmatpush1.msra.mxu0 0.0
  %1538 = vmatprep.subr.mxu0 0.0
  %1539 = vmatpush1.msra.mxu0 0.0
  %1540 = vmatprep.subr.mxu0 0.0
  %1541 = vmatpush1.msra.mxu0 0.0
  %1542 = vmatprep.subr.mxu0 0.0
  %1543 = vmatpush1.msra.mxu0 0.0
  %1544 = vmatprep.subr.mxu0 0.0
  %1545 = vmatpush1.msra.mxu0 0.0
  %1546 = vmatprep.subr.mxu0 0.0
  %1547 = vmatpush1.msra.mxu0 0.0
  %1548 = vmatprep.subr.mxu0 0.0
  %1549 = vmatpush1.msra.mxu0 0.0
  %1550 = vmatprep.subr.mxu0 0.0
  %1551 = vmatpush1.msra.mxu0 0.0
  %1552 = vmatprep.subr.mxu0 0.0
  %1553 = vmatpush1.msra.mxu0 0.0
  %1554 = vmatprep.subr.mxu0 0.0
  %1555 = vmatpush1.msra.mxu0 0.0
  %1556 = vmatprep.subr.mxu0 0.0
  %1557 = vmatpush1.msra.mxu0 0.0
  %1558 = vmatprep.subr.mxu0 0.0
  %1559 = vmatpush1.msra.mxu0 0.0
  %1560 = vmatprep.subr.mxu0 0.0
  %1561 = vmatpush1.msra.mxu0 0.0
  %1562 = vmatprep.subr.mxu0 0.0
  %1563 = vmatpush1.msra.mxu0 0.0
  %1564 = vmatprep.mubr.f32.mxu0 0.0
  %v1565 = vand.u32 %v1084, 4294901760
  %1566 = vmatmul.mubr.f32.gmra.mrb[0].mxu0 %v1565
  %v1567 = vpop.f32.mrb[0].mxu0
  %v1568 = vadd.f32 %v1493, %v1567
  %v1569 = vpop.f32.mrb[0].mxu0
  %1570 = vdwg.mxu0
  %v1571 = vadd.f32 %v1080, %v1568
  %v1572 = vxor.u32 %v1571, 2147483648
  %v1573 = vmul.f32 %v1572, 1.442695
  %v1574 = vpow.pop %v1573
  %v1575 = vadd.f32 %v1574, 1.0
  %v1576 = vrcp.pop %v1575
  %v1577 = vmul.f32 1.0, %v1576
  %v1578 = vadd.f32 %v1568, %v528
  %1580 = vrot.lane.b32.xlu0 %v1578, 64
  %v1581 = vpop.permute.xlu0 %1580
  %v1583 = vmul.f32 %v1577, %v1581
  %1585 = vrot.lane.b32.xlu0 %v1583, 64
  %v1586 = vpop.permute.xlu0 %1585
  %v1588 = vadd.f32 %v1080, %v1586
  %v1589 = vtanh.pop %v1588
  %v1590 = vsub.f32 %v1078, %v1589
  %1592 = vrot.lane.b32.xlu0 %v1590, 96
  %v1593 = vpop.permute.xlu0 %1592
  %v1595 = vmul.f32 %v1577, %v1593
  %1597 = vrot.lane.b32.xlu0 %v1595, 32
  %v1598 = vpop.permute.xlu0 %1597
  %v1600 = vadd.f32 %v1589, %v1598
  %s1601 = scalar_lea.vmem %s0, 24
  %v1602 = vld [vmem:[%s1601] sm:$0xff]
  %1604 = vrot.lane.b32.xlu0 %v1600, 64
  %v1605 = vpop.permute.xlu0 %1604
  %v1606 = vsel %vm31, %v1605, 0
  %1608 = vmatprep.subr.mxu0 0.0
  %v1609 = vand.u32 %v19, 4294901760
  %1610 = vmatpush1.msra.mxu0 %v1609
  %1611 = vmatprep.subr.mxu0 0.0
  %v1612 = vand.u32 %v20, 4294901760
  %1613 = vmatpush1.msra.mxu0 %v1612
  %1614 = vmatprep.subr.mxu0 0.0
  %v1615 = vand.u32 %v21, 4294901760
  %1616 = vmatpush1.msra.mxu0 %v1615
  %1617 = vmatprep.subr.mxu0 0.0
  %v1618 = vand.u32 %v22, 4294901760
  %1619 = vmatpush1.msra.mxu0 %v1618
  %1620 = vmatprep.subr.mxu0 0.0
  %1621 = vmatpush1.msra.mxu0 0.0
  %1622 = vmatprep.subr.mxu0 0.0
  %1623 = vmatpush1.msra.mxu0 0.0
  %1624 = vmatprep.subr.mxu0 0.0
  %1625 = vmatpush1.msra.mxu0 0.0
  %1626 = vmatprep.subr.mxu0 0.0
  %1627 = vmatpush1.msra.mxu0 0.0
  %1628 = vmatprep.subr.mxu0 0.0
  %1629 = vmatpush1.msra.mxu0 0.0
  %1630 = vmatprep.subr.mxu0 0.0
  %1631 = vmatpush1.msra.mxu0 0.0
  %1632 = vmatprep.subr.mxu0 0.0
  %1633 = vmatpush1.msra.mxu0 0.0
  %1634 = vmatprep.subr.mxu0 0.0
  %1635 = vmatpush1.msra.mxu0 0.0
  %1636 = vmatprep.subr.mxu0 0.0
  %1637 = vmatpush1.msra.mxu0 0.0
  %1638 = vmatprep.subr.mxu0 0.0
  %1639 = vmatpush1.msra.mxu0 0.0
  %1640 = vmatprep.subr.mxu0 0.0
  %1641 = vmatpush1.msra.mxu0 0.0
  %1642 = vmatprep.subr.mxu0 0.0
  %1643 = vmatpush1.msra.mxu0 0.0
  %1644 = vmatprep.subr.mxu0 0.0
  %1645 = vmatpush1.msra.mxu0 0.0
  %1646 = vmatprep.subr.mxu0 0.0
  %1647 = vmatpush1.msra.mxu0 0.0
  %1648 = vmatprep.subr.mxu0 0.0
  %1649 = vmatpush1.msra.mxu0 0.0
  %1650 = vmatprep.subr.mxu0 0.0
  %1651 = vmatpush1.msra.mxu0 0.0
  %1652 = vmatprep.subr.mxu0 0.0
  %1653 = vmatpush1.msra.mxu0 0.0
  %1654 = vmatprep.subr.mxu0 0.0
  %1655 = vmatpush1.msra.mxu0 0.0
  %1656 = vmatprep.subr.mxu0 0.0
  %1657 = vmatpush1.msra.mxu0 0.0
  %1658 = vmatprep.subr.mxu0 0.0
  %1659 = vmatpush1.msra.mxu0 0.0
  %1660 = vmatprep.subr.mxu0 0.0
  %1661 = vmatpush1.msra.mxu0 0.0
  %1662 = vmatprep.subr.mxu0 0.0
  %1663 = vmatpush1.msra.mxu0 0.0
  %1664 = vmatprep.subr.mxu0 0.0
  %1665 = vmatpush1.msra.mxu0 0.0
  %1666 = vmatprep.subr.mxu0 0.0
  %1667 = vmatpush1.msra.mxu0 0.0
  %1668 = vmatprep.subr.mxu0 0.0
  %1669 = vmatpush1.msra.mxu0 0.0
  %1670 = vmatprep.subr.mxu0 0.0
  %1671 = vmatpush1.msra.mxu0 0.0
  %1672 = vmatprep.subr.mxu0 0.0
  %1673 = vmatpush1.msra.mxu0 0.0
  %1674 = vmatprep.subr.mxu0 0.0
  %1675 = vmatpush1.msra.mxu0 0.0
  %1676 = vmatprep.mubr.f32.mxu0 0.0
  %v1677 = vand.u32 %v1606, 4294901760
  %v1678 = vsub.f32 %v1606, %v1677
  %v1679 = vand.u32 %v1678, 4294901760
  %v1680 = vsub.f32 %v1678, %v1679
  %v1681 = vand.u32 %v1680, 4294901760
  %1682 = vmatmul.mubr.f32.gmra.mrb[0].mxu0 %v1681
  %v1683 = vpop.f32.mrb[0].mxu0
  %v1684 = vadd.f32 0.0, %v1683
  %v1685 = vpop.f32.mrb[0].mxu0
  %1686 = vdwg.mxu0
  %1687 = vmatprep.subr.mxu0 0.0
  %v1688 = vand.u32 %v19, 4294901760
  %v1689 = vsub.f32 %v19, %v1688
  %v1690 = vand.u32 %v1689, 4294901760
  %v1691 = vsub.f32 %v1689, %v1690
  %v1692 = vand.u32 %v1691, 4294901760
  %1693 = vmatpush1.msra.mxu0 %v1692
  %1694 = vmatprep.subr.mxu0 0.0
  %v1695 = vand.u32 %v20, 4294901760
  %v1696 = vsub.f32 %v20, %v1695
  %v1697 = vand.u32 %v1696, 4294901760
  %v1698 = vsub.f32 %v1696, %v1697
  %v1699 = vand.u32 %v1698, 4294901760
  %1700 = vmatpush1.msra.mxu0 %v1699
  %1701 = vmatprep.subr.mxu0 0.0
  %v1702 = vand.u32 %v21, 4294901760
  %v1703 = vsub.f32 %v21, %v1702
  %v1704 = vand.u32 %v1703, 4294901760
  %v1705 = vsub.f32 %v1703, %v1704
  %v1706 = vand.u32 %v1705, 4294901760
  %1707 = vmatpush1.msra.mxu0 %v1706
  %1708 = vmatprep.subr.mxu0 0.0
  %v1709 = vand.u32 %v22, 4294901760
  %v1710 = vsub.f32 %v22, %v1709
  %v1711 = vand.u32 %v1710, 4294901760
  %v1712 = vsub.f32 %v1710, %v1711
  %v1713 = vand.u32 %v1712, 4294901760
  %1714 = vmatpush1.msra.mxu0 %v1713
  %1715 = vmatprep.subr.mxu0 0.0
  %1716 = vmatpush1.msra.mxu0 0.0
  %1717 = vmatprep.subr.mxu0 0.0
  %1718 = vmatpush1.msra.mxu0 0.0
  %1719 = vmatprep.subr.mxu0 0.0
  %1720 = vmatpush1.msra.mxu0 0.0
  %1721 = vmatprep.subr.mxu0 0.0
  %1722 = vmatpush1.msra.mxu0 0.0
  %1723 = vmatprep.subr.mxu0 0.0
  %1724 = vmatpush1.msra.mxu0 0.0
  %1725 = vmatprep.subr.mxu0 0.0
  %1726 = vmatpush1.msra.mxu0 0.0
  %1727 = vmatprep.subr.mxu0 0.0
  %1728 = vmatpush1.msra.mxu0 0.0
  %1729 = vmatprep.subr.mxu0 0.0
  %1730 = vmatpush1.msra.mxu0 0.0
  %1731 = vmatprep.subr.mxu0 0.0
  %1732 = vmatpush1.msra.mxu0 0.0
  %1733 = vmatprep.subr.mxu0 0.0
  %1734 = vmatpush1.msra.mxu0 0.0
  %1735 = vmatprep.subr.mxu0 0.0
  %1736 = vmatpush1.msra.mxu0 0.0
  %1737 = vmatprep.subr.mxu0 0.0
  %1738 = vmatpush1.msra.mxu0 0.0
  %1739 = vmatprep.subr.mxu0 0.0
  %1740 = vmatpush1.msra.mxu0 0.0
  %1741 = vmatprep.subr.mxu0 0.0
  %1742 = vmatpush1.msra.mxu0 0.0
  %1743 = vmatprep.subr.mxu0 0.0
  %1744 = vmatpush1.msra.mxu0 0.0
  %1745 = vmatprep.subr.mxu0 0.0
  %1746 = vmatpush1.msra.mxu0 0.0
  %1747 = vmatprep.subr.mxu0 0.0
  %1748 = vmatpush1.msra.mxu0 0.0
  %1749 = vmatprep.subr.mxu0 0.0
  %1750 = vmatpush1.msra.mxu0 0.0
  %1751 = vmatprep.subr.mxu0 0.0
  %1752 = vmatpush1.msra.mxu0 0.0
  %1753 = vmatprep.subr.mxu0 0.0
  %1754 = vmatpush1.msra.mxu0 0.0
  %1755 = vmatprep.subr.mxu0 0.0
  %1756 = vmatpush1.msra.mxu0 0.0
  %1757 = vmatprep.subr.mxu0 0.0
  %1758 = vmatpush1.msra.mxu0 0.0
  %1759 = vmatprep.subr.mxu0 0.0
  %1760 = vmatpush1.msra.mxu0 0.0
  %1761 = vmatprep.subr.mxu0 0.0
  %1762 = vmatpush1.msra.mxu0 0.0
  %1763 = vmatprep.subr.mxu0 0.0
  %1764 = vmatpush1.msra.mxu0 0.0
  %1765 = vmatprep.subr.mxu0 0.0
  %1766 = vmatpush1.msra.mxu0 0.0
  %1767 = vmatprep.subr.mxu0 0.0
  %1768 = vmatpush1.msra.mxu0 0.0
  %1769 = vmatprep.subr.mxu0 0.0
  %1770 = vmatpush1.msra.mxu0 0.0
  %1771 = vmatprep.mubr.f32.mxu0 0.0
  %v1772 = vand.u32 %v1606, 4294901760
  %1773 = vmatmul.mubr.f32.gmra.mrb[0].mxu0 %v1772
  %v1774 = vpop.f32.mrb[0].mxu0
  %v1775 = vadd.f32 %v1684, %v1774
  %v1776 = vpop.f32.mrb[0].mxu0
  %1777 = vdwg.mxu0
  %1778 = vmatprep.subr.mxu0 0.0
  %v1779 = vand.u32 %v19, 4294901760
  %v1780 = vsub.f32 %v19, %v1779
  %1781 = vmatpush1.msra.mxu0 %v1780
  %1782 = vmatprep.subr.mxu0 0.0
  %v1783 = vand.u32 %v20, 4294901760
  %v1784 = vsub.f32 %v20, %v1783
  %1785 = vmatpush1.msra.mxu0 %v1784
  %1786 = vmatprep.subr.mxu0 0.0
  %v1787 = vand.u32 %v21, 4294901760
  %v1788 = vsub.f32 %v21, %v1787
  %1789 = vmatpush1.msra.mxu0 %v1788
  %1790 = vmatprep.subr.mxu0 0.0
  %v1791 = vand.u32 %v22, 4294901760
  %v1792 = vsub.f32 %v22, %v1791
  %1793 = vmatpush1.msra.mxu0 %v1792
  %1794 = vmatprep.subr.mxu0 0.0
  %1795 = vmatpush1.msra.mxu0 0.0
  %1796 = vmatprep.subr.mxu0 0.0
  %1797 = vmatpush1.msra.mxu0 0.0
  %1798 = vmatprep.subr.mxu0 0.0
  %1799 = vmatpush1.msra.mxu0 0.0
  %1800 = vmatprep.subr.mxu0 0.0
  %1801 = vmatpush1.msra.mxu0 0.0
  %1802 = vmatprep.subr.mxu0 0.0
  %1803 = vmatpush1.msra.mxu0 0.0
  %1804 = vmatprep.subr.mxu0 0.0
  %1805 = vmatpush1.msra.mxu0 0.0
  %1806 = vmatprep.subr.mxu0 0.0
  %1807 = vmatpush1.msra.mxu0 0.0
  %1808 = vmatprep.subr.mxu0 0.0
  %1809 = vmatpush1.msra.mxu0 0.0
  %1810 = vmatprep.subr.mxu0 0.0
  %1811 = vmatpush1.msra.mxu0 0.0
  %1812 = vmatprep.subr.mxu0 0.0
  %1813 = vmatpush1.msra.mxu0 0.0
  %1814 = vmatprep.subr.mxu0 0.0
  %1815 = vmatpush1.msra.mxu0 0.0
  %1816 = vmatprep.subr.mxu0 0.0
  %1817 = vmatpush1.msra.mxu0 0.0
  %1818 = vmatprep.subr.mxu0 0.0
  %1819 = vmatpush1.msra.mxu0 0.0
  %1820 = vmatprep.subr.mxu0 0.0
  %1821 = vmatpush1.msra.mxu0 0.0
  %1822 = vmatprep.subr.mxu0 0.0
  %1823 = vmatpush1.msra.mxu0 0.0
  %1824 = vmatprep.subr.mxu0 0.0
  %1825 = vmatpush1.msra.mxu0 0.0
  %1826 = vmatprep.subr.mxu0 0.0
  %1827 = vmatpush1.msra.mxu0 0.0
  %1828 = vmatprep.subr.mxu0 0.0
  %1829 = vmatpush1.msra.mxu0 0.0
  %1830 = vmatprep.subr.mxu0 0.0
  %1831 = vmatpush1.msra.mxu0 0.0
  %1832 = vmatprep.subr.mxu0 0.0
  %1833 = vmatpush1.msra.mxu0 0.0
  %1834 = vmatprep.subr.mxu0 0.0
  %1835 = vmatpush1.msra.mxu0 0.0
  %1836 = vmatprep.subr.mxu0 0.0
  %1837 = vmatpush1.msra.mxu0 0.0
  %1838 = vmatprep.subr.mxu0 0.0
  %1839 = vmatpush1.msra.mxu0 0.0
  %1840 = vmatprep.subr.mxu0 0.0
  %1841 = vmatpush1.msra.mxu0 0.0
  %1842 = vmatprep.subr.mxu0 0.0
  %1843 = vmatpush1.msra.mxu0 0.0
  %1844 = vmatprep.subr.mxu0 0.0
  %1845 = vmatpush1.msra.mxu0 0.0
  %1846 = vmatprep.subr.mxu0 0.0
  %1847 = vmatpush1.msra.mxu0 0.0
  %1848 = vmatprep.subr.mxu0 0.0
  %1849 = vmatpush1.msra.mxu0 0.0
  %1850 = vmatprep.mubr.f32.mxu0 0.0
  %v1851 = vand.u32 %v1606, 4294901760
  %v1852 = vsub.f32 %v1606, %v1851
  %1853 = vmatmul.mubr.f32.gmra.mrb[0].mxu0 %v1852
  %v1854 = vpop.f32.mrb[0].mxu0
  %v1855 = vadd.f32 %v1775, %v1854
  %v1856 = vpop.f32.mrb[0].mxu0
  %1857 = vdwg.mxu0
  %1858 = vmatprep.subr.mxu0 0.0
  %v1859 = vand.u32 %v19, 4294901760
  %1860 = vmatpush1.msra.mxu0 %v1859
  %1861 = vmatprep.subr.mxu0 0.0
  %v1862 = vand.u32 %v20, 4294901760
  %1863 = vmatpush1.msra.mxu0 %v1862
  %1864 = vmatprep.subr.mxu0 0.0
  %v1865 = vand.u32 %v21, 4294901760
  %1866 = vmatpush1.msra.mxu0 %v1865
  %1867 = vmatprep.subr.mxu0 0.0
  %v1868 = vand.u32 %v22, 4294901760
  %1869 = vmatpush1.msra.mxu0 %v1868
  %1870 = vmatprep.subr.mxu0 0.0
  %1871 = vmatpush1.msra.mxu0 0.0
  %1872 = vmatprep.subr.mxu0 0.0
  %1873 = vmatpush1.msra.mxu0 0.0
  %1874 = vmatprep.subr.mxu0 0.0
  %1875 = vmatpush1.msra.mxu0 0.0
  %1876 = vmatprep.subr.mxu0 0.0
  %1877 = vmatpush1.msra.mxu0 0.0
  %1878 = vmatprep.subr.mxu0 0.0
  %1879 = vmatpush1.msra.mxu0 0.0
  %1880 = vmatprep.subr.mxu0 0.0
  %1881 = vmatpush1.msra.mxu0 0.0
  %1882 = vmatprep.subr.mxu0 0.0
  %1883 = vmatpush1.msra.mxu0 0.0
  %1884 = vmatprep.subr.mxu0 0.0
  %1885 = vmatpush1.msra.mxu0 0.0
  %1886 = vmatprep.subr.mxu0 0.0
  %1887 = vmatpush1.msra.mxu0 0.0
  %1888 = vmatprep.subr.mxu0 0.0
  %1889 = vmatpush1.msra.mxu0 0.0
  %1890 = vmatprep.subr.mxu0 0.0
  %1891 = vmatpush1.msra.mxu0 0.0
  %1892 = vmatprep.subr.mxu0 0.0
  %1893 = vmatpush1.msra.mxu0 0.0
  %1894 = vmatprep.subr.mxu0 0.0
  %1895 = vmatpush1.msra.mxu0 0.0
  %1896 = vmatprep.subr.mxu0 0.0
  %1897 = vmatpush1.msra.mxu0 0.0
  %1898 = vmatprep.subr.mxu0 0.0
  %1899 = vmatpush1.msra.mxu0 0.0
  %1900 = vmatprep.subr.mxu0 0.0
  %1901 = vmatpush1.msra.mxu0 0.0
  %1902 = vmatprep.subr.mxu0 0.0
  %1903 = vmatpush1.msra.mxu0 0.0
  %1904 = vmatprep.subr.mxu0 0.0
  %1905 = vmatpush1.msra.mxu0 0.0
  %1906 = vmatprep.subr.mxu0 0.0
  %1907 = vmatpush1.msra.mxu0 0.0
  %1908 = vmatprep.subr.mxu0 0.0
  %1909 = vmatpush1.msra.mxu0 0.0
  %1910 = vmatprep.subr.mxu0 0.0
  %1911 = vmatpush1.msra.mxu0 0.0
  %1912 = vmatprep.subr.mxu0 0.0
  %1913 = vmatpush1.msra.mxu0 0.0
  %1914 = vmatprep.subr.mxu0 0.0
  %1915 = vmatpush1.msra.mxu0 0.0
  %1916 = vmatprep.subr.mxu0 0.0
  %1917 = vmatpush1.msra.mxu0 0.0
  %1918 = vmatprep.subr.mxu0 0.0
  %1919 = vmatpush1.msra.mxu0 0.0
  %1920 = vmatprep.subr.mxu0 0.0
  %1921 = vmatpush1.msra.mxu0 0.0
  %1922 = vmatprep.subr.mxu0 0.0
  %1923 = vmatpush1.msra.mxu0 0.0
  %1924 = vmatprep.subr.mxu0 0.0
  %1925 = vmatpush1.msra.mxu0 0.0
  %1926 = vmatprep.mubr.f32.mxu0 0.0
  %v1927 = vand.u32 %v1606, 4294901760
  %v1928 = vsub.f32 %v1606, %v1927
  %v1929 = vand.u32 %v1928, 4294901760
  %1930 = vmatmul.mubr.f32.gmra.mrb[0].mxu0 %v1929
  %v1931 = vpop.f32.mrb[0].mxu0
  %v1932 = vadd.f32 %v1855, %v1931
  %v1933 = vpop.f32.mrb[0].mxu0
  %1934 = vdwg.mxu0
  %1935 = vmatprep.subr.mxu0 0.0
  %v1936 = vand.u32 %v19, 4294901760
  %v1937 = vsub.f32 %v19, %v1936
  %v1938 = vand.u32 %v1937, 4294901760
  %1939 = vmatpush1.msra.mxu0 %v1938
  %1940 = vmatprep.subr.mxu0 0.0
  %v1941 = vand.u32 %v20, 4294901760
  %v1942 = vsub.f32 %v20, %v1941
  %v1943 = vand.u32 %v1942, 4294901760
  %1944 = vmatpush1.msra.mxu0 %v1943
  %1945 = vmatprep.subr.mxu0 0.0
  %v1946 = vand.u32 %v21, 4294901760
  %v1947 = vsub.f32 %v21, %v1946
  %v1948 = vand.u32 %v1947, 4294901760
  %1949 = vmatpush1.msra.mxu0 %v1948
  %1950 = vmatprep.subr.mxu0 0.0
  %v1951 = vand.u32 %v22, 4294901760
  %v1952 = vsub.f32 %v22, %v1951
  %v1953 = vand.u32 %v1952, 4294901760
  %1954 = vmatpush1.msra.mxu0 %v1953
  %1955 = vmatprep.subr.mxu0 0.0
  %1956 = vmatpush1.msra.mxu0 0.0
  %1957 = vmatprep.subr.mxu0 0.0
  %1958 = vmatpush1.msra.mxu0 0.0
  %1959 = vmatprep.subr.mxu0 0.0
  %1960 = vmatpush1.msra.mxu0 0.0
  %1961 = vmatprep.subr.mxu0 0.0
  %1962 = vmatpush1.msra.mxu0 0.0
  %1963 = vmatprep.subr.mxu0 0.0
  %1964 = vmatpush1.msra.mxu0 0.0
  %1965 = vmatprep.subr.mxu0 0.0
  %1966 = vmatpush1.msra.mxu0 0.0
  %1967 = vmatprep.subr.mxu0 0.0
  %1968 = vmatpush1.msra.mxu0 0.0
  %1969 = vmatprep.subr.mxu0 0.0
  %1970 = vmatpush1.msra.mxu0 0.0
  %1971 = vmatprep.subr.mxu0 0.0
  %1972 = vmatpush1.msra.mxu0 0.0
  %1973 = vmatprep.subr.mxu0 0.0
  %1974 = vmatpush1.msra.mxu0 0.0
  %1975 = vmatprep.subr.mxu0 0.0
  %1976 = vmatpush1.msra.mxu0 0.0
  %1977 = vmatprep.subr.mxu0 0.0
  %1978 = vmatpush1.msra.mxu0 0.0
  %1979 = vmatprep.subr.mxu0 0.0
  %1980 = vmatpush1.msra.mxu0 0.0
  %1981 = vmatprep.subr.mxu0 0.0
  %1982 = vmatpush1.msra.mxu0 0.0
  %1983 = vmatprep.subr.mxu0 0.0
  %1984 = vmatpush1.msra.mxu0 0.0
  %1985 = vmatprep.subr.mxu0 0.0
  %1986 = vmatpush1.msra.mxu0 0.0
  %1987 = vmatprep.subr.mxu0 0.0
  %1988 = vmatpush1.msra.mxu0 0.0
  %1989 = vmatprep.subr.mxu0 0.0
  %1990 = vmatpush1.msra.mxu0 0.0
  %1991 = vmatprep.subr.mxu0 0.0
  %1992 = vmatpush1.msra.mxu0 0.0
  %1993 = vmatprep.subr.mxu0 0.0
  %1994 = vmatpush1.msra.mxu0 0.0
  %1995 = vmatprep.subr.mxu0 0.0
  %1996 = vmatpush1.msra.mxu0 0.0
  %1997 = vmatprep.subr.mxu0 0.0
  %1998 = vmatpush1.msra.mxu0 0.0
  %1999 = vmatprep.subr.mxu0 0.0
  %2000 = vmatpush1.msra.mxu0 0.0
  %2001 = vmatprep.subr.mxu0 0.0
  %2002 = vmatpush1.msra.mxu0 0.0
  %2003 = vmatprep.subr.mxu0 0.0
  %2004 = vmatpush1.msra.mxu0 0.0
  %2005 = vmatprep.subr.mxu0 0.0
  %2006 = vmatpush1.msra.mxu0 0.0
  %2007 = vmatprep.subr.mxu0 0.0
  %2008 = vmatpush1.msra.mxu0 0.0
  %2009 = vmatprep.subr.mxu0 0.0
  %2010 = vmatpush1.msra.mxu0 0.0
  %2011 = vmatprep.mubr.f32.mxu0 0.0
  %v2012 = vand.u32 %v1606, 4294901760
  %2013 = vmatmul.mubr.f32.gmra.mrb[0].mxu0 %v2012
  %v2014 = vpop.f32.mrb[0].mxu0
  %v2015 = vadd.f32 %v1932, %v2014
  %v2016 = vpop.f32.mrb[0].mxu0
  %2017 = vdwg.mxu0
  %2018 = vmatprep.subr.mxu0 0.0
  %v2019 = vand.u32 %v19, 4294901760
  %2020 = vmatpush1.msra.mxu0 %v2019
  %2021 = vmatprep.subr.mxu0 0.0
  %v2022 = vand.u32 %v20, 4294901760
  %2023 = vmatpush1.msra.mxu0 %v2022
  %2024 = vmatprep.subr.mxu0 0.0
  %v2025 = vand.u32 %v21, 4294901760
  %2026 = vmatpush1.msra.mxu0 %v2025
  %2027 = vmatprep.subr.mxu0 0.0
  %v2028 = vand.u32 %v22, 4294901760
  %2029 = vmatpush1.msra.mxu0 %v2028
  %2030 = vmatprep.subr.mxu0 0.0
  %2031 = vmatpush1.msra.mxu0 0.0
  %2032 = vmatprep.subr.mxu0 0.0
  %2033 = vmatpush1.msra.mxu0 0.0
  %2034 = vmatprep.subr.mxu0 0.0
  %2035 = vmatpush1.msra.mxu0 0.0
  %2036 = vmatprep.subr.mxu0 0.0
  %2037 = vmatpush1.msra.mxu0 0.0
  %2038 = vmatprep.subr.mxu0 0.0
  %2039 = vmatpush1.msra.mxu0 0.0
  %2040 = vmatprep.subr.mxu0 0.0
  %2041 = vmatpush1.msra.mxu0 0.0
  %2042 = vmatprep.subr.mxu0 0.0
  %2043 = vmatpush1.msra.mxu0 0.0
  %2044 = vmatprep.subr.mxu0 0.0
  %2045 = vmatpush1.msra.mxu0 0.0
  %2046 = vmatprep.subr.mxu0 0.0
  %2047 = vmatpush1.msra.mxu0 0.0
  %2048 = vmatprep.subr.mxu0 0.0
  %2049 = vmatpush1.msra.mxu0 0.0
  %2050 = vmatprep.subr.mxu0 0.0
  %2051 = vmatpush1.msra.mxu0 0.0
  %2052 = vmatprep.subr.mxu0 0.0
  %2053 = vmatpush1.msra.mxu0 0.0
  %2054 = vmatprep.subr.mxu0 0.0
  %2055 = vmatpush1.msra.mxu0 0.0
  %2056 = vmatprep.subr.mxu0 0.0
  %2057 = vmatpush1.msra.mxu0 0.0
  %2058 = vmatprep.subr.mxu0 0.0
  %2059 = vmatpush1.msra.mxu0 0.0
  %2060 = vmatprep.subr.mxu0 0.0
  %2061 = vmatpush1.msra.mxu0 0.0
  %2062 = vmatprep.subr.mxu0 0.0
  %2063 = vmatpush1.msra.mxu0 0.0
  %2064 = vmatprep.subr.mxu0 0.0
  %2065 = vmatpush1.msra.mxu0 0.0
  %2066 = vmatprep.subr.mxu0 0.0
  %2067 = vmatpush1.msra.mxu0 0.0
  %2068 = vmatprep.subr.mxu0 0.0
  %2069 = vmatpush1.msra.mxu0 0.0
  %2070 = vmatprep.subr.mxu0 0.0
  %2071 = vmatpush1.msra.mxu0 0.0
  %2072 = vmatprep.subr.mxu0 0.0
  %2073 = vmatpush1.msra.mxu0 0.0
  %2074 = vmatprep.subr.mxu0 0.0
  %2075 = vmatpush1.msra.mxu0 0.0
  %2076 = vmatprep.subr.mxu0 0.0
  %2077 = vmatpush1.msra.mxu0 0.0
  %2078 = vmatprep.subr.mxu0 0.0
  %2079 = vmatpush1.msra.mxu0 0.0
  %2080 = vmatprep.subr.mxu0 0.0
  %2081 = vmatpush1.msra.mxu0 0.0
  %2082 = vmatprep.subr.mxu0 0.0
  %2083 = vmatpush1.msra.mxu0 0.0
  %2084 = vmatprep.subr.mxu0 0.0
  %2085 = vmatpush1.msra.mxu0 0.0
  %2086 = vmatprep.mubr.f32.mxu0 0.0
  %v2087 = vand.u32 %v1606, 4294901760
  %2088 = vmatmul.mubr.f32.gmra.mrb[0].mxu0 %v2087
  %v2089 = vpop.f32.mrb[0].mxu0
  %v2090 = vadd.f32 %v2015, %v2089
  %v2091 = vpop.f32.mrb[0].mxu0
  %2092 = vdwg.mxu0
  %v2093 = vadd.f32 %v1602, %v2090
  %v2094 = vxor.u32 %v2093, 2147483648
  %v2095 = vmul.f32 %v2094, 1.442695
  %v2096 = vpow.pop %v2095
  %v2097 = vadd.f32 %v2096, 1.0
  %v2098 = vrcp.pop %v2097
  %v2099 = vmul.f32 1.0, %v2098
  %v2100 = vadd.f32 %v2090, %v528
  %2102 = vrot.lane.b32.xlu0 %v2100, 64
  %v2103 = vpop.permute.xlu0 %2102
  %v2105 = vmul.f32 %v2099, %v2103
  %2107 = vrot.lane.b32.xlu0 %v2105, 64
  %v2108 = vpop.permute.xlu0 %2107
  %v2110 = vadd.f32 %v1602, %v2108
  %v2111 = vtanh.pop %v2110
  %v2112 = vsub.f32 %v1600, %v2111
  %2114 = vrot.lane.b32.xlu0 %v2112, 96
  %v2115 = vpop.permute.xlu0 %2114
  %v2117 = vmul.f32 %v2099, %v2115
  %2119 = vrot.lane.b32.xlu0 %v2117, 32
  %v2120 = vpop.permute.xlu0 %2119
  %v2122 = vadd.f32 %v2111, %v2120
  %2124 = vrot.lane.b32.xlu0 %v1078, 96
  %v2125 = vpop.permute.xlu0 %2124
  %2128 = vrot.lane.b32.xlu0 %v2122, 32
  %v2129 = vpop.permute.xlu0 %2128
  %v2131 = vsel %vm31, %v561, %v2125
  %vm2132 = vcmask 523264
  %v2133 = vsel %vm2132, %v2131, %v1600
  %vm2134 = vcmask 785408
  %v2135 = vsel %vm2134, %v2133, %v2129
  %2136 = vst [vmem:[%s4] sm:$0xff] %v2135
  %s2137 = scalar_lea.vmem %s0, 32
  %v2138 = vld [vmem:[%s2137] sm:$0xff]
  %2139 = vrot.lane.b32.xlu0 %v2122, 64
  %v2140 = vpop.permute.xlu0 %2139
  %v2141 = vsel %vm31, %v2140, 0
  %2143 = vmatprep.subr.mxu0 0.0
  %v2144 = vand.u32 %v19, 4294901760
  %2145 = vmatpush1.msra.mxu0 %v2144
  %2146 = vmatprep.subr.mxu0 0.0
  %v2147 = vand.u32 %v20, 4294901760
  %2148 = vmatpush1.msra.mxu0 %v2147
  %2149 = vmatprep.subr.mxu0 0.0
  %v2150 = vand.u32 %v21, 4294901760
  %2151 = vmatpush1.msra.mxu0 %v2150
  %2152 = vmatprep.subr.mxu0 0.0
  %v2153 = vand.u32 %v22, 4294901760
  %2154 = vmatpush1.msra.mxu0 %v2153
  %2155 = vmatprep.subr.mxu0 0.0
  %2156 = vmatpush1.msra.mxu0 0.0
  %2157 = vmatprep.subr.mxu0 0.0
  %2158 = vmatpush1.msra.mxu0 0.0
  %2159 = vmatprep.subr.mxu0 0.0
  %2160 = vmatpush1.msra.mxu0 0.0
  %2161 = vmatprep.subr.mxu0 0.0
  %2162 = vmatpush1.msra.mxu0 0.0
  %2163 = vmatprep.subr.mxu0 0.0
  %2164 = vmatpush1.msra.mxu0 0.0
  %2165 = vmatprep.subr.mxu0 0.0
  %2166 = vmatpush1.msra.mxu0 0.0
  %2167 = vmatprep.subr.mxu0 0.0
  %2168 = vmatpush1.msra.mxu0 0.0
  %2169 = vmatprep.subr.mxu0 0.0
  %2170 = vmatpush1.msra.mxu0 0.0
  %2171 = vmatprep.subr.mxu0 0.0
  %2172 = vmatpush1.msra.mxu0 0.0
  %2173 = vmatprep.subr.mxu0 0.0
  %2174 = vmatpush1.msra.mxu0 0.0
  %2175 = vmatprep.subr.mxu0 0.0
  %2176 = vmatpush1.msra.mxu0 0.0
  %2177 = vmatprep.subr.mxu0 0.0
  %2178 = vmatpush1.msra.mxu0 0.0
  %2179 = vmatprep.subr.mxu0 0.0
  %2180 = vmatpush1.msra.mxu0 0.0
  %2181 = vmatprep.subr.mxu0 0.0
  %2182 = vmatpush1.msra.mxu0 0.0
  %2183 = vmatprep.subr.mxu0 0.0
  %2184 = vmatpush1.msra.mxu0 0.0
  %2185 = vmatprep.subr.mxu0 0.0
  %2186 = vmatpush1.msra.mxu0 0.0
  %2187 = vmatprep.subr.mxu0 0.0
  %2188 = vmatpush1.msra.mxu0 0.0
  %2189 = vmatprep.subr.mxu0 0.0
  %2190 = vmatpush1.msra.mxu0 0.0
  %2191 = vmatprep.subr.mxu0 0.0
  %2192 = vmatpush1.msra.mxu0 0.0
  %2193 = vmatprep.subr.mxu0 0.0
  %2194 = vmatpush1.msra.mxu0 0.0
  %2195 = vmatprep.subr.mxu0 0.0
  %2196 = vmatpush1.msra.mxu0 0.0
  %2197 = vmatprep.subr.mxu0 0.0
  %2198 = vmatpush1.msra.mxu0 0.0
  %2199 = vmatprep.subr.mxu0 0.0
  %2200 = vmatpush1.msra.mxu0 0.0
  %2201 = vmatprep.subr.mxu0 0.0
  %2202 = vmatpush1.msra.mxu0 0.0
  %2203 = vmatprep.subr.mxu0 0.0
  %2204 = vmatpush1.msra.mxu0 0.0
  %2205 = vmatprep.subr.mxu0 0.0
  %2206 = vmatpush1.msra.mxu0 0.0
  %2207 = vmatprep.subr.mxu0 0.0
  %2208 = vmatpush1.msra.mxu0 0.0
  %2209 = vmatprep.subr.mxu0 0.0
  %2210 = vmatpush1.msra.mxu0 0.0
  %2211 = vmatprep.mubr.f32.mxu0 0.0
  %v2212 = vand.u32 %v2141, 4294901760
  %v2213 = vsub.f32 %v2141, %v2212
  %v2214 = vand.u32 %v2213, 4294901760
  %v2215 = vsub.f32 %v2213, %v2214
  %v2216 = vand.u32 %v2215, 4294901760
  %2217 = vmatmul.mubr.f32.gmra.mrb[0].mxu0 %v2216
  %v2218 = vpop.f32.mrb[0].mxu0
  %v2219 = vadd.f32 0.0, %v2218
  %v2220 = vpop.f32.mrb[0].mxu0
  %2221 = vdwg.mxu0
  %2222 = vmatprep.subr.mxu0 0.0
  %v2223 = vand.u32 %v19, 4294901760
  %v2224 = vsub.f32 %v19, %v2223
  %v2225 = vand.u32 %v2224, 4294901760
  %v2226 = vsub.f32 %v2224, %v2225
  %v2227 = vand.u32 %v2226, 4294901760
  %2228 = vmatpush1.msra.mxu0 %v2227
  %2229 = vmatprep.subr.mxu0 0.0
  %v2230 = vand.u32 %v20, 4294901760
  %v2231 = vsub.f32 %v20, %v2230
  %v2232 = vand.u32 %v2231, 4294901760
  %v2233 = vsub.f32 %v2231, %v2232
  %v2234 = vand.u32 %v2233, 4294901760
  %2235 = vmatpush1.msra.mxu0 %v2234
  %2236 = vmatprep.subr.mxu0 0.0
  %v2237 = vand.u32 %v21, 4294901760
  %v2238 = vsub.f32 %v21, %v2237
  %v2239 = vand.u32 %v2238, 4294901760
  %v2240 = vsub.f32 %v2238, %v2239
  %v2241 = vand.u32 %v2240, 4294901760
  %2242 = vmatpush1.msra.mxu0 %v2241
  %2243 = vmatprep.subr.mxu0 0.0
  %v2244 = vand.u32 %v22, 4294901760
  %v2245 = vsub.f32 %v22, %v2244
  %v2246 = vand.u32 %v2245, 4294901760
  %v2247 = vsub.f32 %v2245, %v2246
  %v2248 = vand.u32 %v2247, 4294901760
  %2249 = vmatpush1.msra.mxu0 %v2248
  %2250 = vmatprep.subr.mxu0 0.0
  %2251 = vmatpush1.msra.mxu0 0.0
  %2252 = vmatprep.subr.mxu0 0.0
  %2253 = vmatpush1.msra.mxu0 0.0
  %2254 = vmatprep.subr.mxu0 0.0
  %2255 = vmatpush1.msra.mxu0 0.0
  %2256 = vmatprep.subr.mxu0 0.0
  %2257 = vmatpush1.msra.mxu0 0.0
  %2258 = vmatprep.subr.mxu0 0.0
  %2259 = vmatpush1.msra.mxu0 0.0
  %2260 = vmatprep.subr.mxu0 0.0
  %2261 = vmatpush1.msra.mxu0 0.0
  %2262 = vmatprep.subr.mxu0 0.0
  %2263 = vmatpush1.msra.mxu0 0.0
  %2264 = vmatprep.subr.mxu0 0.0
  %2265 = vmatpush1.msra.mxu0 0.0
  %2266 = vmatprep.subr.mxu0 0.0
  %2267 = vmatpush1.msra.mxu0 0.0
  %2268 = vmatprep.subr.mxu0 0.0
  %2269 = vmatpush1.msra.mxu0 0.0
  %2270 = vmatprep.subr.mxu0 0.0
  %2271 = vmatpush1.msra.mxu0 0.0
  %2272 = vmatprep.subr.mxu0 0.0
  %2273 = vmatpush1.msra.mxu0 0.0
  %2274 = vmatprep.subr.mxu0 0.0
  %2275 = vmatpush1.msra.mxu0 0.0
  %2276 = vmatprep.subr.mxu0 0.0
  %2277 = vmatpush1.msra.mxu0 0.0
  %2278 = vmatprep.subr.mxu0 0.0
  %2279 = vmatpush1.msra.mxu0 0.0
  %2280 = vmatprep.subr.mxu0 0.0
  %2281 = vmatpush1.msra.mxu0 0.0
  %2282 = vmatprep.subr.mxu0 0.0
  %2283 = vmatpush1.msra.mxu0 0.0
  %2284 = vmatprep.subr.mxu0 0.0
  %2285 = vmatpush1.msra.mxu0 0.0
  %2286 = vmatprep.subr.mxu0 0.0
  %2287 = vmatpush1.msra.mxu0 0.0
  %2288 = vmatprep.subr.mxu0 0.0
  %2289 = vmatpush1.msra.mxu0 0.0
  %2290 = vmatprep.subr.mxu0 0.0
  %2291 = vmatpush1.msra.mxu0 0.0
  %2292 = vmatprep.subr.mxu0 0.0
  %2293 = vmatpush1.msra.mxu0 0.0
  %2294 = vmatprep.subr.mxu0 0.0
  %2295 = vmatpush1.msra.mxu0 0.0
  %2296 = vmatprep.subr.mxu0 0.0
  %2297 = vmatpush1.msra.mxu0 0.0
  %2298 = vmatprep.subr.mxu0 0.0
  %2299 = vmatpush1.msra.mxu0 0.0
  %2300 = vmatprep.subr.mxu0 0.0
  %2301 = vmatpush1.msra.mxu0 0.0
  %2302 = vmatprep.subr.mxu0 0.0
  %2303 = vmatpush1.msra.mxu0 0.0
  %2304 = vmatprep.subr.mxu0 0.0
  %2305 = vmatpush1.msra.mxu0 0.0
  %2306 = vmatprep.mubr.f32.mxu0 0.0
  %v2307 = vand.u32 %v2141, 4294901760
  %2308 = vmatmul.mubr.f32.gmra.mrb[0].mxu0 %v2307
  %v2309 = vpop.f32.mrb[0].mxu0
  %v2310 = vadd.f32 %v2219, %v2309
  %v2311 = vpop.f32.mrb[0].mxu0
  %2312 = vdwg.mxu0
  %2313 = vmatprep.subr.mxu0 0.0
  %v2314 = vand.u32 %v19, 4294901760
  %v2315 = vsub.f32 %v19, %v2314
  %2316 = vmatpush1.msra.mxu0 %v2315
  %2317 = vmatprep.subr.mxu0 0.0
  %v2318 = vand.u32 %v20, 4294901760
  %v2319 = vsub.f32 %v20, %v2318
  %2320 = vmatpush1.msra.mxu0 %v2319
  %2321 = vmatprep.subr.mxu0 0.0
  %v2322 = vand.u32 %v21, 4294901760
  %v2323 = vsub.f32 %v21, %v2322
  %2324 = vmatpush1.msra.mxu0 %v2323
  %2325 = vmatprep.subr.mxu0 0.0
  %v2326 = vand.u32 %v22, 4294901760
  %v2327 = vsub.f32 %v22, %v2326
  %2328 = vmatpush1.msra.mxu0 %v2327
  %2329 = vmatprep.subr.mxu0 0.0
  %2330 = vmatpush1.msra.mxu0 0.0
  %2331 = vmatprep.subr.mxu0 0.0
  %2332 = vmatpush1.msra.mxu0 0.0
  %2333 = vmatprep.subr.mxu0 0.0
  %2334 = vmatpush1.msra.mxu0 0.0
  %2335 = vmatprep.subr.mxu0 0.0
  %2336 = vmatpush1.msra.mxu0 0.0
  %2337 = vmatprep.subr.mxu0 0.0
  %2338 = vmatpush1.msra.mxu0 0.0
  %2339 = vmatprep.subr.mxu0 0.0
  %2340 = vmatpush1.msra.mxu0 0.0
  %2341 = vmatprep.subr.mxu0 0.0
  %2342 = vmatpush1.msra.mxu0 0.0
  %2343 = vmatprep.subr.mxu0 0.0
  %2344 = vmatpush1.msra.mxu0 0.0
  %2345 = vmatprep.subr.mxu0 0.0
  %2346 = vmatpush1.msra.mxu0 0.0
  %2347 = vmatprep.subr.mxu0 0.0
  %2348 = vmatpush1.msra.mxu0 0.0
  %2349 = vmatprep.subr.mxu0 0.0
  %2350 = vmatpush1.msra.mxu0 0.0
  %2351 = vmatprep.subr.mxu0 0.0
  %2352 = vmatpush1.msra.mxu0 0.0
  %2353 = vmatprep.subr.mxu0 0.0
  %2354 = vmatpush1.msra.mxu0 0.0
  %2355 = vmatprep.subr.mxu0 0.0
  %2356 = vmatpush1.msra.mxu0 0.0
  %2357 = vmatprep.subr.mxu0 0.0
  %2358 = vmatpush1.msra.mxu0 0.0
  %2359 = vmatprep.subr.mxu0 0.0
  %2360 = vmatpush1.msra.mxu0 0.0
  %2361 = vmatprep.subr.mxu0 0.0
  %2362 = vmatpush1.msra.mxu0 0.0
  %2363 = vmatprep.subr.mxu0 0.0
  %2364 = vmatpush1.msra.mxu0 0.0
  %2365 = vmatprep.subr.mxu0 0.0
  %2366 = vmatpush1.msra.mxu0 0.0
  %2367 = vmatprep.subr.mxu0 0.0
  %2368 = vmatpush1.msra.mxu0 0.0
  %2369 = vmatprep.subr.mxu0 0.0
  %2370 = vmatpush1.msra.mxu0 0.0
  %2371 = vmatprep.subr.mxu0 0.0
  %2372 = vmatpush1.msra.mxu0 0.0
  %2373 = vmatprep.subr.mxu0 0.0
  %2374 = vmatpush1.msra.mxu0 0.0
  %2375 = vmatprep.subr.mxu0 0.0
  %2376 = vmatpush1.msra.mxu0 0.0
  %2377 = vmatprep.subr.mxu0 0.0
  %2378 = vmatpush1.msra.mxu0 0.0
  %2379 = vmatprep.subr.mxu0 0.0
  %2380 = vmatpush1.msra.mxu0 0.0
  %2381 = vmatprep.subr.mxu0 0.0
  %2382 = vmatpush1.msra.mxu0 0.0
  %2383 = vmatprep.subr.mxu0 0.0
  %2384 = vmatpush1.msra.mxu0 0.0
  %2385 = vmatprep.mubr.f32.mxu0 0.0
  %v2386 = vand.u32 %v2141, 4294901760
  %v2387 = vsub.f32 %v2141, %v2386
  %2388 = vmatmul.mubr.f32.gmra.mrb[0].mxu0 %v2387
  %v2389 = vpop.f32.mrb[0].mxu0
  %v2390 = vadd.f32 %v2310, %v2389
  %v2391 = vpop.f32.mrb[0].mxu0
  %2392 = vdwg.mxu0
  %2393 = vmatprep.subr.mxu0 0.0
  %v2394 = vand.u32 %v19, 4294901760
  %2395 = vmatpush1.msra.mxu0 %v2394
  %2396 = vmatprep.subr.mxu0 0.0
  %v2397 = vand.u32 %v20, 4294901760
  %2398 = vmatpush1.msra.mxu0 %v2397
  %2399 = vmatprep.subr.mxu0 0.0
  %v2400 = vand.u32 %v21, 4294901760
  %2401 = vmatpush1.msra.mxu0 %v2400
  %2402 = vmatprep.subr.mxu0 0.0
  %v2403 = vand.u32 %v22, 4294901760
  %2404 = vmatpush1.msra.mxu0 %v2403
  %2405 = vmatprep.subr.mxu0 0.0
  %2406 = vmatpush1.msra.mxu0 0.0
  %2407 = vmatprep.subr.mxu0 0.0
  %2408 = vmatpush1.msra.mxu0 0.0
  %2409 = vmatprep.subr.mxu0 0.0
  %2410 = vmatpush1.msra.mxu0 0.0
  %2411 = vmatprep.subr.mxu0 0.0
  %2412 = vmatpush1.msra.mxu0 0.0
  %2413 = vmatprep.subr.mxu0 0.0
  %2414 = vmatpush1.msra.mxu0 0.0
  %2415 = vmatprep.subr.mxu0 0.0
  %2416 = vmatpush1.msra.mxu0 0.0
  %2417 = vmatprep.subr.mxu0 0.0
  %2418 = vmatpush1.msra.mxu0 0.0
  %2419 = vmatprep.subr.mxu0 0.0
  %2420 = vmatpush1.msra.mxu0 0.0
  %2421 = vmatprep.subr.mxu0 0.0
  %2422 = vmatpush1.msra.mxu0 0.0
  %2423 = vmatprep.subr.mxu0 0.0
  %2424 = vmatpush1.msra.mxu0 0.0
  %2425 = vmatprep.subr.mxu0 0.0
  %2426 = vmatpush1.msra.mxu0 0.0
  %2427 = vmatprep.subr.mxu0 0.0
  %2428 = vmatpush1.msra.mxu0 0.0
  %2429 = vmatprep.subr.mxu0 0.0
  %2430 = vmatpush1.msra.mxu0 0.0
  %2431 = vmatprep.subr.mxu0 0.0
  %2432 = vmatpush1.msra.mxu0 0.0
  %2433 = vmatprep.subr.mxu0 0.0
  %2434 = vmatpush1.msra.mxu0 0.0
  %2435 = vmatprep.subr.mxu0 0.0
  %2436 = vmatpush1.msra.mxu0 0.0
  %2437 = vmatprep.subr.mxu0 0.0
  %2438 = vmatpush1.msra.mxu0 0.0
  %2439 = vmatprep.subr.mxu0 0.0
  %2440 = vmatpush1.msra.mxu0 0.0
  %2441 = vmatprep.subr.mxu0 0.0
  %2442 = vmatpush1.msra.mxu0 0.0
  %2443 = vmatprep.subr.mxu0 0.0
  %2444 = vmatpush1.msra.mxu0 0.0
  %2445 = vmatprep.subr.mxu0 0.0
  %2446 = vmatpush1.msra.mxu0 0.0
  %2447 = vmatprep.subr.mxu0 0.0
  %2448 = vmatpush1.msra.mxu0 0.0
  %2449 = vmatprep.subr.mxu0 0.0
  %2450 = vmatpush1.msra.mxu0 0.0
  %2451 = vmatprep.subr.mxu0 0.0
  %2452 = vmatpush1.msra.mxu0 0.0
  %2453 = vmatprep.subr.mxu0 0.0
  %2454 = vmatpush1.msra.mxu0 0.0
  %2455 = vmatprep.subr.mxu0 0.0
  %2456 = vmatpush1.msra.mxu0 0.0
  %2457 = vmatprep.subr.mxu0 0.0
  %2458 = vmatpush1.msra.mxu0 0.0
  %2459 = vmatprep.subr.mxu0 0.0
  %2460 = vmatpush1.msra.mxu0 0.0
  %2461 = vmatprep.mubr.f32.mxu0 0.0
  %v2462 = vand.u32 %v2141, 4294901760
  %v2463 = vsub.f32 %v2141, %v2462
  %v2464 = vand.u32 %v2463, 4294901760
  %2465 = vmatmul.mubr.f32.gmra.mrb[0].mxu0 %v2464
  %v2466 = vpop.f32.mrb[0].mxu0
  %v2467 = vadd.f32 %v2390, %v2466
  %v2468 = vpop.f32.mrb[0].mxu0
  %2469 = vdwg.mxu0
  %2470 = vmatprep.subr.mxu0 0.0
  %v2471 = vand.u32 %v19, 4294901760
  %v2472 = vsub.f32 %v19, %v2471
  %v2473 = vand.u32 %v2472, 4294901760
  %2474 = vmatpush1.msra.mxu0 %v2473
  %2475 = vmatprep.subr.mxu0 0.0
  %v2476 = vand.u32 %v20, 4294901760
  %v2477 = vsub.f32 %v20, %v2476
  %v2478 = vand.u32 %v2477, 4294901760
  %2479 = vmatpush1.msra.mxu0 %v2478
  %2480 = vmatprep.subr.mxu0 0.0
  %v2481 = vand.u32 %v21, 4294901760
  %v2482 = vsub.f32 %v21, %v2481
  %v2483 = vand.u32 %v2482, 4294901760
  %2484 = vmatpush1.msra.mxu0 %v2483
  %2485 = vmatprep.subr.mxu0 0.0
  %v2486 = vand.u32 %v22, 4294901760
  %v2487 = vsub.f32 %v22, %v2486
  %v2488 = vand.u32 %v2487, 4294901760
  %2489 = vmatpush1.msra.mxu0 %v2488
  %2490 = vmatprep.subr.mxu0 0.0
  %2491 = vmatpush1.msra.mxu0 0.0
  %2492 = vmatprep.subr.mxu0 0.0
  %2493 = vmatpush1.msra.mxu0 0.0
  %2494 = vmatprep.subr.mxu0 0.0
  %2495 = vmatpush1.msra.mxu0 0.0
  %2496 = vmatprep.subr.mxu0 0.0
  %2497 = vmatpush1.msra.mxu0 0.0
  %2498 = vmatprep.subr.mxu0 0.0
  %2499 = vmatpush1.msra.mxu0 0.0
  %2500 = vmatprep.subr.mxu0 0.0
  %2501 = vmatpush1.msra.mxu0 0.0
  %2502 = vmatprep.subr.mxu0 0.0
  %2503 = vmatpush1.msra.mxu0 0.0
  %2504 = vmatprep.subr.mxu0 0.0
  %2505 = vmatpush1.msra.mxu0 0.0
  %2506 = vmatprep.subr.mxu0 0.0
  %2507 = vmatpush1.msra.mxu0 0.0
  %2508 = vmatprep.subr.mxu0 0.0
  %2509 = vmatpush1.msra.mxu0 0.0
  %2510 = vmatprep.subr.mxu0 0.0
  %2511 = vmatpush1.msra.mxu0 0.0
  %2512 = vmatprep.subr.mxu0 0.0
  %2513 = vmatpush1.msra.mxu0 0.0
  %2514 = vmatprep.subr.mxu0 0.0
  %2515 = vmatpush1.msra.mxu0 0.0
  %2516 = vmatprep.subr.mxu0 0.0
  %2517 = vmatpush1.msra.mxu0 0.0
  %2518 = vmatprep.subr.mxu0 0.0
  %2519 = vmatpush1.msra.mxu0 0.0
  %2520 = vmatprep.subr.mxu0 0.0
  %2521 = vmatpush1.msra.mxu0 0.0
  %2522 = vmatprep.subr.mxu0 0.0
  %2523 = vmatpush1.msra.mxu0 0.0
  %2524 = vmatprep.subr.mxu0 0.0
  %2525 = vmatpush1.msra.mxu0 0.0
  %2526 = vmatprep.subr.mxu0 0.0
  %2527 = vmatpush1.msra.mxu0 0.0
  %2528 = vmatprep.subr.mxu0 0.0
  %2529 = vmatpush1.msra.mxu0 0.0
  %2530 = vmatprep.subr.mxu0 0.0
  %2531 = vmatpush1.msra.mxu0 0.0
  %2532 = vmatprep.subr.mxu0 0.0
  %2533 = vmatpush1.msra.mxu0 0.0
  %2534 = vmatprep.subr.mxu0 0.0
  %2535 = vmatpush1.msra.mxu0 0.0
  %2536 = vmatprep.subr.mxu0 0.0
  %2537 = vmatpush1.msra.mxu0 0.0
  %2538 = vmatprep.subr.mxu0 0.0
  %2539 = vmatpush1.msra.mxu0 0.0
  %2540 = vmatprep.subr.mxu0 0.0
  %2541 = vmatpush1.msra.mxu0 0.0
  %2542 = vmatprep.subr.mxu0 0.0
  %2543 = vmatpush1.msra.mxu0 0.0
  %2544 = vmatprep.subr.mxu0 0.0
  %2545 = vmatpush1.msra.mxu0 0.0
  %2546 = vmatprep.mubr.f32.mxu0 0.0
  %v2547 = vand.u32 %v2141, 4294901760
  %2548 = vmatmul.mubr.f32.gmra.mrb[0].mxu0 %v2547
  %v2549 = vpop.f32.mrb[0].mxu0
  %v2550 = vadd.f32 %v2467, %v2549
  %v2551 = vpop.f32.mrb[0].mxu0
  %2552 = vdwg.mxu0
  %2553 = vmatprep.subr.mxu0 0.0
  %v2554 = vand.u32 %v19, 4294901760
  %2555 = vmatpush1.msra.mxu0 %v2554
  %2556 = vmatprep.subr.mxu0 0.0
  %v2557 = vand.u32 %v20, 4294901760
  %2558 = vmatpush1.msra.mxu0 %v2557
  %2559 = vmatprep.subr.mxu0 0.0
  %v2560 = vand.u32 %v21, 4294901760
  %2561 = vmatpush1.msra.mxu0 %v2560
  %2562 = vmatprep.subr.mxu0 0.0
  %v2563 = vand.u32 %v22, 4294901760
  %2564 = vmatpush1.msra.mxu0 %v2563
  %2565 = vmatprep.subr.mxu0 0.0
  %2566 = vmatpush1.msra.mxu0 0.0
  %2567 = vmatprep.subr.mxu0 0.0
  %2568 = vmatpush1.msra.mxu0 0.0
  %2569 = vmatprep.subr.mxu0 0.0
  %2570 = vmatpush1.msra.mxu0 0.0
  %2571 = vmatprep.subr.mxu0 0.0
  %2572 = vmatpush1.msra.mxu0 0.0
  %2573 = vmatprep.subr.mxu0 0.0
  %2574 = vmatpush1.msra.mxu0 0.0
  %2575 = vmatprep.subr.mxu0 0.0
  %2576 = vmatpush1.msra.mxu0 0.0
  %2577 = vmatprep.subr.mxu0 0.0
  %2578 = vmatpush1.msra.mxu0 0.0
  %2579 = vmatprep.subr.mxu0 0.0
  %2580 = vmatpush1.msra.mxu0 0.0
  %2581 = vmatprep.subr.mxu0 0.0
  %2582 = vmatpush1.msra.mxu0 0.0
  %2583 = vmatprep.subr.mxu0 0.0
  %2584 = vmatpush1.msra.mxu0 0.0
  %2585 = vmatprep.subr.mxu0 0.0
  %2586 = vmatpush1.msra.mxu0 0.0
  %2587 = vmatprep.subr.mxu0 0.0
  %2588 = vmatpush1.msra.mxu0 0.0
  %2589 = vmatprep.subr.mxu0 0.0
  %2590 = vmatpush1.msra.mxu0 0.0
  %2591 = vmatprep.subr.mxu0 0.0
  %2592 = vmatpush1.msra.mxu0 0.0
  %2593 = vmatprep.subr.mxu0 0.0
  %2594 = vmatpush1.msra.mxu0 0.0
  %2595 = vmatprep.subr.mxu0 0.0
  %2596 = vmatpush1.msra.mxu0 0.0
  %2597 = vmatprep.subr.mxu0 0.0
  %2598 = vmatpush1.msra.mxu0 0.0
  %2599 = vmatprep.subr.mxu0 0.0
  %2600 = vmatpush1.msra.mxu0 0.0
  %2601 = vmatprep.subr.mxu0 0.0
  %2602 = vmatpush1.msra.mxu0 0.0
  %2603 = vmatprep.subr.mxu0 0.0
  %2604 = vmatpush1.msra.mxu0 0.0
  %2605 = vmatprep.subr.mxu0 0.0
  %2606 = vmatpush1.msra.mxu0 0.0
  %2607 = vmatprep.subr.mxu0 0.0
  %2608 = vmatpush1.msra.mxu0 0.0
  %2609 = vmatprep.subr.mxu0 0.0
  %2610 = vmatpush1.msra.mxu0 0.0
  %2611 = vmatprep.subr.mxu0 0.0
  %2612 = vmatpush1.msra.mxu0 0.0
  %2613 = vmatprep.subr.mxu0 0.0
  %2614 = vmatpush1.msra.mxu0 0.0
  %2615 = vmatprep.subr.mxu0 0.0
  %2616 = vmatpush1.msra.mxu0 0.0
  %2617 = vmatprep.subr.mxu0 0.0
  %2618 = vmatpush1.msra.mxu0 0.0
  %2619 = vmatprep.subr.mxu0 0.0
  %2620 = vmatpush1.msra.mxu0 0.0
  %2621 = vmatprep.mubr.f32.mxu0 0.0
  %v2622 = vand.u32 %v2141, 4294901760
  %2623 = vmatmul.mubr.f32.gmra.mrb[0].mxu0 %v2622
  %v2624 = vpop.f32.mrb[0].mxu0
  %v2625 = vadd.f32 %v2550, %v2624
  %v2626 = vpop.f32.mrb[0].mxu0
  %2627 = vdwg.mxu0
  %v2628 = vadd.f32 %v2138, %v2625
  %v2629 = vxor.u32 %v2628, 2147483648
  %v2630 = vmul.f32 %v2629, 1.442695
  %v2631 = vpow.pop %v2630
  %v2632 = vadd.f32 %v2631, 1.0
  %v2633 = vrcp.pop %v2632
  %v2634 = vmul.f32 1.0, %v2633
  %v2635 = vadd.f32 %v2625, %v528
  %2637 = vrot.lane.b32.xlu0 %v2635, 64
  %v2638 = vpop.permute.xlu0 %2637
  %v2640 = vmul.f32 %v2634, %v2638
  %2642 = vrot.lane.b32.xlu0 %v2640, 64
  %v2643 = vpop.permute.xlu0 %2642
  %v2645 = vadd.f32 %v2138, %v2643
  %v2646 = vtanh.pop %v2645
  %v2647 = vsub.f32 %v2122, %v2646
  %2649 = vrot.lane.b32.xlu0 %v2647, 96
  %v2650 = vpop.permute.xlu0 %2649
  %v2652 = vmul.f32 %v2634, %v2650
  %2654 = vrot.lane.b32.xlu0 %v2652, 32
  %v2655 = vpop.permute.xlu0 %2654
  %v2657 = vadd.f32 %v2646, %v2655
  %s2658 = scalar_lea.vmem %s0, 40
  %v2659 = vld [vmem:[%s2658] sm:$0xff]
  %2661 = vrot.lane.b32.xlu0 %v2657, 64
  %v2662 = vpop.permute.xlu0 %2661
  %v2663 = vsel %vm31, %v2662, 0
  %2665 = vmatprep.subr.mxu0 0.0
  %v2666 = vand.u32 %v19, 4294901760
  %2667 = vmatpush1.msra.mxu0 %v2666
  %2668 = vmatprep.subr.mxu0 0.0
  %v2669 = vand.u32 %v20, 4294901760
  %2670 = vmatpush1.msra.mxu0 %v2669
  %2671 = vmatprep.subr.mxu0 0.0
  %v2672 = vand.u32 %v21, 4294901760
  %2673 = vmatpush1.msra.mxu0 %v2672
  %2674 = vmatprep.subr.mxu0 0.0
  %v2675 = vand.u32 %v22, 4294901760
  %2676 = vmatpush1.msra.mxu0 %v2675
  %2677 = vmatprep.subr.mxu0 0.0
  %2678 = vmatpush1.msra.mxu0 0.0
  %2679 = vmatprep.subr.mxu0 0.0
  %2680 = vmatpush1.msra.mxu0 0.0
  %2681 = vmatprep.subr.mxu0 0.0
  %2682 = vmatpush1.msra.mxu0 0.0
  %2683 = vmatprep.subr.mxu0 0.0
  %2684 = vmatpush1.msra.mxu0 0.0
  %2685 = vmatprep.subr.mxu0 0.0
  %2686 = vmatpush1.msra.mxu0 0.0
  %2687 = vmatprep.subr.mxu0 0.0
  %2688 = vmatpush1.msra.mxu0 0.0
  %2689 = vmatprep.subr.mxu0 0.0
  %2690 = vmatpush1.msra.mxu0 0.0
  %2691 = vmatprep.subr.mxu0 0.0
  %2692 = vmatpush1.msra.mxu0 0.0
  %2693 = vmatprep.subr.mxu0 0.0
  %2694 = vmatpush1.msra.mxu0 0.0
  %2695 = vmatprep.subr.mxu0 0.0
  %2696 = vmatpush1.msra.mxu0 0.0
  %2697 = vmatprep.subr.mxu0 0.0
  %2698 = vmatpush1.msra.mxu0 0.0
  %2699 = vmatprep.subr.mxu0 0.0
  %2700 = vmatpush1.msra.mxu0 0.0
  %2701 = vmatprep.subr.mxu0 0.0
  %2702 = vmatpush1.msra.mxu0 0.0
  %2703 = vmatprep.subr.mxu0 0.0
  %2704 = vmatpush1.msra.mxu0 0.0
  %2705 = vmatprep.subr.mxu0 0.0
  %2706 = vmatpush1.msra.mxu0 0.0
  %2707 = vmatprep.subr.mxu0 0.0
  %2708 = vmatpush1.msra.mxu0 0.0
  %2709 = vmatprep.subr.mxu0 0.0
  %2710 = vmatpush1.msra.mxu0 0.0
  %2711 = vmatprep.subr.mxu0 0.0
  %2712 = vmatpush1.msra.mxu0 0.0
  %2713 = vmatprep.subr.mxu0 0.0
  %2714 = vmatpush1.msra.mxu0 0.0
  %2715 = vmatprep.subr.mxu0 0.0
  %2716 = vmatpush1.msra.mxu0 0.0
  %2717 = vmatprep.subr.mxu0 0.0
  %2718 = vmatpush1.msra.mxu0 0.0
  %2719 = vmatprep.subr.mxu0 0.0
  %2720 = vmatpush1.msra.mxu0 0.0
  %2721 = vmatprep.subr.mxu0 0.0
  %2722 = vmatpush1.msra.mxu0 0.0
  %2723 = vmatprep.subr.mxu0 0.0
  %2724 = vmatpush1.msra.mxu0 0.0
  %2725 = vmatprep.subr.mxu0 0.0
  %2726 = vmatpush1.msra.mxu0 0.0
  %2727 = vmatprep.subr.mxu0 0.0
  %2728 = vmatpush1.msra.mxu0 0.0
  %2729 = vmatprep.subr.mxu0 0.0
  %2730 = vmatpush1.msra.mxu0 0.0
  %2731 = vmatprep.subr.mxu0 0.0
  %2732 = vmatpush1.msra.mxu0 0.0
  %2733 = vmatprep.mubr.f32.mxu0 0.0
  %v2734 = vand.u32 %v2663, 4294901760
  %v2735 = vsub.f32 %v2663, %v2734
  %v2736 = vand.u32 %v2735, 4294901760
  %v2737 = vsub.f32 %v2735, %v2736
  %v2738 = vand.u32 %v2737, 4294901760
  %2739 = vmatmul.mubr.f32.gmra.mrb[0].mxu0 %v2738
  %v2740 = vpop.f32.mrb[0].mxu0
  %v2741 = vadd.f32 0.0, %v2740
  %v2742 = vpop.f32.mrb[0].mxu0
  %2743 = vdwg.mxu0
  %2744 = vmatprep.subr.mxu0 0.0
  %v2745 = vand.u32 %v19, 4294901760
  %v2746 = vsub.f32 %v19, %v2745
  %v2747 = vand.u32 %v2746, 4294901760
  %v2748 = vsub.f32 %v2746, %v2747
  %v2749 = vand.u32 %v2748, 4294901760
  %2750 = vmatpush1.msra.mxu0 %v2749
  %2751 = vmatprep.subr.mxu0 0.0
  %v2752 = vand.u32 %v20, 4294901760
  %v2753 = vsub.f32 %v20, %v2752
  %v2754 = vand.u32 %v2753, 4294901760
  %v2755 = vsub.f32 %v2753, %v2754
  %v2756 = vand.u32 %v2755, 4294901760
  %2757 = vmatpush1.msra.mxu0 %v2756
  %2758 = vmatprep.subr.mxu0 0.0
  %v2759 = vand.u32 %v21, 4294901760
  %v2760 = vsub.f32 %v21, %v2759
  %v2761 = vand.u32 %v2760, 4294901760
  %v2762 = vsub.f32 %v2760, %v2761
  %v2763 = vand.u32 %v2762, 4294901760
  %2764 = vmatpush1.msra.mxu0 %v2763
  %2765 = vmatprep.subr.mxu0 0.0
  %v2766 = vand.u32 %v22, 4294901760
  %v2767 = vsub.f32 %v22, %v2766
  %v2768 = vand.u32 %v2767, 4294901760
  %v2769 = vsub.f32 %v2767, %v2768
  %v2770 = vand.u32 %v2769, 4294901760
  %2771 = vmatpush1.msra.mxu0 %v2770
  %2772 = vmatprep.subr.mxu0 0.0
  %2773 = vmatpush1.msra.mxu0 0.0
  %2774 = vmatprep.subr.mxu0 0.0
  %2775 = vmatpush1.msra.mxu0 0.0
  %2776 = vmatprep.subr.mxu0 0.0
  %2777 = vmatpush1.msra.mxu0 0.0
  %2778 = vmatprep.subr.mxu0 0.0
  %2779 = vmatpush1.msra.mxu0 0.0
  %2780 = vmatprep.subr.mxu0 0.0
  %2781 = vmatpush1.msra.mxu0 0.0
  %2782 = vmatprep.subr.mxu0 0.0
  %2783 = vmatpush1.msra.mxu0 0.0
  %2784 = vmatprep.subr.mxu0 0.0
  %2785 = vmatpush1.msra.mxu0 0.0
  %2786 = vmatprep.subr.mxu0 0.0
  %2787 = vmatpush1.msra.mxu0 0.0
  %2788 = vmatprep.subr.mxu0 0.0
  %2789 = vmatpush1.msra.mxu0 0.0
  %2790 = vmatprep.subr.mxu0 0.0
  %2791 = vmatpush1.msra.mxu0 0.0
  %2792 = vmatprep.subr.mxu0 0.0
  %2793 = vmatpush1.msra.mxu0 0.0
  %2794 = vmatprep.subr.mxu0 0.0
  %2795 = vmatpush1.msra.mxu0 0.0
  %2796 = vmatprep.subr.mxu0 0.0
  %2797 = vmatpush1.msra.mxu0 0.0
  %2798 = vmatprep.subr.mxu0 0.0
  %2799 = vmatpush1.msra.mxu0 0.0
  %2800 = vmatprep.subr.mxu0 0.0
  %2801 = vmatpush1.msra.mxu0 0.0
  %2802 = vmatprep.subr.mxu0 0.0
  %2803 = vmatpush1.msra.mxu0 0.0
  %2804 = vmatprep.subr.mxu0 0.0
  %2805 = vmatpush1.msra.mxu0 0.0
  %2806 = vmatprep.subr.mxu0 0.0
  %2807 = vmatpush1.msra.mxu0 0.0
  %2808 = vmatprep.subr.mxu0 0.0
  %2809 = vmatpush1.msra.mxu0 0.0
  %2810 = vmatprep.subr.mxu0 0.0
  %2811 = vmatpush1.msra.mxu0 0.0
  %2812 = vmatprep.subr.mxu0 0.0
  %2813 = vmatpush1.msra.mxu0 0.0
  %2814 = vmatprep.subr.mxu0 0.0
  %2815 = vmatpush1.msra.mxu0 0.0
  %2816 = vmatprep.subr.mxu0 0.0
  %2817 = vmatpush1.msra.mxu0 0.0
  %2818 = vmatprep.subr.mxu0 0.0
  %2819 = vmatpush1.msra.mxu0 0.0
  %2820 = vmatprep.subr.mxu0 0.0
  %2821 = vmatpush1.msra.mxu0 0.0
  %2822 = vmatprep.subr.mxu0 0.0
  %2823 = vmatpush1.msra.mxu0 0.0
  %2824 = vmatprep.subr.mxu0 0.0
  %2825 = vmatpush1.msra.mxu0 0.0
  %2826 = vmatprep.subr.mxu0 0.0
  %2827 = vmatpush1.msra.mxu0 0.0
  %2828 = vmatprep.mubr.f32.mxu0 0.0
  %v2829 = vand.u32 %v2663, 4294901760
  %2830 = vmatmul.mubr.f32.gmra.mrb[0].mxu0 %v2829
  %v2831 = vpop.f32.mrb[0].mxu0
  %v2832 = vadd.f32 %v2741, %v2831
  %v2833 = vpop.f32.mrb[0].mxu0
  %2834 = vdwg.mxu0
  %2835 = vmatprep.subr.mxu0 0.0
  %v2836 = vand.u32 %v19, 4294901760
  %v2837 = vsub.f32 %v19, %v2836
  %2838 = vmatpush1.msra.mxu0 %v2837
  %2839 = vmatprep.subr.mxu0 0.0
  %v2840 = vand.u32 %v20, 4294901760
  %v2841 = vsub.f32 %v20, %v2840
  %2842 = vmatpush1.msra.mxu0 %v2841
  %2843 = vmatprep.subr.mxu0 0.0
  %v2844 = vand.u32 %v21, 4294901760
  %v2845 = vsub.f32 %v21, %v2844
  %2846 = vmatpush1.msra.mxu0 %v2845
  %2847 = vmatprep.subr.mxu0 0.0
  %v2848 = vand.u32 %v22, 4294901760
  %v2849 = vsub.f32 %v22, %v2848
  %2850 = vmatpush1.msra.mxu0 %v2849
  %2851 = vmatprep.subr.mxu0 0.0
  %2852 = vmatpush1.msra.mxu0 0.0
  %2853 = vmatprep.subr.mxu0 0.0
  %2854 = vmatpush1.msra.mxu0 0.0
  %2855 = vmatprep.subr.mxu0 0.0
  %2856 = vmatpush1.msra.mxu0 0.0
  %2857 = vmatprep.subr.mxu0 0.0
  %2858 = vmatpush1.msra.mxu0 0.0
  %2859 = vmatprep.subr.mxu0 0.0
  %2860 = vmatpush1.msra.mxu0 0.0
  %2861 = vmatprep.subr.mxu0 0.0
  %2862 = vmatpush1.msra.mxu0 0.0
  %2863 = vmatprep.subr.mxu0 0.0
  %2864 = vmatpush1.msra.mxu0 0.0
  %2865 = vmatprep.subr.mxu0 0.0
  %2866 = vmatpush1.msra.mxu0 0.0
  %2867 = vmatprep.subr.mxu0 0.0
  %2868 = vmatpush1.msra.mxu0 0.0
  %2869 = vmatprep.subr.mxu0 0.0
  %2870 = vmatpush1.msra.mxu0 0.0
  %2871 = vmatprep.subr.mxu0 0.0
  %2872 = vmatpush1.msra.mxu0 0.0
  %2873 = vmatprep.subr.mxu0 0.0
  %2874 = vmatpush1.msra.mxu0 0.0
  %2875 = vmatprep.subr.mxu0 0.0
  %2876 = vmatpush1.msra.mxu0 0.0
  %2877 = vmatprep.subr.mxu0 0.0
  %2878 = vmatpush1.msra.mxu0 0.0
  %2879 = vmatprep.subr.mxu0 0.0
  %2880 = vmatpush1.msra.mxu0 0.0
  %2881 = vmatprep.subr.mxu0 0.0
  %2882 = vmatpush1.msra.mxu0 0.0
  %2883 = vmatprep.subr.mxu0 0.0
  %2884 = vmatpush1.msra.mxu0 0.0
  %2885 = vmatprep.subr.mxu0 0.0
  %2886 = vmatpush1.msra.mxu0 0.0
  %2887 = vmatprep.subr.mxu0 0.0
  %2888 = vmatpush1.msra.mxu0 0.0
  %2889 = vmatprep.subr.mxu0 0.0
  %2890 = vmatpush1.msra.mxu0 0.0
  %2891 = vmatprep.subr.mxu0 0.0
  %2892 = vmatpush1.msra.mxu0 0.0
  %2893 = vmatprep.subr.mxu0 0.0
  %2894 = vmatpush1.msra.mxu0 0.0
  %2895 = vmatprep.subr.mxu0 0.0
  %2896 = vmatpush1.msra.mxu0 0.0
  %2897 = vmatprep.subr.mxu0 0.0
  %2898 = vmatpush1.msra.mxu0 0.0
  %2899 = vmatprep.subr.mxu0 0.0
  %2900 = vmatpush1.msra.mxu0 0.0
  %2901 = vmatprep.subr.mxu0 0.0
  %2902 = vmatpush1.msra.mxu0 0.0
  %2903 = vmatprep.subr.mxu0 0.0
  %2904 = vmatpush1.msra.mxu0 0.0
  %2905 = vmatprep.subr.mxu0 0.0
  %2906 = vmatpush1.msra.mxu0 0.0
  %2907 = vmatprep.mubr.f32.mxu0 0.0
  %v2908 = vand.u32 %v2663, 4294901760
  %v2909 = vsub.f32 %v2663, %v2908
  %2910 = vmatmul.mubr.f32.gmra.mrb[0].mxu0 %v2909
  %v2911 = vpop.f32.mrb[0].mxu0
  %v2912 = vadd.f32 %v2832, %v2911
  %v2913 = vpop.f32.mrb[0].mxu0
  %2914 = vdwg.mxu0
  %2915 = vmatprep.subr.mxu0 0.0
  %v2916 = vand.u32 %v19, 4294901760
  %2917 = vmatpush1.msra.mxu0 %v2916
  %2918 = vmatprep.subr.mxu0 0.0
  %v2919 = vand.u32 %v20, 4294901760
  %2920 = vmatpush1.msra.mxu0 %v2919
  %2921 = vmatprep.subr.mxu0 0.0
  %v2922 = vand.u32 %v21, 4294901760
  %2923 = vmatpush1.msra.mxu0 %v2922
  %2924 = vmatprep.subr.mxu0 0.0
  %v2925 = vand.u32 %v22, 4294901760
  %2926 = vmatpush1.msra.mxu0 %v2925
  %2927 = vmatprep.subr.mxu0 0.0
  %2928 = vmatpush1.msra.mxu0 0.0
  %2929 = vmatprep.subr.mxu0 0.0
  %2930 = vmatpush1.msra.mxu0 0.0
  %2931 = vmatprep.subr.mxu0 0.0
  %2932 = vmatpush1.msra.mxu0 0.0
  %2933 = vmatprep.subr.mxu0 0.0
  %2934 = vmatpush1.msra.mxu0 0.0
  %2935 = vmatprep.subr.mxu0 0.0
  %2936 = vmatpush1.msra.mxu0 0.0
  %2937 = vmatprep.subr.mxu0 0.0
  %2938 = vmatpush1.msra.mxu0 0.0
  %2939 = vmatprep.subr.mxu0 0.0
  %2940 = vmatpush1.msra.mxu0 0.0
  %2941 = vmatprep.subr.mxu0 0.0
  %2942 = vmatpush1.msra.mxu0 0.0
  %2943 = vmatprep.subr.mxu0 0.0
  %2944 = vmatpush1.msra.mxu0 0.0
  %2945 = vmatprep.subr.mxu0 0.0
  %2946 = vmatpush1.msra.mxu0 0.0
  %2947 = vmatprep.subr.mxu0 0.0
  %2948 = vmatpush1.msra.mxu0 0.0
  %2949 = vmatprep.subr.mxu0 0.0
  %2950 = vmatpush1.msra.mxu0 0.0
  %2951 = vmatprep.subr.mxu0 0.0
  %2952 = vmatpush1.msra.mxu0 0.0
  %2953 = vmatprep.subr.mxu0 0.0
  %2954 = vmatpush1.msra.mxu0 0.0
  %2955 = vmatprep.subr.mxu0 0.0
  %2956 = vmatpush1.msra.mxu0 0.0
  %2957 = vmatprep.subr.mxu0 0.0
  %2958 = vmatpush1.msra.mxu0 0.0
  %2959 = vmatprep.subr.mxu0 0.0
  %2960 = vmatpush1.msra.mxu0 0.0
  %2961 = vmatprep.subr.mxu0 0.0
  %2962 = vmatpush1.msra.mxu0 0.0
  %2963 = vmatprep.subr.mxu0 0.0
  %2964 = vmatpush1.msra.mxu0 0.0
  %2965 = vmatprep.subr.mxu0 0.0
  %2966 = vmatpush1.msra.mxu0 0.0
  %2967 = vmatprep.subr.mxu0 0.0
  %2968 = vmatpush1.msra.mxu0 0.0
  %2969 = vmatprep.subr.mxu0 0.0
  %2970 = vmatpush1.msra.mxu0 0.0
  %2971 = vmatprep.subr.mxu0 0.0
  %2972 = vmatpush1.msra.mxu0 0.0
  %2973 = vmatprep.subr.mxu0 0.0
  %2974 = vmatpush1.msra.mxu0 0.0
  %2975 = vmatprep.subr.mxu0 0.0
  %2976 = vmatpush1.msra.mxu0 0.0
  %2977 = vmatprep.subr.mxu0 0.0
  %2978 = vmatpush1.msra.mxu0 0.0
  %2979 = vmatprep.subr.mxu0 0.0
  %2980 = vmatpush1.msra.mxu0 0.0
  %2981 = vmatprep.subr.mxu0 0.0
  %2982 = vmatpush1.msra.mxu0 0.0
  %2983 = vmatprep.mubr.f32.mxu0 0.0
  %v2984 = vand.u32 %v2663, 4294901760
  %v2985 = vsub.f32 %v2663, %v2984
  %v2986 = vand.u32 %v2985, 4294901760
  %2987 = vmatmul.mubr.f32.gmra.mrb[0].mxu0 %v2986
  %v2988 = vpop.f32.mrb[0].mxu0
  %v2989 = vadd.f32 %v2912, %v2988
  %v2990 = vpop.f32.mrb[0].mxu0
  %2991 = vdwg.mxu0
  %2992 = vmatprep.subr.mxu0 0.0
  %v2993 = vand.u32 %v19, 4294901760
  %v2994 = vsub.f32 %v19, %v2993
  %v2995 = vand.u32 %v2994, 4294901760
  %2996 = vmatpush1.msra.mxu0 %v2995
  %2997 = vmatprep.subr.mxu0 0.0
  %v2998 = vand.u32 %v20, 4294901760
  %v2999 = vsub.f32 %v20, %v2998
  %v3000 = vand.u32 %v2999, 4294901760
  %3001 = vmatpush1.msra.mxu0 %v3000
  %3002 = vmatprep.subr.mxu0 0.0
  %v3003 = vand.u32 %v21, 4294901760
  %v3004 = vsub.f32 %v21, %v3003
  %v3005 = vand.u32 %v3004, 4294901760
  %3006 = vmatpush1.msra.mxu0 %v3005
  %3007 = vmatprep.subr.mxu0 0.0
  %v3008 = vand.u32 %v22, 4294901760
  %v3009 = vsub.f32 %v22, %v3008
  %v3010 = vand.u32 %v3009, 4294901760
  %3011 = vmatpush1.msra.mxu0 %v3010
  %3012 = vmatprep.subr.mxu0 0.0
  %3013 = vmatpush1.msra.mxu0 0.0
  %3014 = vmatprep.subr.mxu0 0.0
  %3015 = vmatpush1.msra.mxu0 0.0
  %3016 = vmatprep.subr.mxu0 0.0
  %3017 = vmatpush1.msra.mxu0 0.0
  %3018 = vmatprep.subr.mxu0 0.0
  %3019 = vmatpush1.msra.mxu0 0.0
  %3020 = vmatprep.subr.mxu0 0.0
  %3021 = vmatpush1.msra.mxu0 0.0
  %3022 = vmatprep.subr.mxu0 0.0
  %3023 = vmatpush1.msra.mxu0 0.0
  %3024 = vmatprep.subr.mxu0 0.0
  %3025 = vmatpush1.msra.mxu0 0.0
  %3026 = vmatprep.subr.mxu0 0.0
  %3027 = vmatpush1.msra.mxu0 0.0
  %3028 = vmatprep.subr.mxu0 0.0
  %3029 = vmatpush1.msra.mxu0 0.0
  %3030 = vmatprep.subr.mxu0 0.0
  %3031 = vmatpush1.msra.mxu0 0.0
  %3032 = vmatprep.subr.mxu0 0.0
  %3033 = vmatpush1.msra.mxu0 0.0
  %3034 = vmatprep.subr.mxu0 0.0
  %3035 = vmatpush1.msra.mxu0 0.0
  %3036 = vmatprep.subr.mxu0 0.0
  %3037 = vmatpush1.msra.mxu0 0.0
  %3038 = vmatprep.subr.mxu0 0.0
  %3039 = vmatpush1.msra.mxu0 0.0
  %3040 = vmatprep.subr.mxu0 0.0
  %3041 = vmatpush1.msra.mxu0 0.0
  %3042 = vmatprep.subr.mxu0 0.0
  %3043 = vmatpush1.msra.mxu0 0.0
  %3044 = vmatprep.subr.mxu0 0.0
  %3045 = vmatpush1.msra.mxu0 0.0
  %3046 = vmatprep.subr.mxu0 0.0
  %3047 = vmatpush1.msra.mxu0 0.0
  %3048 = vmatprep.subr.mxu0 0.0
  %3049 = vmatpush1.msra.mxu0 0.0
  %3050 = vmatprep.subr.mxu0 0.0
  %3051 = vmatpush1.msra.mxu0 0.0
  %3052 = vmatprep.subr.mxu0 0.0
  %3053 = vmatpush1.msra.mxu0 0.0
  %3054 = vmatprep.subr.mxu0 0.0
  %3055 = vmatpush1.msra.mxu0 0.0
  %3056 = vmatprep.subr.mxu0 0.0
  %3057 = vmatpush1.msra.mxu0 0.0
  %3058 = vmatprep.subr.mxu0 0.0
  %3059 = vmatpush1.msra.mxu0 0.0
  %3060 = vmatprep.subr.mxu0 0.0
  %3061 = vmatpush1.msra.mxu0 0.0
  %3062 = vmatprep.subr.mxu0 0.0
  %3063 = vmatpush1.msra.mxu0 0.0
  %3064 = vmatprep.subr.mxu0 0.0
  %3065 = vmatpush1.msra.mxu0 0.0
  %3066 = vmatprep.subr.mxu0 0.0
  %3067 = vmatpush1.msra.mxu0 0.0
  %3068 = vmatprep.mubr.f32.mxu0 0.0
  %v3069 = vand.u32 %v2663, 4294901760
  %3070 = vmatmul.mubr.f32.gmra.mrb[0].mxu0 %v3069
  %v3071 = vpop.f32.mrb[0].mxu0
  %v3072 = vadd.f32 %v2989, %v3071
  %v3073 = vpop.f32.mrb[0].mxu0
  %3074 = vdwg.mxu0
  %3075 = vmatprep.subr.mxu0 0.0
  %v3076 = vand.u32 %v19, 4294901760
  %3077 = vmatpush1.msra.mxu0 %v3076
  %3078 = vmatprep.subr.mxu0 0.0
  %v3079 = vand.u32 %v20, 4294901760
  %3080 = vmatpush1.msra.mxu0 %v3079
  %3081 = vmatprep.subr.mxu0 0.0
  %v3082 = vand.u32 %v21, 4294901760
  %3083 = vmatpush1.msra.mxu0 %v3082
  %3084 = vmatprep.subr.mxu0 0.0
  %v3085 = vand.u32 %v22, 4294901760
  %3086 = vmatpush1.msra.mxu0 %v3085
  %3087 = vmatprep.subr.mxu0 0.0
  %3088 = vmatpush1.msra.mxu0 0.0
  %3089 = vmatprep.subr.mxu0 0.0
  %3090 = vmatpush1.msra.mxu0 0.0
  %3091 = vmatprep.subr.mxu0 0.0
  %3092 = vmatpush1.msra.mxu0 0.0
  %3093 = vmatprep.subr.mxu0 0.0
  %3094 = vmatpush1.msra.mxu0 0.0
  %3095 = vmatprep.subr.mxu0 0.0
  %3096 = vmatpush1.msra.mxu0 0.0
  %3097 = vmatprep.subr.mxu0 0.0
  %3098 = vmatpush1.msra.mxu0 0.0
  %3099 = vmatprep.subr.mxu0 0.0
  %3100 = vmatpush1.msra.mxu0 0.0
  %3101 = vmatprep.subr.mxu0 0.0
  %3102 = vmatpush1.msra.mxu0 0.0
  %3103 = vmatprep.subr.mxu0 0.0
  %3104 = vmatpush1.msra.mxu0 0.0
  %3105 = vmatprep.subr.mxu0 0.0
  %3106 = vmatpush1.msra.mxu0 0.0
  %3107 = vmatprep.subr.mxu0 0.0
  %3108 = vmatpush1.msra.mxu0 0.0
  %3109 = vmatprep.subr.mxu0 0.0
  %3110 = vmatpush1.msra.mxu0 0.0
  %3111 = vmatprep.subr.mxu0 0.0
  %3112 = vmatpush1.msra.mxu0 0.0
  %3113 = vmatprep.subr.mxu0 0.0
  %3114 = vmatpush1.msra.mxu0 0.0
  %3115 = vmatprep.subr.mxu0 0.0
  %3116 = vmatpush1.msra.mxu0 0.0
  %3117 = vmatprep.subr.mxu0 0.0
  %3118 = vmatpush1.msra.mxu0 0.0
  %3119 = vmatprep.subr.mxu0 0.0
  %3120 = vmatpush1.msra.mxu0 0.0
  %3121 = vmatprep.subr.mxu0 0.0
  %3122 = vmatpush1.msra.mxu0 0.0
  %3123 = vmatprep.subr.mxu0 0.0
  %3124 = vmatpush1.msra.mxu0 0.0
  %3125 = vmatprep.subr.mxu0 0.0
  %3126 = vmatpush1.msra.mxu0 0.0
  %3127 = vmatprep.subr.mxu0 0.0
  %3128 = vmatpush1.msra.mxu0 0.0
  %3129 = vmatprep.subr.mxu0 0.0
  %3130 = vmatpush1.msra.mxu0 0.0
  %3131 = vmatprep.subr.mxu0 0.0
  %3132 = vmatpush1.msra.mxu0 0.0
  %3133 = vmatprep.subr.mxu0 0.0
  %3134 = vmatpush1.msra.mxu0 0.0
  %3135 = vmatprep.subr.mxu0 0.0
  %3136 = vmatpush1.msra.mxu0 0.0
  %3137 = vmatprep.subr.mxu0 0.0
  %3138 = vmatpush1.msra.mxu0 0.0
  %3139 = vmatprep.subr.mxu0 0.0
  %3140 = vmatpush1.msra.mxu0 0.0
  %3141 = vmatprep.subr.mxu0 0.0
  %3142 = vmatpush1.msra.mxu0 0.0
  %3143 = vmatprep.mubr.f32.mxu0 0.0
  %v3144 = vand.u32 %v2663, 4294901760
  %3145 = vmatmul.mubr.f32.gmra.mrb[0].mxu0 %v3144
  %v3146 = vpop.f32.mrb[0].mxu0
  %v3147 = vadd.f32 %v3072, %v3146
  %v3148 = vpop.f32.mrb[0].mxu0
  %3149 = vdwg.mxu0
  %v3150 = vadd.f32 %v2659, %v3147
  %v3151 = vxor.u32 %v3150, 2147483648
  %v3152 = vmul.f32 %v3151, 1.442695
  %v3153 = vpow.pop %v3152
  %v3154 = vadd.f32 %v3153, 1.0
  %v3155 = vrcp.pop %v3154
  %v3156 = vmul.f32 1.0, %v3155
  %v3157 = vadd.f32 %v3147, %v528
  %3159 = vrot.lane.b32.xlu0 %v3157, 64
  %v3160 = vpop.permute.xlu0 %3159
  %v3162 = vmul.f32 %v3156, %v3160
  %3164 = vrot.lane.b32.xlu0 %v3162, 64
  %v3165 = vpop.permute.xlu0 %3164
  %v3167 = vadd.f32 %v2659, %v3165
  %v3168 = vtanh.pop %v3167
  %v3169 = vsub.f32 %v2657, %v3168
  %3171 = vrot.lane.b32.xlu0 %v3169, 96
  %v3172 = vpop.permute.xlu0 %3171
  %v3174 = vmul.f32 %v3156, %v3172
  %3176 = vrot.lane.b32.xlu0 %v3174, 32
  %v3177 = vpop.permute.xlu0 %3176
  %v3179 = vadd.f32 %v3168, %v3177
  %s3180 = scalar_lea.vmem %s0, 48
  %v3181 = vld [vmem:[%s3180] sm:$0xff]
  %3183 = vrot.lane.b32.xlu0 %v3179, 64
  %v3184 = vpop.permute.xlu0 %3183
  %v3185 = vsel %vm31, %v3184, 0
  %3187 = vmatprep.subr.mxu0 0.0
  %v3188 = vand.u32 %v19, 4294901760
  %3189 = vmatpush1.msra.mxu0 %v3188
  %3190 = vmatprep.subr.mxu0 0.0
  %v3191 = vand.u32 %v20, 4294901760
  %3192 = vmatpush1.msra.mxu0 %v3191
  %3193 = vmatprep.subr.mxu0 0.0
  %v3194 = vand.u32 %v21, 4294901760
  %3195 = vmatpush1.msra.mxu0 %v3194
  %3196 = vmatprep.subr.mxu0 0.0
  %v3197 = vand.u32 %v22, 4294901760
  %3198 = vmatpush1.msra.mxu0 %v3197
  %3199 = vmatprep.subr.mxu0 0.0
  %3200 = vmatpush1.msra.mxu0 0.0
  %3201 = vmatprep.subr.mxu0 0.0
  %3202 = vmatpush1.msra.mxu0 0.0
  %3203 = vmatprep.subr.mxu0 0.0
  %3204 = vmatpush1.msra.mxu0 0.0
  %3205 = vmatprep.subr.mxu0 0.0
  %3206 = vmatpush1.msra.mxu0 0.0
  %3207 = vmatprep.subr.mxu0 0.0
  %3208 = vmatpush1.msra.mxu0 0.0
  %3209 = vmatprep.subr.mxu0 0.0
  %3210 = vmatpush1.msra.mxu0 0.0
  %3211 = vmatprep.subr.mxu0 0.0
  %3212 = vmatpush1.msra.mxu0 0.0
  %3213 = vmatprep.subr.mxu0 0.0
  %3214 = vmatpush1.msra.mxu0 0.0
  %3215 = vmatprep.subr.mxu0 0.0
  %3216 = vmatpush1.msra.mxu0 0.0
  %3217 = vmatprep.subr.mxu0 0.0
  %3218 = vmatpush1.msra.mxu0 0.0
  %3219 = vmatprep.subr.mxu0 0.0
  %3220 = vmatpush1.msra.mxu0 0.0
  %3221 = vmatprep.subr.mxu0 0.0
  %3222 = vmatpush1.msra.mxu0 0.0
  %3223 = vmatprep.subr.mxu0 0.0
  %3224 = vmatpush1.msra.mxu0 0.0
  %3225 = vmatprep.subr.mxu0 0.0
  %3226 = vmatpush1.msra.mxu0 0.0
  %3227 = vmatprep.subr.mxu0 0.0
  %3228 = vmatpush1.msra.mxu0 0.0
  %3229 = vmatprep.subr.mxu0 0.0
  %3230 = vmatpush1.msra.mxu0 0.0
  %3231 = vmatprep.subr.mxu0 0.0
  %3232 = vmatpush1.msra.mxu0 0.0
  %3233 = vmatprep.subr.mxu0 0.0
  %3234 = vmatpush1.msra.mxu0 0.0
  %3235 = vmatprep.subr.mxu0 0.0
  %3236 = vmatpush1.msra.mxu0 0.0
  %3237 = vmatprep.subr.mxu0 0.0
  %3238 = vmatpush1.msra.mxu0 0.0
  %3239 = vmatprep.subr.mxu0 0.0
  %3240 = vmatpush1.msra.mxu0 0.0
  %3241 = vmatprep.subr.mxu0 0.0
  %3242 = vmatpush1.msra.mxu0 0.0
  %3243 = vmatprep.subr.mxu0 0.0
  %3244 = vmatpush1.msra.mxu0 0.0
  %3245 = vmatprep.subr.mxu0 0.0
  %3246 = vmatpush1.msra.mxu0 0.0
  %3247 = vmatprep.subr.mxu0 0.0
  %3248 = vmatpush1.msra.mxu0 0.0
  %3249 = vmatprep.subr.mxu0 0.0
  %3250 = vmatpush1.msra.mxu0 0.0
  %3251 = vmatprep.subr.mxu0 0.0
  %3252 = vmatpush1.msra.mxu0 0.0
  %3253 = vmatprep.subr.mxu0 0.0
  %3254 = vmatpush1.msra.mxu0 0.0
  %3255 = vmatprep.mubr.f32.mxu0 0.0
  %v3256 = vand.u32 %v3185, 4294901760
  %v3257 = vsub.f32 %v3185, %v3256
  %v3258 = vand.u32 %v3257, 4294901760
  %v3259 = vsub.f32 %v3257, %v3258
  %v3260 = vand.u32 %v3259, 4294901760
  %3261 = vmatmul.mubr.f32.gmra.mrb[0].mxu0 %v3260
  %v3262 = vpop.f32.mrb[0].mxu0
  %v3263 = vadd.f32 0.0, %v3262
  %v3264 = vpop.f32.mrb[0].mxu0
  %3265 = vdwg.mxu0
  %3266 = vmatprep.subr.mxu0 0.0
  %v3267 = vand.u32 %v19, 4294901760
  %v3268 = vsub.f32 %v19, %v3267
  %v3269 = vand.u32 %v3268, 4294901760
  %v3270 = vsub.f32 %v3268, %v3269
  %v3271 = vand.u32 %v3270, 4294901760
  %3272 = vmatpush1.msra.mxu0 %v3271
  %3273 = vmatprep.subr.mxu0 0.0
  %v3274 = vand.u32 %v20, 4294901760
  %v3275 = vsub.f32 %v20, %v3274
  %v3276 = vand.u32 %v3275, 4294901760
  %v3277 = vsub.f32 %v3275, %v3276
  %v3278 = vand.u32 %v3277, 4294901760
  %3279 = vmatpush1.msra.mxu0 %v3278
  %3280 = vmatprep.subr.mxu0 0.0
  %v3281 = vand.u32 %v21, 4294901760
  %v3282 = vsub.f32 %v21, %v3281
  %v3283 = vand.u32 %v3282, 4294901760
  %v3284 = vsub.f32 %v3282, %v3283
  %v3285 = vand.u32 %v3284, 4294901760
  %3286 = vmatpush1.msra.mxu0 %v3285
  %3287 = vmatprep.subr.mxu0 0.0
  %v3288 = vand.u32 %v22, 4294901760
  %v3289 = vsub.f32 %v22, %v3288
  %v3290 = vand.u32 %v3289, 4294901760
  %v3291 = vsub.f32 %v3289, %v3290
  %v3292 = vand.u32 %v3291, 4294901760
  %3293 = vmatpush1.msra.mxu0 %v3292
  %3294 = vmatprep.subr.mxu0 0.0
  %3295 = vmatpush1.msra.mxu0 0.0
  %3296 = vmatprep.subr.mxu0 0.0
  %3297 = vmatpush1.msra.mxu0 0.0
  %3298 = vmatprep.subr.mxu0 0.0
  %3299 = vmatpush1.msra.mxu0 0.0
  %3300 = vmatprep.subr.mxu0 0.0
  %3301 = vmatpush1.msra.mxu0 0.0
  %3302 = vmatprep.subr.mxu0 0.0
  %3303 = vmatpush1.msra.mxu0 0.0
  %3304 = vmatprep.subr.mxu0 0.0
  %3305 = vmatpush1.msra.mxu0 0.0
  %3306 = vmatprep.subr.mxu0 0.0
  %3307 = vmatpush1.msra.mxu0 0.0
  %3308 = vmatprep.subr.mxu0 0.0
  %3309 = vmatpush1.msra.mxu0 0.0
  %3310 = vmatprep.subr.mxu0 0.0
  %3311 = vmatpush1.msra.mxu0 0.0
  %3312 = vmatprep.subr.mxu0 0.0
  %3313 = vmatpush1.msra.mxu0 0.0
  %3314 = vmatprep.subr.mxu0 0.0
  %3315 = vmatpush1.msra.mxu0 0.0
  %3316 = vmatprep.subr.mxu0 0.0
  %3317 = vmatpush1.msra.mxu0 0.0
  %3318 = vmatprep.subr.mxu0 0.0
  %3319 = vmatpush1.msra.mxu0 0.0
  %3320 = vmatprep.subr.mxu0 0.0
  %3321 = vmatpush1.msra.mxu0 0.0
  %3322 = vmatprep.subr.mxu0 0.0
  %3323 = vmatpush1.msra.mxu0 0.0
  %3324 = vmatprep.subr.mxu0 0.0
  %3325 = vmatpush1.msra.mxu0 0.0
  %3326 = vmatprep.subr.mxu0 0.0
  %3327 = vmatpush1.msra.mxu0 0.0
  %3328 = vmatprep.subr.mxu0 0.0
  %3329 = vmatpush1.msra.mxu0 0.0
  %3330 = vmatprep.subr.mxu0 0.0
  %3331 = vmatpush1.msra.mxu0 0.0
  %3332 = vmatprep.subr.mxu0 0.0
  %3333 = vmatpush1.msra.mxu0 0.0
  %3334 = vmatprep.subr.mxu0 0.0
  %3335 = vmatpush1.msra.mxu0 0.0
  %3336 = vmatprep.subr.mxu0 0.0
  %3337 = vmatpush1.msra.mxu0 0.0
  %3338 = vmatprep.subr.mxu0 0.0
  %3339 = vmatpush1.msra.mxu0 0.0
  %3340 = vmatprep.subr.mxu0 0.0
  %3341 = vmatpush1.msra.mxu0 0.0
  %3342 = vmatprep.subr.mxu0 0.0
  %3343 = vmatpush1.msra.mxu0 0.0
  %3344 = vmatprep.subr.mxu0 0.0
  %3345 = vmatpush1.msra.mxu0 0.0
  %3346 = vmatprep.subr.mxu0 0.0
  %3347 = vmatpush1.msra.mxu0 0.0
  %3348 = vmatprep.subr.mxu0 0.0
  %3349 = vmatpush1.msra.mxu0 0.0
  %3350 = vmatprep.mubr.f32.mxu0 0.0
  %v3351 = vand.u32 %v3185, 4294901760
  %3352 = vmatmul.mubr.f32.gmra.mrb[0].mxu0 %v3351
  %v3353 = vpop.f32.mrb[0].mxu0
  %v3354 = vadd.f32 %v3263, %v3353
  %v3355 = vpop.f32.mrb[0].mxu0
  %3356 = vdwg.mxu0
  %3357 = vmatprep.subr.mxu0 0.0
  %v3358 = vand.u32 %v19, 4294901760
  %v3359 = vsub.f32 %v19, %v3358
  %3360 = vmatpush1.msra.mxu0 %v3359
  %3361 = vmatprep.subr.mxu0 0.0
  %v3362 = vand.u32 %v20, 4294901760
  %v3363 = vsub.f32 %v20, %v3362
  %3364 = vmatpush1.msra.mxu0 %v3363
  %3365 = vmatprep.subr.mxu0 0.0
  %v3366 = vand.u32 %v21, 4294901760
  %v3367 = vsub.f32 %v21, %v3366
  %3368 = vmatpush1.msra.mxu0 %v3367
  %3369 = vmatprep.subr.mxu0 0.0
  %v3370 = vand.u32 %v22, 4294901760
  %v3371 = vsub.f32 %v22, %v3370
  %3372 = vmatpush1.msra.mxu0 %v3371
  %3373 = vmatprep.subr.mxu0 0.0
  %3374 = vmatpush1.msra.mxu0 0.0
  %3375 = vmatprep.subr.mxu0 0.0
  %3376 = vmatpush1.msra.mxu0 0.0
  %3377 = vmatprep.subr.mxu0 0.0
  %3378 = vmatpush1.msra.mxu0 0.0
  %3379 = vmatprep.subr.mxu0 0.0
  %3380 = vmatpush1.msra.mxu0 0.0
  %3381 = vmatprep.subr.mxu0 0.0
  %3382 = vmatpush1.msra.mxu0 0.0
  %3383 = vmatprep.subr.mxu0 0.0
  %3384 = vmatpush1.msra.mxu0 0.0
  %3385 = vmatprep.subr.mxu0 0.0
  %3386 = vmatpush1.msra.mxu0 0.0
  %3387 = vmatprep.subr.mxu0 0.0
  %3388 = vmatpush1.msra.mxu0 0.0
  %3389 = vmatprep.subr.mxu0 0.0
  %3390 = vmatpush1.msra.mxu0 0.0
  %3391 = vmatprep.subr.mxu0 0.0
  %3392 = vmatpush1.msra.mxu0 0.0
  %3393 = vmatprep.subr.mxu0 0.0
  %3394 = vmatpush1.msra.mxu0 0.0
  %3395 = vmatprep.subr.mxu0 0.0
  %3396 = vmatpush1.msra.mxu0 0.0
  %3397 = vmatprep.subr.mxu0 0.0
  %3398 = vmatpush1.msra.mxu0 0.0
  %3399 = vmatprep.subr.mxu0 0.0
  %3400 = vmatpush1.msra.mxu0 0.0
  %3401 = vmatprep.subr.mxu0 0.0
  %3402 = vmatpush1.msra.mxu0 0.0
  %3403 = vmatprep.subr.mxu0 0.0
  %3404 = vmatpush1.msra.mxu0 0.0
  %3405 = vmatprep.subr.mxu0 0.0
  %3406 = vmatpush1.msra.mxu0 0.0
  %3407 = vmatprep.subr.mxu0 0.0
  %3408 = vmatpush1.msra.mxu0 0.0
  %3409 = vmatprep.subr.mxu0 0.0
  %3410 = vmatpush1.msra.mxu0 0.0
  %3411 = vmatprep.subr.mxu0 0.0
  %3412 = vmatpush1.msra.mxu0 0.0
  %3413 = vmatprep.subr.mxu0 0.0
  %3414 = vmatpush1.msra.mxu0 0.0
  %3415 = vmatprep.subr.mxu0 0.0
  %3416 = vmatpush1.msra.mxu0 0.0
  %3417 = vmatprep.subr.mxu0 0.0
  %3418 = vmatpush1.msra.mxu0 0.0
  %3419 = vmatprep.subr.mxu0 0.0
  %3420 = vmatpush1.msra.mxu0 0.0
  %3421 = vmatprep.subr.mxu0 0.0
  %3422 = vmatpush1.msra.mxu0 0.0
  %3423 = vmatprep.subr.mxu0 0.0
  %3424 = vmatpush1.msra.mxu0 0.0
  %3425 = vmatprep.subr.mxu0 0.0
  %3426 = vmatpush1.msra.mxu0 0.0
  %3427 = vmatprep.subr.mxu0 0.0
  %3428 = vmatpush1.msra.mxu0 0.0
  %3429 = vmatprep.mubr.f32.mxu0 0.0
  %v3430 = vand.u32 %v3185, 4294901760
  %v3431 = vsub.f32 %v3185, %v3430
  %3432 = vmatmul.mubr.f32.gmra.mrb[0].mxu0 %v3431
  %v3433 = vpop.f32.mrb[0].mxu0
  %v3434 = vadd.f32 %v3354, %v3433
  %v3435 = vpop.f32.mrb[0].mxu0
  %3436 = vdwg.mxu0
  %3437 = vmatprep.subr.mxu0 0.0
  %v3438 = vand.u32 %v19, 4294901760
  %3439 = vmatpush1.msra.mxu0 %v3438
  %3440 = vmatprep.subr.mxu0 0.0
  %v3441 = vand.u32 %v20, 4294901760
  %3442 = vmatpush1.msra.mxu0 %v3441
  %3443 = vmatprep.subr.mxu0 0.0
  %v3444 = vand.u32 %v21, 4294901760
  %3445 = vmatpush1.msra.mxu0 %v3444
  %3446 = vmatprep.subr.mxu0 0.0
  %v3447 = vand.u32 %v22, 4294901760
  %3448 = vmatpush1.msra.mxu0 %v3447
  %3449 = vmatprep.subr.mxu0 0.0
  %3450 = vmatpush1.msra.mxu0 0.0
  %3451 = vmatprep.subr.mxu0 0.0
  %3452 = vmatpush1.msra.mxu0 0.0
  %3453 = vmatprep.subr.mxu0 0.0
  %3454 = vmatpush1.msra.mxu0 0.0
  %3455 = vmatprep.subr.mxu0 0.0
  %3456 = vmatpush1.msra.mxu0 0.0
  %3457 = vmatprep.subr.mxu0 0.0
  %3458 = vmatpush1.msra.mxu0 0.0
  %3459 = vmatprep.subr.mxu0 0.0
  %3460 = vmatpush1.msra.mxu0 0.0
  %3461 = vmatprep.subr.mxu0 0.0
  %3462 = vmatpush1.msra.mxu0 0.0
  %3463 = vmatprep.subr.mxu0 0.0
  %3464 = vmatpush1.msra.mxu0 0.0
  %3465 = vmatprep.subr.mxu0 0.0
  %3466 = vmatpush1.msra.mxu0 0.0
  %3467 = vmatprep.subr.mxu0 0.0
  %3468 = vmatpush1.msra.mxu0 0.0
  %3469 = vmatprep.subr.mxu0 0.0
  %3470 = vmatpush1.msra.mxu0 0.0
  %3471 = vmatprep.subr.mxu0 0.0
  %3472 = vmatpush1.msra.mxu0 0.0
  %3473 = vmatprep.subr.mxu0 0.0
  %3474 = vmatpush1.msra.mxu0 0.0
  %3475 = vmatprep.subr.mxu0 0.0
  %3476 = vmatpush1.msra.mxu0 0.0
  %3477 = vmatprep.subr.mxu0 0.0
  %3478 = vmatpush1.msra.mxu0 0.0
  %3479 = vmatprep.subr.mxu0 0.0
  %3480 = vmatpush1.msra.mxu0 0.0
  %3481 = vmatprep.subr.mxu0 0.0
  %3482 = vmatpush1.msra.mxu0 0.0
  %3483 = vmatprep.subr.mxu0 0.0
  %3484 = vmatpush1.msra.mxu0 0.0
  %3485 = vmatprep.subr.mxu0 0.0
  %3486 = vmatpush1.msra.mxu0 0.0
  %3487 = vmatprep.subr.mxu0 0.0
  %3488 = vmatpush1.msra.mxu0 0.0
  %3489 = vmatprep.subr.mxu0 0.0
  %3490 = vmatpush1.msra.mxu0 0.0
  %3491 = vmatprep.subr.mxu0 0.0
  %3492 = vmatpush1.msra.mxu0 0.0
  %3493 = vmatprep.subr.mxu0 0.0
  %3494 = vmatpush1.msra.mxu0 0.0
  %3495 = vmatprep.subr.mxu0 0.0
  %3496 = vmatpush1.msra.mxu0 0.0
  %3497 = vmatprep.subr.mxu0 0.0
  %3498 = vmatpush1.msra.mxu0 0.0
  %3499 = vmatprep.subr.mxu0 0.0
  %3500 = vmatpush1.msra.mxu0 0.0
  %3501 = vmatprep.subr.mxu0 0.0
  %3502 = vmatpush1.msra.mxu0 0.0
  %3503 = vmatprep.subr.mxu0 0.0
  %3504 = vmatpush1.msra.mxu0 0.0
  %3505 = vmatprep.mubr.f32.mxu0 0.0
  %v3506 = vand.u32 %v3185, 4294901760
  %v3507 = vsub.f32 %v3185, %v3506
  %v3508 = vand.u32 %v3507, 4294901760
  %3509 = vmatmul.mubr.f32.gmra.mrb[0].mxu0 %v3508
  %v3510 = vpop.f32.mrb[0].mxu0
  %v3511 = vadd.f32 %v3434, %v3510
  %v3512 = vpop.f32.mrb[0].mxu0
  %3513 = vdwg.mxu0
  %3514 = vmatprep.subr.mxu0 0.0
  %v3515 = vand.u32 %v19, 4294901760
  %v3516 = vsub.f32 %v19, %v3515
  %v3517 = vand.u32 %v3516, 4294901760
  %3518 = vmatpush1.msra.mxu0 %v3517
  %3519 = vmatprep.subr.mxu0 0.0
  %v3520 = vand.u32 %v20, 4294901760
  %v3521 = vsub.f32 %v20, %v3520
  %v3522 = vand.u32 %v3521, 4294901760
  %3523 = vmatpush1.msra.mxu0 %v3522
  %3524 = vmatprep.subr.mxu0 0.0
  %v3525 = vand.u32 %v21, 4294901760
  %v3526 = vsub.f32 %v21, %v3525
  %v3527 = vand.u32 %v3526, 4294901760
  %3528 = vmatpush1.msra.mxu0 %v3527
  %3529 = vmatprep.subr.mxu0 0.0
  %v3530 = vand.u32 %v22, 4294901760
  %v3531 = vsub.f32 %v22, %v3530
  %v3532 = vand.u32 %v3531, 4294901760
  %3533 = vmatpush1.msra.mxu0 %v3532
  %3534 = vmatprep.subr.mxu0 0.0
  %3535 = vmatpush1.msra.mxu0 0.0
  %3536 = vmatprep.subr.mxu0 0.0
  %3537 = vmatpush1.msra.mxu0 0.0
  %3538 = vmatprep.subr.mxu0 0.0
  %3539 = vmatpush1.msra.mxu0 0.0
  %3540 = vmatprep.subr.mxu0 0.0
  %3541 = vmatpush1.msra.mxu0 0.0
  %3542 = vmatprep.subr.mxu0 0.0
  %3543 = vmatpush1.msra.mxu0 0.0
  %3544 = vmatprep.subr.mxu0 0.0
  %3545 = vmatpush1.msra.mxu0 0.0
  %3546 = vmatprep.subr.mxu0 0.0
  %3547 = vmatpush1.msra.mxu0 0.0
  %3548 = vmatprep.subr.mxu0 0.0
  %3549 = vmatpush1.msra.mxu0 0.0
  %3550 = vmatprep.subr.mxu0 0.0
  %3551 = vmatpush1.msra.mxu0 0.0
  %3552 = vmatprep.subr.mxu0 0.0
  %3553 = vmatpush1.msra.mxu0 0.0
  %3554 = vmatprep.subr.mxu0 0.0
  %3555 = vmatpush1.msra.mxu0 0.0
  %3556 = vmatprep.subr.mxu0 0.0
  %3557 = vmatpush1.msra.mxu0 0.0
  %3558 = vmatprep.subr.mxu0 0.0
  %3559 = vmatpush1.msra.mxu0 0.0
  %3560 = vmatprep.subr.mxu0 0.0
  %3561 = vmatpush1.msra.mxu0 0.0
  %3562 = vmatprep.subr.mxu0 0.0
  %3563 = vmatpush1.msra.mxu0 0.0
  %3564 = vmatprep.subr.mxu0 0.0
  %3565 = vmatpush1.msra.mxu0 0.0
  %3566 = vmatprep.subr.mxu0 0.0
  %3567 = vmatpush1.msra.mxu0 0.0
  %3568 = vmatprep.subr.mxu0 0.0
  %3569 = vmatpush1.msra.mxu0 0.0
  %3570 = vmatprep.subr.mxu0 0.0
  %3571 = vmatpush1.msra.mxu0 0.0
  %3572 = vmatprep.subr.mxu0 0.0
  %3573 = vmatpush1.msra.mxu0 0.0
  %3574 = vmatprep.subr.mxu0 0.0
  %3575 = vmatpush1.msra.mxu0 0.0
  %3576 = vmatprep.subr.mxu0 0.0
  %3577 = vmatpush1.msra.mxu0 0.0
  %3578 = vmatprep.subr.mxu0 0.0
  %3579 = vmatpush1.msra.mxu0 0.0
  %3580 = vmatprep.subr.mxu0 0.0
  %3581 = vmatpush1.msra.mxu0 0.0
  %3582 = vmatprep.subr.mxu0 0.0
  %3583 = vmatpush1.msra.mxu0 0.0
  %3584 = vmatprep.subr.mxu0 0.0
  %3585 = vmatpush1.msra.mxu0 0.0
  %3586 = vmatprep.subr.mxu0 0.0
  %3587 = vmatpush1.msra.mxu0 0.0
  %3588 = vmatprep.subr.mxu0 0.0
  %3589 = vmatpush1.msra.mxu0 0.0
  %3590 = vmatprep.mubr.f32.mxu0 0.0
  %v3591 = vand.u32 %v3185, 4294901760
  %3592 = vmatmul.mubr.f32.gmra.mrb[0].mxu0 %v3591
  %v3593 = vpop.f32.mrb[0].mxu0
  %v3594 = vadd.f32 %v3511, %v3593
  %v3595 = vpop.f32.mrb[0].mxu0
  %3596 = vdwg.mxu0
  %3597 = vmatprep.subr.mxu0 0.0
  %v3598 = vand.u32 %v19, 4294901760
  %3599 = vmatpush1.msra.mxu0 %v3598
  %3600 = vmatprep.subr.mxu0 0.0
  %v3601 = vand.u32 %v20, 4294901760
  %3602 = vmatpush1.msra.mxu0 %v3601
  %3603 = vmatprep.subr.mxu0 0.0
  %v3604 = vand.u32 %v21, 4294901760
  %3605 = vmatpush1.msra.mxu0 %v3604
  %3606 = vmatprep.subr.mxu0 0.0
  %v3607 = vand.u32 %v22, 4294901760
  %3608 = vmatpush1.msra.mxu0 %v3607
  %3609 = vmatprep.subr.mxu0 0.0
  %3610 = vmatpush1.msra.mxu0 0.0
  %3611 = vmatprep.subr.mxu0 0.0
  %3612 = vmatpush1.msra.mxu0 0.0
  %3613 = vmatprep.subr.mxu0 0.0
  %3614 = vmatpush1.msra.mxu0 0.0
  %3615 = vmatprep.subr.mxu0 0.0
  %3616 = vmatpush1.msra.mxu0 0.0
  %3617 = vmatprep.subr.mxu0 0.0
  %3618 = vmatpush1.msra.mxu0 0.0
  %3619 = vmatprep.subr.mxu0 0.0
  %3620 = vmatpush1.msra.mxu0 0.0
  %3621 = vmatprep.subr.mxu0 0.0
  %3622 = vmatpush1.msra.mxu0 0.0
  %3623 = vmatprep.subr.mxu0 0.0
  %3624 = vmatpush1.msra.mxu0 0.0
  %3625 = vmatprep.subr.mxu0 0.0
  %3626 = vmatpush1.msra.mxu0 0.0
  %3627 = vmatprep.subr.mxu0 0.0
  %3628 = vmatpush1.msra.mxu0 0.0
  %3629 = vmatprep.subr.mxu0 0.0
  %3630 = vmatpush1.msra.mxu0 0.0
  %3631 = vmatprep.subr.mxu0 0.0
  %3632 = vmatpush1.msra.mxu0 0.0
  %3633 = vmatprep.subr.mxu0 0.0
  %3634 = vmatpush1.msra.mxu0 0.0
  %3635 = vmatprep.subr.mxu0 0.0
  %3636 = vmatpush1.msra.mxu0 0.0
  %3637 = vmatprep.subr.mxu0 0.0
  %3638 = vmatpush1.msra.mxu0 0.0
  %3639 = vmatprep.subr.mxu0 0.0
  %3640 = vmatpush1.msra.mxu0 0.0
  %3641 = vmatprep.subr.mxu0 0.0
  %3642 = vmatpush1.msra.mxu0 0.0
  %3643 = vmatprep.subr.mxu0 0.0
  %3644 = vmatpush1.msra.mxu0 0.0
  %3645 = vmatprep.subr.mxu0 0.0
  %3646 = vmatpush1.msra.mxu0 0.0
  %3647 = vmatprep.subr.mxu0 0.0
  %3648 = vmatpush1.msra.mxu0 0.0
  %3649 = vmatprep.subr.mxu0 0.0
  %3650 = vmatpush1.msra.mxu0 0.0
  %3651 = vmatprep.subr.mxu0 0.0
  %3652 = vmatpush1.msra.mxu0 0.0
  %3653 = vmatprep.subr.mxu0 0.0
  %3654 = vmatpush1.msra.mxu0 0.0
  %3655 = vmatprep.subr.mxu0 0.0
  %3656 = vmatpush1.msra.mxu0 0.0
  %3657 = vmatprep.subr.mxu0 0.0
  %3658 = vmatpush1.msra.mxu0 0.0
  %3659 = vmatprep.subr.mxu0 0.0
  %3660 = vmatpush1.msra.mxu0 0.0
  %3661 = vmatprep.subr.mxu0 0.0
  %3662 = vmatpush1.msra.mxu0 0.0
  %3663 = vmatprep.subr.mxu0 0.0
  %3664 = vmatpush1.msra.mxu0 0.0
  %3665 = vmatprep.mubr.f32.mxu0 0.0
  %v3666 = vand.u32 %v3185, 4294901760
  %3667 = vmatmul.mubr.f32.gmra.mrb[0].mxu0 %v3666
  %v3668 = vpop.f32.mrb[0].mxu0
  %v3669 = vadd.f32 %v3594, %v3668
  %v3670 = vpop.f32.mrb[0].mxu0
  %3671 = vdwg.mxu0
  %v3672 = vadd.f32 %v3181, %v3669
  %v3673 = vxor.u32 %v3672, 2147483648
  %v3674 = vmul.f32 %v3673, 1.442695
  %v3675 = vpow.pop %v3674
  %v3676 = vadd.f32 %v3675, 1.0
  %v3677 = vrcp.pop %v3676
  %v3678 = vmul.f32 1.0, %v3677
  %v3679 = vadd.f32 %v3669, %v528
  %3681 = vrot.lane.b32.xlu0 %v3679, 64
  %v3682 = vpop.permute.xlu0 %3681
  %v3684 = vmul.f32 %v3678, %v3682
  %3686 = vrot.lane.b32.xlu0 %v3684, 64
  %v3687 = vpop.permute.xlu0 %3686
  %v3689 = vadd.f32 %v3181, %v3687
  %v3690 = vtanh.pop %v3689
  %v3691 = vsub.f32 %v3179, %v3690
  %3693 = vrot.lane.b32.xlu0 %v3691, 96
  %v3694 = vpop.permute.xlu0 %3693
  %v3696 = vmul.f32 %v3678, %v3694
  %3698 = vrot.lane.b32.xlu0 %v3696, 32
  %v3699 = vpop.permute.xlu0 %3698
  %v3701 = vadd.f32 %v3690, %v3699
  %s3702 = scalar_lea.vmem %s0, 56
  %v3703 = vld [vmem:[%s3702] sm:$0xff]
  %3705 = vrot.lane.b32.xlu0 %v3701, 64
  %v3706 = vpop.permute.xlu0 %3705
  %v3707 = vsel %vm31, %v3706, 0
  %3709 = vmatprep.subr.mxu0 0.0
  %v3710 = vand.u32 %v19, 4294901760
  %3711 = vmatpush1.msra.mxu0 %v3710
  %3712 = vmatprep.subr.mxu0 0.0
  %v3713 = vand.u32 %v20, 4294901760
  %3714 = vmatpush1.msra.mxu0 %v3713
  %3715 = vmatprep.subr.mxu0 0.0
  %v3716 = vand.u32 %v21, 4294901760
  %3717 = vmatpush1.msra.mxu0 %v3716
  %3718 = vmatprep.subr.mxu0 0.0
  %v3719 = vand.u32 %v22, 4294901760
  %3720 = vmatpush1.msra.mxu0 %v3719
  %3721 = vmatprep.subr.mxu0 0.0
  %3722 = vmatpush1.msra.mxu0 0.0
  %3723 = vmatprep.subr.mxu0 0.0
  %3724 = vmatpush1.msra.mxu0 0.0
  %3725 = vmatprep.subr.mxu0 0.0
  %3726 = vmatpush1.msra.mxu0 0.0
  %3727 = vmatprep.subr.mxu0 0.0
  %3728 = vmatpush1.msra.mxu0 0.0
  %3729 = vmatprep.subr.mxu0 0.0
  %3730 = vmatpush1.msra.mxu0 0.0
  %3731 = vmatprep.subr.mxu0 0.0
  %3732 = vmatpush1.msra.mxu0 0.0
  %3733 = vmatprep.subr.mxu0 0.0
  %3734 = vmatpush1.msra.mxu0 0.0
  %3735 = vmatprep.subr.mxu0 0.0
  %3736 = vmatpush1.msra.mxu0 0.0
  %3737 = vmatprep.subr.mxu0 0.0
  %3738 = vmatpush1.msra.mxu0 0.0
  %3739 = vmatprep.subr.mxu0 0.0
  %3740 = vmatpush1.msra.mxu0 0.0
  %3741 = vmatprep.subr.mxu0 0.0
  %3742 = vmatpush1.msra.mxu0 0.0
  %3743 = vmatprep.subr.mxu0 0.0
  %3744 = vmatpush1.msra.mxu0 0.0
  %3745 = vmatprep.subr.mxu0 0.0
  %3746 = vmatpush1.msra.mxu0 0.0
  %3747 = vmatprep.subr.mxu0 0.0
  %3748 = vmatpush1.msra.mxu0 0.0
  %3749 = vmatprep.subr.mxu0 0.0
  %3750 = vmatpush1.msra.mxu0 0.0
  %3751 = vmatprep.subr.mxu0 0.0
  %3752 = vmatpush1.msra.mxu0 0.0
  %3753 = vmatprep.subr.mxu0 0.0
  %3754 = vmatpush1.msra.mxu0 0.0
  %3755 = vmatprep.subr.mxu0 0.0
  %3756 = vmatpush1.msra.mxu0 0.0
  %3757 = vmatprep.subr.mxu0 0.0
  %3758 = vmatpush1.msra.mxu0 0.0
  %3759 = vmatprep.subr.mxu0 0.0
  %3760 = vmatpush1.msra.mxu0 0.0
  %3761 = vmatprep.subr.mxu0 0.0
  %3762 = vmatpush1.msra.mxu0 0.0
  %3763 = vmatprep.subr.mxu0 0.0
  %3764 = vmatpush1.msra.mxu0 0.0
  %3765 = vmatprep.subr.mxu0 0.0
  %3766 = vmatpush1.msra.mxu0 0.0
  %3767 = vmatprep.subr.mxu0 0.0
  %3768 = vmatpush1.msra.mxu0 0.0
  %3769 = vmatprep.subr.mxu0 0.0
  %3770 = vmatpush1.msra.mxu0 0.0
  %3771 = vmatprep.subr.mxu0 0.0
  %3772 = vmatpush1.msra.mxu0 0.0
  %3773 = vmatprep.subr.mxu0 0.0
  %3774 = vmatpush1.msra.mxu0 0.0
  %3775 = vmatprep.subr.mxu0 0.0
  %3776 = vmatpush1.msra.mxu0 0.0
  %3777 = vmatprep.mubr.f32.mxu0 0.0
  %v3778 = vand.u32 %v3707, 4294901760
  %v3779 = vsub.f32 %v3707, %v3778
  %v3780 = vand.u32 %v3779, 4294901760
  %v3781 = vsub.f32 %v3779, %v3780
  %v3782 = vand.u32 %v3781, 4294901760
  %3783 = vmatmul.mubr.f32.gmra.mrb[0].mxu0 %v3782
  %v3784 = vpop.f32.mrb[0].mxu0
  %v3785 = vadd.f32 0.0, %v3784
  %v3786 = vpop.f32.mrb[0].mxu0
  %3787 = vdwg.mxu0
  %3788 = vmatprep.subr.mxu0 0.0
  %v3789 = vand.u32 %v19, 4294901760
  %v3790 = vsub.f32 %v19, %v3789
  %v3791 = vand.u32 %v3790, 4294901760
  %v3792 = vsub.f32 %v3790, %v3791
  %v3793 = vand.u32 %v3792, 4294901760
  %3794 = vmatpush1.msra.mxu0 %v3793
  %3795 = vmatprep.subr.mxu0 0.0
  %v3796 = vand.u32 %v20, 4294901760
  %v3797 = vsub.f32 %v20, %v3796
  %v3798 = vand.u32 %v3797, 4294901760
  %v3799 = vsub.f32 %v3797, %v3798
  %v3800 = vand.u32 %v3799, 4294901760
  %3801 = vmatpush1.msra.mxu0 %v3800
  %3802 = vmatprep.subr.mxu0 0.0
  %v3803 = vand.u32 %v21, 4294901760
  %v3804 = vsub.f32 %v21, %v3803
  %v3805 = vand.u32 %v3804, 4294901760
  %v3806 = vsub.f32 %v3804, %v3805
  %v3807 = vand.u32 %v3806, 4294901760
  %3808 = vmatpush1.msra.mxu0 %v3807
  %3809 = vmatprep.subr.mxu0 0.0
  %v3810 = vand.u32 %v22, 4294901760
  %v3811 = vsub.f32 %v22, %v3810
  %v3812 = vand.u32 %v3811, 4294901760
  %v3813 = vsub.f32 %v3811, %v3812
  %v3814 = vand.u32 %v3813, 4294901760
  %3815 = vmatpush1.msra.mxu0 %v3814
  %3816 = vmatprep.subr.mxu0 0.0
  %3817 = vmatpush1.msra.mxu0 0.0
  %3818 = vmatprep.subr.mxu0 0.0
  %3819 = vmatpush1.msra.mxu0 0.0
  %3820 = vmatprep.subr.mxu0 0.0
  %3821 = vmatpush1.msra.mxu0 0.0
  %3822 = vmatprep.subr.mxu0 0.0
  %3823 = vmatpush1.msra.mxu0 0.0
  %3824 = vmatprep.subr.mxu0 0.0
  %3825 = vmatpush1.msra.mxu0 0.0
  %3826 = vmatprep.subr.mxu0 0.0
  %3827 = vmatpush1.msra.mxu0 0.0
  %3828 = vmatprep.subr.mxu0 0.0
  %3829 = vmatpush1.msra.mxu0 0.0
  %3830 = vmatprep.subr.mxu0 0.0
  %3831 = vmatpush1.msra.mxu0 0.0
  %3832 = vmatprep.subr.mxu0 0.0
  %3833 = vmatpush1.msra.mxu0 0.0
  %3834 = vmatprep.subr.mxu0 0.0
  %3835 = vmatpush1.msra.mxu0 0.0
  %3836 = vmatprep.subr.mxu0 0.0
  %3837 = vmatpush1.msra.mxu0 0.0
  %3838 = vmatprep.subr.mxu0 0.0
  %3839 = vmatpush1.msra.mxu0 0.0
  %3840 = vmatprep.subr.mxu0 0.0
  %3841 = vmatpush1.msra.mxu0 0.0
  %3842 = vmatprep.subr.mxu0 0.0
  %3843 = vmatpush1.msra.mxu0 0.0
  %3844 = vmatprep.subr.mxu0 0.0
  %3845 = vmatpush1.msra.mxu0 0.0
  %3846 = vmatprep.subr.mxu0 0.0
  %3847 = vmatpush1.msra.mxu0 0.0
  %3848 = vmatprep.subr.mxu0 0.0
  %3849 = vmatpush1.msra.mxu0 0.0
  %3850 = vmatprep.subr.mxu0 0.0
  %3851 = vmatpush1.msra.mxu0 0.0
  %3852 = vmatprep.subr.mxu0 0.0
  %3853 = vmatpush1.msra.mxu0 0.0
  %3854 = vmatprep.subr.mxu0 0.0
  %3855 = vmatpush1.msra.mxu0 0.0
  %3856 = vmatprep.subr.mxu0 0.0
  %3857 = vmatpush1.msra.mxu0 0.0
  %3858 = vmatprep.subr.mxu0 0.0
  %3859 = vmatpush1.msra.mxu0 0.0
  %3860 = vmatprep.subr.mxu0 0.0
  %3861 = vmatpush1.msra.mxu0 0.0
  %3862 = vmatprep.subr.mxu0 0.0
  %3863 = vmatpush1.msra.mxu0 0.0
  %3864 = vmatprep.subr.mxu0 0.0
  %3865 = vmatpush1.msra.mxu0 0.0
  %3866 = vmatprep.subr.mxu0 0.0
  %3867 = vmatpush1.msra.mxu0 0.0
  %3868 = vmatprep.subr.mxu0 0.0
  %3869 = vmatpush1.msra.mxu0 0.0
  %3870 = vmatprep.subr.mxu0 0.0
  %3871 = vmatpush1.msra.mxu0 0.0
  %3872 = vmatprep.mubr.f32.mxu0 0.0
  %v3873 = vand.u32 %v3707, 4294901760
  %3874 = vmatmul.mubr.f32.gmra.mrb[0].mxu0 %v3873
  %v3875 = vpop.f32.mrb[0].mxu0
  %v3876 = vadd.f32 %v3785, %v3875
  %v3877 = vpop.f32.mrb[0].mxu0
  %3878 = vdwg.mxu0
  %3879 = vmatprep.subr.mxu0 0.0
  %v3880 = vand.u32 %v19, 4294901760
  %v3881 = vsub.f32 %v19, %v3880
  %3882 = vmatpush1.msra.mxu0 %v3881
  %3883 = vmatprep.subr.mxu0 0.0
  %v3884 = vand.u32 %v20, 4294901760
  %v3885 = vsub.f32 %v20, %v3884
  %3886 = vmatpush1.msra.mxu0 %v3885
  %3887 = vmatprep.subr.mxu0 0.0
  %v3888 = vand.u32 %v21, 4294901760
  %v3889 = vsub.f32 %v21, %v3888
  %3890 = vmatpush1.msra.mxu0 %v3889
  %3891 = vmatprep.subr.mxu0 0.0
  %v3892 = vand.u32 %v22, 4294901760
  %v3893 = vsub.f32 %v22, %v3892
  %3894 = vmatpush1.msra.mxu0 %v3893
  %3895 = vmatprep.subr.mxu0 0.0
  %3896 = vmatpush1.msra.mxu0 0.0
  %3897 = vmatprep.subr.mxu0 0.0
  %3898 = vmatpush1.msra.mxu0 0.0
  %3899 = vmatprep.subr.mxu0 0.0
  %3900 = vmatpush1.msra.mxu0 0.0
  %3901 = vmatprep.subr.mxu0 0.0
  %3902 = vmatpush1.msra.mxu0 0.0
  %3903 = vmatprep.subr.mxu0 0.0
  %3904 = vmatpush1.msra.mxu0 0.0
  %3905 = vmatprep.subr.mxu0 0.0
  %3906 = vmatpush1.msra.mxu0 0.0
  %3907 = vmatprep.subr.mxu0 0.0
  %3908 = vmatpush1.msra.mxu0 0.0
  %3909 = vmatprep.subr.mxu0 0.0
  %3910 = vmatpush1.msra.mxu0 0.0
  %3911 = vmatprep.subr.mxu0 0.0
  %3912 = vmatpush1.msra.mxu0 0.0
  %3913 = vmatprep.subr.mxu0 0.0
  %3914 = vmatpush1.msra.mxu0 0.0
  %3915 = vmatprep.subr.mxu0 0.0
  %3916 = vmatpush1.msra.mxu0 0.0
  %3917 = vmatprep.subr.mxu0 0.0
  %3918 = vmatpush1.msra.mxu0 0.0
  %3919 = vmatprep.subr.mxu0 0.0
  %3920 = vmatpush1.msra.mxu0 0.0
  %3921 = vmatprep.subr.mxu0 0.0
  %3922 = vmatpush1.msra.mxu0 0.0
  %3923 = vmatprep.subr.mxu0 0.0
  %3924 = vmatpush1.msra.mxu0 0.0
  %3925 = vmatprep.subr.mxu0 0.0
  %3926 = vmatpush1.msra.mxu0 0.0
  %3927 = vmatprep.subr.mxu0 0.0
  %3928 = vmatpush1.msra.mxu0 0.0
  %3929 = vmatprep.subr.mxu0 0.0
  %3930 = vmatpush1.msra.mxu0 0.0
  %3931 = vmatprep.subr.mxu0 0.0
  %3932 = vmatpush1.msra.mxu0 0.0
  %3933 = vmatprep.subr.mxu0 0.0
  %3934 = vmatpush1.msra.mxu0 0.0
  %3935 = vmatprep.subr.mxu0 0.0
  %3936 = vmatpush1.msra.mxu0 0.0
  %3937 = vmatprep.subr.mxu0 0.0
  %3938 = vmatpush1.msra.mxu0 0.0
  %3939 = vmatprep.subr.mxu0 0.0
  %3940 = vmatpush1.msra.mxu0 0.0
  %3941 = vmatprep.subr.mxu0 0.0
  %3942 = vmatpush1.msra.mxu0 0.0
  %3943 = vmatprep.subr.mxu0 0.0
  %3944 = vmatpush1.msra.mxu0 0.0
  %3945 = vmatprep.subr.mxu0 0.0
  %3946 = vmatpush1.msra.mxu0 0.0
  %3947 = vmatprep.subr.mxu0 0.0
  %3948 = vmatpush1.msra.mxu0 0.0
  %3949 = vmatprep.subr.mxu0 0.0
  %3950 = vmatpush1.msra.mxu0 0.0
  %3951 = vmatprep.mubr.f32.mxu0 0.0
  %v3952 = vand.u32 %v3707, 4294901760
  %v3953 = vsub.f32 %v3707, %v3952
  %3954 = vmatmul.mubr.f32.gmra.mrb[0].mxu0 %v3953
  %v3955 = vpop.f32.mrb[0].mxu0
  %v3956 = vadd.f32 %v3876, %v3955
  %v3957 = vpop.f32.mrb[0].mxu0
  %3958 = vdwg.mxu0
  %3959 = vmatprep.subr.mxu0 0.0
  %v3960 = vand.u32 %v19, 4294901760
  %3961 = vmatpush1.msra.mxu0 %v3960
  %3962 = vmatprep.subr.mxu0 0.0
  %v3963 = vand.u32 %v20, 4294901760
  %3964 = vmatpush1.msra.mxu0 %v3963
  %3965 = vmatprep.subr.mxu0 0.0
  %v3966 = vand.u32 %v21, 4294901760
  %3967 = vmatpush1.msra.mxu0 %v3966
  %3968 = vmatprep.subr.mxu0 0.0
  %v3969 = vand.u32 %v22, 4294901760
  %3970 = vmatpush1.msra.mxu0 %v3969
  %3971 = vmatprep.subr.mxu0 0.0
  %3972 = vmatpush1.msra.mxu0 0.0
  %3973 = vmatprep.subr.mxu0 0.0
  %3974 = vmatpush1.msra.mxu0 0.0
  %3975 = vmatprep.subr.mxu0 0.0
  %3976 = vmatpush1.msra.mxu0 0.0
  %3977 = vmatprep.subr.mxu0 0.0
  %3978 = vmatpush1.msra.mxu0 0.0
  %3979 = vmatprep.subr.mxu0 0.0
  %3980 = vmatpush1.msra.mxu0 0.0
  %3981 = vmatprep.subr.mxu0 0.0
  %3982 = vmatpush1.msra.mxu0 0.0
  %3983 = vmatprep.subr.mxu0 0.0
  %3984 = vmatpush1.msra.mxu0 0.0
  %3985 = vmatprep.subr.mxu0 0.0
  %3986 = vmatpush1.msra.mxu0 0.0
  %3987 = vmatprep.subr.mxu0 0.0
  %3988 = vmatpush1.msra.mxu0 0.0
  %3989 = vmatprep.subr.mxu0 0.0
  %3990 = vmatpush1.msra.mxu0 0.0
  %3991 = vmatprep.subr.mxu0 0.0
  %3992 = vmatpush1.msra.mxu0 0.0
  %3993 = vmatprep.subr.mxu0 0.0
  %3994 = vmatpush1.msra.mxu0 0.0
  %3995 = vmatprep.subr.mxu0 0.0
  %3996 = vmatpush1.msra.mxu0 0.0
  %3997 = vmatprep.subr.mxu0 0.0
  %3998 = vmatpush1.msra.mxu0 0.0
  %3999 = vmatprep.subr.mxu0 0.0
  %4000 = vmatpush1.msra.mxu0 0.0
  %4001 = vmatprep.subr.mxu0 0.0
  %4002 = vmatpush1.msra.mxu0 0.0
  %4003 = vmatprep.subr.mxu0 0.0
  %4004 = vmatpush1.msra.mxu0 0.0
  %4005 = vmatprep.subr.mxu0 0.0
  %4006 = vmatpush1.msra.mxu0 0.0
  %4007 = vmatprep.subr.mxu0 0.0
  %4008 = vmatpush1.msra.mxu0 0.0
  %4009 = vmatprep.subr.mxu0 0.0
  %4010 = vmatpush1.msra.mxu0 0.0
  %4011 = vmatprep.subr.mxu0 0.0
  %4012 = vmatpush1.msra.mxu0 0.0
  %4013 = vmatprep.subr.mxu0 0.0
  %4014 = vmatpush1.msra.mxu0 0.0
  %4015 = vmatprep.subr.mxu0 0.0
  %4016 = vmatpush1.msra.mxu0 0.0
  %4017 = vmatprep.subr.mxu0 0.0
  %4018 = vmatpush1.msra.mxu0 0.0
  %4019 = vmatprep.subr.mxu0 0.0
  %4020 = vmatpush1.msra.mxu0 0.0
  %4021 = vmatprep.subr.mxu0 0.0
  %4022 = vmatpush1.msra.mxu0 0.0
  %4023 = vmatprep.subr.mxu0 0.0
  %4024 = vmatpush1.msra.mxu0 0.0
  %4025 = vmatprep.subr.mxu0 0.0
  %4026 = vmatpush1.msra.mxu0 0.0
  %4027 = vmatprep.mubr.f32.mxu0 0.0
  %v4028 = vand.u32 %v3707, 4294901760
  %v4029 = vsub.f32 %v3707, %v4028
  %v4030 = vand.u32 %v4029, 4294901760
  %4031 = vmatmul.mubr.f32.gmra.mrb[0].mxu0 %v4030
  %v4032 = vpop.f32.mrb[0].mxu0
  %v4033 = vadd.f32 %v3956, %v4032
  %v4034 = vpop.f32.mrb[0].mxu0
  %4035 = vdwg.mxu0
  %4036 = vmatprep.subr.mxu0 0.0
  %v4037 = vand.u32 %v19, 4294901760
  %v4038 = vsub.f32 %v19, %v4037
  %v4039 = vand.u32 %v4038, 4294901760
  %4040 = vmatpush1.msra.mxu0 %v4039
  %4041 = vmatprep.subr.mxu0 0.0
  %v4042 = vand.u32 %v20, 4294901760
  %v4043 = vsub.f32 %v20, %v4042
  %v4044 = vand.u32 %v4043, 4294901760
  %4045 = vmatpush1.msra.mxu0 %v4044
  %4046 = vmatprep.subr.mxu0 0.0
  %v4047 = vand.u32 %v21, 4294901760
  %v4048 = vsub.f32 %v21, %v4047
  %v4049 = vand.u32 %v4048, 4294901760
  %4050 = vmatpush1.msra.mxu0 %v4049
  %4051 = vmatprep.subr.mxu0 0.0
  %v4052 = vand.u32 %v22, 4294901760
  %v4053 = vsub.f32 %v22, %v4052
  %v4054 = vand.u32 %v4053, 4294901760
  %4055 = vmatpush1.msra.mxu0 %v4054
  %4056 = vmatprep.subr.mxu0 0.0
  %4057 = vmatpush1.msra.mxu0 0.0
  %4058 = vmatprep.subr.mxu0 0.0
  %4059 = vmatpush1.msra.mxu0 0.0
  %4060 = vmatprep.subr.mxu0 0.0
  %4061 = vmatpush1.msra.mxu0 0.0
  %4062 = vmatprep.subr.mxu0 0.0
  %4063 = vmatpush1.msra.mxu0 0.0
  %4064 = vmatprep.subr.mxu0 0.0
  %4065 = vmatpush1.msra.mxu0 0.0
  %4066 = vmatprep.subr.mxu0 0.0
  %4067 = vmatpush1.msra.mxu0 0.0
  %4068 = vmatprep.subr.mxu0 0.0
  %4069 = vmatpush1.msra.mxu0 0.0
  %4070 = vmatprep.subr.mxu0 0.0
  %4071 = vmatpush1.msra.mxu0 0.0
  %4072 = vmatprep.subr.mxu0 0.0
  %4073 = vmatpush1.msra.mxu0 0.0
  %4074 = vmatprep.subr.mxu0 0.0
  %4075 = vmatpush1.msra.mxu0 0.0
  %4076 = vmatprep.subr.mxu0 0.0
  %4077 = vmatpush1.msra.mxu0 0.0
  %4078 = vmatprep.subr.mxu0 0.0
  %4079 = vmatpush1.msra.mxu0 0.0
  %4080 = vmatprep.subr.mxu0 0.0
  %4081 = vmatpush1.msra.mxu0 0.0
  %4082 = vmatprep.subr.mxu0 0.0
  %4083 = vmatpush1.msra.mxu0 0.0
  %4084 = vmatprep.subr.mxu0 0.0
  %4085 = vmatpush1.msra.mxu0 0.0
  %4086 = vmatprep.subr.mxu0 0.0
  %4087 = vmatpush1.msra.mxu0 0.0
  %4088 = vmatprep.subr.mxu0 0.0
  %4089 = vmatpush1.msra.mxu0 0.0
  %4090 = vmatprep.subr.mxu0 0.0
  %4091 = vmatpush1.msra.mxu0 0.0
  %4092 = vmatprep.subr.mxu0 0.0
  %4093 = vmatpush1.msra.mxu0 0.0
  %4094 = vmatprep.subr.mxu0 0.0
  %4095 = vmatpush1.msra.mxu0 0.0
  %4096 = vmatprep.subr.mxu0 0.0
  %4097 = vmatpush1.msra.mxu0 0.0
  %4098 = vmatprep.subr.mxu0 0.0
  %4099 = vmatpush1.msra.mxu0 0.0
  %4100 = vmatprep.subr.mxu0 0.0
  %4101 = vmatpush1.msra.mxu0 0.0
  %4102 = vmatprep.subr.mxu0 0.0
  %4103 = vmatpush1.msra.mxu0 0.0
  %4104 = vmatprep.subr.mxu0 0.0
  %4105 = vmatpush1.msra.mxu0 0.0
  %4106 = vmatprep.subr.mxu0 0.0
  %4107 = vmatpush1.msra.mxu0 0.0
  %4108 = vmatprep.subr.mxu0 0.0
  %4109 = vmatpush1.msra.mxu0 0.0
  %4110 = vmatprep.subr.mxu0 0.0
  %4111 = vmatpush1.msra.mxu0 0.0
  %4112 = vmatprep.mubr.f32.mxu0 0.0
  %v4113 = vand.u32 %v3707, 4294901760
  %4114 = vmatmul.mubr.f32.gmra.mrb[0].mxu0 %v4113
  %v4115 = vpop.f32.mrb[0].mxu0
  %v4116 = vadd.f32 %v4033, %v4115
  %v4117 = vpop.f32.mrb[0].mxu0
  %4118 = vdwg.mxu0
  %4119 = vmatprep.subr.mxu0 0.0
  %v4120 = vand.u32 %v19, 4294901760
  %4121 = vmatpush1.msra.mxu0 %v4120
  %4122 = vmatprep.subr.mxu0 0.0
  %v4123 = vand.u32 %v20, 4294901760
  %4124 = vmatpush1.msra.mxu0 %v4123
  %4125 = vmatprep.subr.mxu0 0.0
  %v4126 = vand.u32 %v21, 4294901760
  %4127 = vmatpush1.msra.mxu0 %v4126
  %4128 = vmatprep.subr.mxu0 0.0
  %v4129 = vand.u32 %v22, 4294901760
  %4130 = vmatpush1.msra.mxu0 %v4129
  %4131 = vmatprep.subr.mxu0 0.0
  %4132 = vmatpush1.msra.mxu0 0.0
  %4133 = vmatprep.subr.mxu0 0.0
  %4134 = vmatpush1.msra.mxu0 0.0
  %4135 = vmatprep.subr.mxu0 0.0
  %4136 = vmatpush1.msra.mxu0 0.0
  %4137 = vmatprep.subr.mxu0 0.0
  %4138 = vmatpush1.msra.mxu0 0.0
  %4139 = vmatprep.subr.mxu0 0.0
  %4140 = vmatpush1.msra.mxu0 0.0
  %4141 = vmatprep.subr.mxu0 0.0
  %4142 = vmatpush1.msra.mxu0 0.0
  %4143 = vmatprep.subr.mxu0 0.0
  %4144 = vmatpush1.msra.mxu0 0.0
  %4145 = vmatprep.subr.mxu0 0.0
  %4146 = vmatpush1.msra.mxu0 0.0
  %4147 = vmatprep.subr.mxu0 0.0
  %4148 = vmatpush1.msra.mxu0 0.0
  %4149 = vmatprep.subr.mxu0 0.0
  %4150 = vmatpush1.msra.mxu0 0.0
  %4151 = vmatprep.subr.mxu0 0.0
  %4152 = vmatpush1.msra.mxu0 0.0
  %4153 = vmatprep.subr.mxu0 0.0
  %4154 = vmatpush1.msra.mxu0 0.0
  %4155 = vmatprep.subr.mxu0 0.0
  %4156 = vmatpush1.msra.mxu0 0.0
  %4157 = vmatprep.subr.mxu0 0.0
  %4158 = vmatpush1.msra.mxu0 0.0
  %4159 = vmatprep.subr.mxu0 0.0
  %4160 = vmatpush1.msra.mxu0 0.0
  %4161 = vmatprep.subr.mxu0 0.0
  %4162 = vmatpush1.msra.mxu0 0.0
  %4163 = vmatprep.subr.mxu0 0.0
  %4164 = vmatpush1.msra.mxu0 0.0
  %4165 = vmatprep.subr.mxu0 0.0
  %4166 = vmatpush1.msra.mxu0 0.0
  %4167 = vmatprep.subr.mxu0 0.0
  %4168 = vmatpush1.msra.mxu0 0.0
  %4169 = vmatprep.subr.mxu0 0.0
  %4170 = vmatpush1.msra.mxu0 0.0
  %4171 = vmatprep.subr.mxu0 0.0
  %4172 = vmatpush1.msra.mxu0 0.0
  %4173 = vmatprep.subr.mxu0 0.0
  %4174 = vmatpush1.msra.mxu0 0.0
  %4175 = vmatprep.subr.mxu0 0.0
  %4176 = vmatpush1.msra.mxu0 0.0
  %4177 = vmatprep.subr.mxu0 0.0
  %4178 = vmatpush1.msra.mxu0 0.0
  %4179 = vmatprep.subr.mxu0 0.0
  %4180 = vmatpush1.msra.mxu0 0.0
  %4181 = vmatprep.subr.mxu0 0.0
  %4182 = vmatpush1.msra.mxu0 0.0
  %4183 = vmatprep.subr.mxu0 0.0
  %4184 = vmatpush1.msra.mxu0 0.0
  %4185 = vmatprep.subr.mxu0 0.0
  %4186 = vmatpush1.msra.mxu0 0.0
  %4187 = vmatprep.mubr.f32.mxu0 0.0
  %v4188 = vand.u32 %v3707, 4294901760
  %4189 = vmatmul.mubr.f32.gmra.mrb[0].mxu0 %v4188
  %v4190 = vpop.f32.mrb[0].mxu0
  %v4191 = vadd.f32 %v4116, %v4190
  %v4192 = vpop.f32.mrb[0].mxu0
  %4193 = vdwg.mxu0
  %v4194 = vadd.f32 %v3703, %v4191
  %v4195 = vxor.u32 %v4194, 2147483648
  %v4196 = vmul.f32 %v4195, 1.442695
  %v4197 = vpow.pop %v4196
  %v4198 = vadd.f32 %v4197, 1.0
  %v4199 = vrcp.pop %v4198
  %v4200 = vmul.f32 1.0, %v4199
  %v4201 = vadd.f32 %v4191, %v528
  %4203 = vrot.lane.b32.xlu0 %v4201, 64
  %v4204 = vpop.permute.xlu0 %4203
  %v4206 = vmul.f32 %v4200, %v4204
  %4208 = vrot.lane.b32.xlu0 %v4206, 64
  %v4209 = vpop.permute.xlu0 %4208
  %v4211 = vadd.f32 %v3703, %v4209
  %v4212 = vtanh.pop %v4211
  %v4213 = vsub.f32 %v3701, %v4212
  %4215 = vrot.lane.b32.xlu0 %v4213, 96
  %v4216 = vpop.permute.xlu0 %4215
  %v4218 = vmul.f32 %v4200, %v4216
  %4220 = vrot.lane.b32.xlu0 %v4218, 32
  %v4221 = vpop.permute.xlu0 %4220
  %v4223 = vadd.f32 %v4212, %v4221
  %4225 = vrot.lane.b32.xlu0 %v3179, 96
  %v4226 = vpop.permute.xlu0 %4225
  %4229 = vrot.lane.b32.xlu0 %v4223, 32
  %v4230 = vpop.permute.xlu0 %4229
  %v4232 = vsel %vm31, %v2662, %v4226
  %v4233 = vsel %vm2132, %v4232, %v3701
  %v4234 = vsel %vm2134, %v4233, %v4230
  %4235 = vst [vmem:[%s4 + $0x8] sm:$0xff] %v4234
  %4236 = vrot.lane.b32.xlu0 %v4223, 64
  %v4237 = vpop.permute.xlu0 %4236
  %4239 = vst.msk [vmem:[%s5] sm:$0xff] %vm31, %v4237
  // Predicated region
  $region18: #{gru_pallas.1} parent=0 // pred_check
    _
  $region19: #{gru_pallas.1} parent=0 // pred_check_branch
    %4241 = sbr.rel (0) target = $region21
  $region20: #{gru_pallas.1} parent=0 // pred_region
    _
  $region21: #{gru_pallas.1} parent=0 // pred_fallthru
    _
  // Predicated region
  $region22: #{gru_pallas.1} parent=0 // pred_check
    _
  $region23: #{gru_pallas.1} parent=0 // pred_check_branch
    %4243 = sbr.rel (0) target = $region25
  $region24: #{gru_pallas.1} parent=0 // pred_region
    _
  $region25: #{gru_pallas.1} parent=0 // pred_fallthru
    _
  // Predicated region
  $region26: #{gru_pallas.1} parent=0 // pred_check
    _
  $region27: #{gru_pallas.1} parent=0 // pred_check_branch
    %4245 = sbr.rel (0) target = $region29
  $region28: #{gru_pallas.1} parent=0 // pred_region
    _
  $region29: #{gru_pallas.1} parent=0 // pred_fallthru
    _
  // Predicated region
  $region30: #{gru_pallas.1} parent=0 // pred_check
    _
  $region31: #{gru_pallas.1} parent=0 // pred_check_branch
    %4247 = sbr.rel (0) target = $region33
  $region32: #{gru_pallas.1} parent=0 // pred_region
    _
  $region33: #{gru_pallas.1} parent=0 // pred_fallthru
    _

</llo_original>
